<compile_context>
chip_gen: v5e
topology: v5e:2x2
jax: 0.10.0
libtpu: 0.0.40
codegen_flags: <defaults>
</compile_context>

<pallas_src>
import functools
import math

import jax
import jax.numpy as jnp
from jax.experimental import pallas as pl
from jax.experimental.pallas import tpu as pltpu

LN_EPS = 1e-12
# Set to None for exact f32 reference semantics; bf16 weights + bf16 MXU operands
# (f32 accumulation) is the recommended inference configuration.
MXU_DTYPE = jnp.bfloat16


def _vmem_limit_bytes():
    try:
        cap = int(pltpu.get_tpu_info().vmem_capacity_bytes)
    except Exception:
        cap = 64 * 1024 * 1024      # conservative fallback (v7x-sized)
    return int(max(32 * 1024 * 1024, min(cap - 16 * 1024 * 1024, 96 * 1024 * 1024)))


VMEM_LIMIT = _vmem_limit_bytes()
DEFAULT_BLOCK_M = 512 if VMEM_LIMIT >= (64 << 20) else 256   # bigger tiles on v5e/v6e


def _pick_bn(N, K, w_itemsize, block_n):
    """Output-tile width: divides N exactly (lane-dense), weight tile capped ~8 MiB."""
    cap = max(128, min(block_n, (8 * 1024 * 1024) // max(1, K * w_itemsize)))
    if N <= cap:
        return N
    cap = (cap // 128) * 128
    for cand in range(cap, 127, -128):
        if N % cand == 0:
            return cand
    return cap


def _heads_per_group(num_heads, dh):
    """Largest head group whose combined lane width is <= 128 (aligned, unmasked stores)."""
    if dh >= 128:
        return 1
    g = min(num_heads, max(1, 128 // dh))
    while num_heads % g:
        g -= 1
    return g


# ---------------------------- Pallas kernels ----------------------------

def _linear_kernel(x_ref, w_ref, b_ref, o_ref, *, activation, mxu_dtype):
    x = x_ref[...]
    if mxu_dtype is not None:
        x = x.astype(mxu_dtype)
    y = jnp.dot(x, w_ref[...], preferred_element_type=jnp.float32)
    y = y + b_ref[...].astype(jnp.float32)
    if activation == "gelu":
        # exact (erf) GELU, matching torch / transformers "gelu"
        y = 0.5 * y * (1.0 + jax.lax.erf(y * (1.0 / math.sqrt(2.0))))
    o_ref[...] = y.astype(o_ref.dtype)


def linear(x, w, b, activation=None, mxu_dtype=None,
           block_m=DEFAULT_BLOCK_M, block_n=1024):
    """y = act(x @ w + b).  Grid = (N-tiles, M-tiles) so each weight tile is DMA'd once."""
    M, K = x.shape
    N = w.shape[1]
    bm = min(block_m, M)
    bn = _pick_bn(N, K, w.dtype.itemsize, block_n)
    grid = (pl.cdiv(N, bn), pl.cdiv(M, bm))          # weight index varies on OUTER axis only
    return pl.pallas_call(
        functools.partial(_linear_kernel, activation=activation, mxu_dtype=mxu_dtype),
        grid=grid,
        in_specs=[
            pl.BlockSpec((bm, K), lambda j, i: (i, 0)),
            pl.BlockSpec((K, bn), lambda j, i: (0, j)),   # constant across inner M steps
            pl.BlockSpec((1, bn), lambda j, i: (0, j)),
        ],
        out_specs=pl.BlockSpec((bm, bn), lambda j, i: (i, j)),
        out_shape=jax.ShapeDtypeStruct((M, N), x.dtype),
        compiler_params=pltpu.CompilerParams(
            dimension_semantics=("parallel", "parallel"),
            vmem_limit_bytes=VMEM_LIMIT),
        cost_estimate=pl.CostEstimate(
            flops=2 * M * K * N,
            transcendentals=(M * N if activation == "gelu" else 0),
            bytes_accessed=int(x.size * x.dtype.itemsize + w.size * w.dtype.itemsize
                               + M * N * x.dtype.itemsize)),
    )(x, w, b.reshape(1, N))


def _linear_add_ln_kernel(x_ref, w_ref, b_ref, r_ref, g_ref, beta_ref, o_ref,
                          *, eps, mxu_dtype):
    x = x_ref[...]
    if mxu_dtype is not None:
        x = x.astype(mxu_dtype)
    y = jnp.dot(x, w_ref[...], preferred_element_type=jnp.float32)
    y = y + b_ref[...].astype(jnp.float32)
    y = y + r_ref[...].astype(jnp.float32)                      # residual add
    mu = jnp.mean(y, axis=-1, keepdims=True)
    var = jnp.mean((y - mu) ** 2, axis=-1, keepdims=True)
    yhat = (y - mu) * jax.lax.rsqrt(var + eps)
    o_ref[...] = (yhat * g_ref[...] + beta_ref[...]).astype(o_ref.dtype)


def linear_add_layernorm(x, w, b, residual, gamma, beta,
                         eps=LN_EPS, mxu_dtype=None, block_m=DEFAULT_BLOCK_M):
    """LayerNorm(x @ w + b + residual) fused in a single kernel (M-tiled, weight resident)."""
    M, K = x.shape
    H = w.shape[1]
    bm = min(block_m, M)
    grid = (pl.cdiv(M, bm),)
    return pl.pallas_call(
        functools.partial(_linear_add_ln_kernel, eps=eps, mxu_dtype=mxu_dtype),
        grid=grid,
        in_specs=[
            pl.BlockSpec((bm, K), lambda i: (i, 0)),
            pl.BlockSpec((K, H), lambda i: (0, 0)),   # loaded once (constant index)
            pl.BlockSpec((1, H), lambda i: (0, 0)),
            pl.BlockSpec((bm, H), lambda i: (i, 0)),
            pl.BlockSpec((1, H), lambda i: (0, 0)),
            pl.BlockSpec((1, H), lambda i: (0, 0)),
        ],
        out_specs=pl.BlockSpec((bm, H), lambda i: (i, 0)),
        out_shape=jax.ShapeDtypeStruct((M, H), x.dtype),
        compiler_params=pltpu.CompilerParams(
            dimension_semantics=("parallel",),
            vmem_limit_bytes=VMEM_LIMIT),
        cost_estimate=pl.CostEstimate(
            flops=2 * M * K * H,
            transcendentals=0,
            bytes_accessed=int(x.size * x.dtype.itemsize + w.size * w.dtype.itemsize
                               + 2 * M * H * x.dtype.itemsize)),
    )(x, w, b.reshape(1, H), residual, gamma.reshape(1, H), beta.reshape(1, H))


def _fused_qkv_attn_kernel(x_ref, mask_ref, w_ref, b_ref, o_ref, *,
                           num_heads, scale, mxu_dtype, heads_per_group):
    """One batch row per program: QKV projection + MHA fused; no HBM qkv intermediate."""
    cast = (lambda a: a.astype(mxu_dtype)) if mxu_dtype is not None else (lambda a: a)
    x = cast(x_ref[0])                                    # (S, H)
    qkv = jnp.dot(x, w_ref[...], preferred_element_type=jnp.float32)
    qkv = qkv + b_ref[...].astype(jnp.float32)            # (S, 3H) f32
    mask = mask_ref[0].astype(jnp.float32)                # (1, S) additive, bcast over queries
    H = w_ref.shape[0]
    dh = H // num_heads
    gw = heads_per_group * dh
    for g in range(num_heads // heads_per_group):
        parts = []
        for u in range(heads_per_group):                  # static unroll
            h = g * heads_per_group + u
            q = qkv[:, h * dh:(h + 1) * dh]
            k = qkv[:, H + h * dh:H + (h + 1) * dh]
            v = qkv[:, 2 * H + h * dh:2 * H + (h + 1) * dh]
            s = jax.lax.dot_general(cast(q), cast(k), (((1,), (1,)), ((), ())),
                                    preferred_element_type=jnp.float32) * scale
            s = s + mask
            s = s - jnp.max(s, axis=-1, keepdims=True)
            p = jnp.exp(s)
            p = p * pl.reciprocal(jnp.sum(p, axis=-1, keepdims=True), approx=True)
            parts.append(jnp.dot(cast(p), cast(v), preferred_element_type=jnp.float32))
        grp = parts[0] if len(parts) == 1 else jnp.concatenate(parts, axis=-1)
        # 128-lane-aligned head-group store; only one group's context live at a time
        o_ref[0, :, g * gw:(g + 1) * gw] = grp.astype(o_ref.dtype)


def fused_qkv_attention(x, mask3, w_qkv, b_qkv, num_heads, scale, mxu_dtype):
    B, S, H = x.shape
    H3 = w_qkv.shape[1]
    hpg = _heads_per_group(num_heads, H // num_heads)
    return pl.pallas_call(
        functools.partial(_fused_qkv_attn_kernel, num_heads=num_heads, scale=scale,
                          mxu_dtype=mxu_dtype, heads_per_group=hpg),
        grid=(B,),
        in_specs=[
            pl.BlockSpec((1, S, H), lambda b: (b, 0, 0)),
            pl.BlockSpec((1, 1, S), lambda b: (b, 0, 0)),   # shared across heads/queries
            pl.BlockSpec((H, H3), lambda b: (0, 0)),        # QKV weight resident in VMEM
            pl.BlockSpec((1, H3), lambda b: (0, 0)),
        ],
        out_specs=pl.BlockSpec((1, S, H), lambda b: (b, 0, 0)),
        out_shape=jax.ShapeDtypeStruct((B, S, H), x.dtype),
        compiler_params=pltpu.CompilerParams(
            dimension_semantics=("parallel",),
            vmem_limit_bytes=VMEM_LIMIT),
    )(x, mask3, w_qkv, b_qkv.reshape(1, H3))


def _graph_qkv_attn_kernel(x_ref, mask_ref, w_ref, b_ref, o_ref, *,
                           num_heads, scale, mxu_dtype):
    """One subgraph per program: QKV projection + node-0 CLS query attention."""
    cast = (lambda a: a.astype(mxu_dtype)) if mxu_dtype is not None else (lambda a: a)
    x = cast(x_ref[0])                                    # (N, H) per-node CLS embeddings
    qkv = jnp.dot(x, w_ref[...], preferred_element_type=jnp.float32)
    qkv = qkv + b_ref[...].astype(jnp.float32)            # (N, 3H)
    mask = mask_ref[0].astype(jnp.float32)                # (1, N) additive
    H = w_ref.shape[0]
    dh = H // num_heads
    parts = []
    for h in range(num_heads):
        q = qkv[0:1, h * dh:(h + 1) * dh]                 # node-0 CLS query (1, dh)
        k = qkv[:, H + h * dh:H + (h + 1) * dh]           # (N, dh)
        v = qkv[:, 2 * H + h * dh:2 * H + (h + 1) * dh]   # (N, dh)
        s = jax.lax.dot_general(cast(q), cast(k), (((1,), (1,)), ((), ())),
                                preferred_element_type=jnp.float32) * scale
        s = s + mask
        s = s - jnp.max(s, axis=-1, keepdims=True)
        p = jnp.exp(s)
        p = p * pl.reciprocal(jnp.sum(p, axis=-1, keepdims=True), approx=True)
        parts.append(jnp.dot(cast(p), cast(v), preferred_element_type=jnp.float32))
    o_ref[0] = jnp.concatenate(parts, axis=-1).astype(o_ref.dtype)   # (1, H) tiny concat


def fused_graph_attention(cls_emb, nmask3, w_qkv, b_qkv, num_heads, scale, mxu_dtype):
    B, N, H = cls_emb.shape
    H3 = w_qkv.shape[1]
    return pl.pallas_call(
        functools.partial(_graph_qkv_attn_kernel, num_heads=num_heads, scale=scale,
                          mxu_dtype=mxu_dtype),
        grid=(B,),
        in_specs=[
            pl.BlockSpec((1, N, H), lambda b: (b, 0, 0)),
            pl.BlockSpec((1, 1, N), lambda b: (b, 0, 0)),
            pl.BlockSpec((H, H3), lambda b: (0, 0)),
            pl.BlockSpec((1, H3), lambda b: (0, 0)),
        ],
        out_specs=pl.BlockSpec((1, 1, H), lambda b: (b, 0, 0)),
        out_shape=jax.ShapeDtypeStruct((B, 1, H), cls_emb.dtype),
        compiler_params=pltpu.CompilerParams(
            dimension_semantics=("parallel",),       # both TCs get work on v7x
            vmem_limit_bytes=VMEM_LIMIT),
    )(cls_emb, nmask3, w_qkv, b_qkv.reshape(1, H3))


def _station_write_kernel(h_ref, st_ref, o_ref):
    blk = h_ref[...]                                # (1, bs, H) - top token rows of node 0
    st = st_ref[...]                                # (1, 1, H)
    row = jax.lax.broadcasted_iota(jnp.int32, blk.shape, 1)
    o_ref[...] = jnp.where(row == 0, st, blk)       # replace token 0 with station embedding


def write_station(hidden, station3, subgraph_node_num):
    """hidden[b*N, 0, :] = station[b]; only an 8-row seq slab is DMA'd (aliased output)."""
    all_nodes, S, H = hidden.shape
    B = station3.shape[0]
    bs = min(8, S)                                  # only sublane row 0 is modified
    return pl.pallas_call(
        _station_write_kernel,
        grid=(B,),
        in_specs=[
            pl.BlockSpec((1, bs, H), lambda b: (b * subgraph_node_num, 0, 0)),
            pl.BlockSpec((1, 1, H), lambda b: (b, 0, 0)),
        ],
        out_specs=pl.BlockSpec((1, bs, H), lambda b: (b * subgraph_node_num, 0, 0)),
        out_shape=jax.ShapeDtypeStruct((all_nodes, S, H), hidden.dtype),
        input_output_aliases={0: 0},                # untouched rows keep their old values
        compiler_params=pltpu.CompilerParams(
            dimension_semantics=("parallel",),
            vmem_limit_bytes=VMEM_LIMIT),
    )(hidden, station3)


# ------------------------------- Model glue -------------------------------

def bert_layer(x, mask3, p, num_heads, mxu_dtype):
    B, S, H = x.shape                                  # B = all_nodes here
    scale = 1.0 / math.sqrt(H // num_heads)
    # fused: QKV projection + multi-head self-attention (no qkv HBM intermediate)
    ctx = fused_qkv_attention(x, mask3, p["self"]["w_qkv"], p["self"]["b_qkv"],
                              num_heads, scale, mxu_dtype)                 # (B, S, H)
    x2 = x.reshape(B * S, H)
    # fused: attention-output dense + residual + LayerNorm
    attn_out = linear_add_layernorm(ctx.reshape(B * S, H),
                                    p["attn_out_w"], p["attn_out_b"],
                                    x2, p["ln1_g"], p["ln1_b"],
                                    mxu_dtype=mxu_dtype)
    inter = linear(attn_out, p["inter_w"], p["inter_b"],
                   activation="gelu", mxu_dtype=mxu_dtype)
    # fused: FFN-output dense + residual + LayerNorm
    out = linear_add_layernorm(inter, p["out_w"], p["out_b"],
                               attn_out, p["ln2_g"], p["ln2_b"],
                               mxu_dtype=mxu_dtype)
    return out.reshape(B, S, H)


def graph_bert_encoder(hidden, attention_mask, node_mask, params, *,
                       num_heads, subgraph_node_num, mxu_dtype=MXU_DTYPE):
    all_nodes, S, H = hidden.shape
    N = subgraph_node_num
    B = all_nodes // N
    scale = 1.0 / math.sqrt(H // num_heads)
    mask3 = attention_mask.reshape(all_nodes, 1, S)     # per-node, per-key additive mask
    nmask3 = node_mask.reshape(B, 1, N)
    for i, lp in enumerate(params["layers"]):
        if i == 0:
            # mask the (uninitialized) station token for the center node of each subgraph
            tmask = mask3.at[::N, :, 0].set(-10000.0)
            hidden = bert_layer(hidden, tmask, lp, num_heads, mxu_dtype)
        else:
            cls_emb = hidden.reshape(B, N, S, H)[:, :, 1]                    # (B, N, H)
            station = fused_graph_attention(cls_emb, nmask3,
                                            params["graph_attn"]["w_qkv"],
                                            params["graph_attn"]["b_qkv"],
                                            num_heads, scale, mxu_dtype)     # (B, 1, H)
            hidden = write_station(hidden, station, N)                       # station token
            hidden = bert_layer(hidden, mask3, lp, num_heads, mxu_dtype)
    return hidden


# ------------------------------ Param init ------------------------------

def init_params(key, hidden, intermediate, num_layers, mxu_dtype=MXU_DTYPE):
    keys = jax.random.split(key, num_layers + 1)
    wdt = jnp.float32 if mxu_dtype is None else mxu_dtype   # weights pre-cast in HBM

    def dense(k, din, dout):
        kw, kb = jax.random.split(k)
        w = 0.02 * jax.random.normal(kw, (din, dout), jnp.float32)
        b = 0.02 * jax.random.normal(kb, (dout,), jnp.float32)
        return w.astype(wdt), b                              # bias stays f32

    def self_attn(k):
        kq, kk, kv = jax.random.split(k, 3)
        wq, bq = dense(kq, hidden, hidden)
        wk, bk = dense(kk, hidden, hidden)
        wv, bv = dense(kv, hidden, hidden)
        # fuse Q/K/V into a single (H, 3H) projection
        return dict(w_qkv=jnp.concatenate([wq, wk, wv], axis=1),
                    b_qkv=jnp.concatenate([bq, bk, bv], axis=0))

    layers = []
    for li in range(num_layers):
        k1, k2, k3, k4 = jax.random.split(keys[li], 4)
        lp = dict(self=self_attn(k1))
        lp["attn_out_w"], lp["attn_out_b"] = dense(k2, hidden, hidden)
        lp["ln1_g"] = jnp.ones((hidden,), jnp.float32)
        lp["ln1_b"] = jnp.zeros((hidden,), jnp.float32)
        lp["inter_w"], lp["inter_b"] = dense(k3, hidden, intermediate)
        lp["out_w"], lp["out_b"] = dense(k4, intermediate, hidden)
        lp["ln2_g"] = jnp.ones((hidden,), jnp.float32)
        lp["ln2_b"] = jnp.zeros((hidden,), jnp.float32)
        layers.append(lp)

    return dict(layers=layers, graph_attn=self_attn(keys[-1]))


# --------------------------------- Main ---------------------------------

if __name__ == "__main__":
    B, N, S, H = 2, 4, 8, 32          # batch, subgraph nodes, seq len, hidden
    num_heads = 2
    intermediate = 64
    num_layers = 2
    all_nodes = B * N

    key = jax.random.PRNGKey(0)
    kx, kp, km = jax.random.split(key, 3)

    hidden = jax.random.normal(kx, (all_nodes, S, H), jnp.float32)
    # BERT-style extended additive masks (0 = visible, -10000 = masked)
    tok_keep = (jax.random.uniform(km, (all_nodes, 1, 1, S)) > 0.1).astype(jnp.float32)
    attention_mask = (1.0 - tok_keep) * -10000.0
    node_mask = jnp.zeros((B, 1, 1, N), jnp.float32)

    params = init_params(kp, H, intermediate, num_layers)

    fwd = jax.jit(functools.partial(graph_bert_encoder,
                                    num_heads=num_heads,
                                    subgraph_node_num=N))
    out = fwd(hidden, attention_mask, node_mask, params)
    out = jax.block_until_ready(out)
    assert out.shape == (all_nodes, S, H)
    assert bool(jnp.all(jnp.isfinite(out)))
    print("KERNEL_OK")
</pallas_src>

<mosaic_0001>
module attributes {stable_mosaic.version = 11 : i64} {
  func.func @_linear_kernel(%arg0: i32, %arg1: i32, %arg2: memref<64x32xf32, #tpu.memory_space<vmem>>, %arg3: memref<32x64xbf16, #tpu.memory_space<vmem>>, %arg4: memref<1x64xf32, #tpu.memory_space<vmem>>, %arg5: memref<64x64xf32, #tpu.memory_space<vmem>>) attributes {dimension_semantics = [#tpu.dimension_semantics<parallel>, #tpu.dimension_semantics<parallel>], iteration_bounds = array<i64: 1, 1>, scalar_prefetch = 0 : i64, scratch_operands = 0 : i64, tpu.core_type = #tpu.core_type<tc>, window_params = [{transform_indices = @transform_0, window_bounds = array<i64: 64, 32>}, {transform_indices = @transform_1, window_bounds = array<i64: 32, 64>}, {transform_indices = @transform_2, window_bounds = array<i64: 1, 64>}, {transform_indices = @transform_3, window_bounds = array<i64: 64, 64>}]} {
    %c0 = arith.constant 0 : index
    %c0_0 = arith.constant 0 : index
    %0 = vector.load %arg2[%c0, %c0_0] : memref<64x32xf32, #tpu.memory_space<vmem>>, vector<64x32xf32>
    %1 = arith.truncf %0 : vector<64x32xf32> to vector<64x32xbf16>
    %c0_1 = arith.constant 0 : index
    %c0_2 = arith.constant 0 : index
    %2 = vector.load %arg3[%c0_1, %c0_2] : memref<32x64xbf16, #tpu.memory_space<vmem>>, vector<32x64xbf16>
    %cst = arith.constant dense<0.000000e+00> : vector<64x64xf32>
    %3 = tpu.matmul %1, %2, %cst {dimension_numbers = #tpu.dot_dimension_numbers<[1], [0], [0], [1], [0, 0, 1, 1], [], []>} : vector<64x32xbf16>, vector<32x64xbf16>, vector<64x64xf32> -> vector<64x64xf32>
    %c0_3 = arith.constant 0 : index
    %c0_4 = arith.constant 0 : index
    %4 = vector.load %arg4[%c0_3, %c0_4] : memref<1x64xf32, #tpu.memory_space<vmem>>, vector<1x64xf32>
    %5 = vector.broadcast %4 : vector<1x64xf32> to vector<64x64xf32>
    %6 = arith.addf %3, %5 : vector<64x64xf32>
    %cst_5 = arith.constant 5.000000e-01 : f32
    %7 = vector.broadcast %cst_5 : f32 to vector<64x64xf32>
    %8 = arith.mulf %7, %6 : vector<64x64xf32>
    %cst_6 = arith.constant 0.707106769 : f32
    %9 = vector.broadcast %cst_6 : f32 to vector<64x64xf32>
    %10 = arith.mulf %6, %9 : vector<64x64xf32>
    %11 = math.erf %10 : vector<64x64xf32>
    %cst_7 = arith.constant 1.000000e+00 : f32
    %12 = vector.broadcast %cst_7 : f32 to vector<64x64xf32>
    %13 = arith.addf %12, %11 : vector<64x64xf32>
    %14 = arith.mulf %8, %13 : vector<64x64xf32>
    %c0_8 = arith.constant 0 : index
    %c0_9 = arith.constant 0 : index
    %15 = vector.load %arg5[%c0_8, %c0_9] : memref<64x64xf32, #tpu.memory_space<vmem>>, vector<64x64xf32>
    tpu.vector_store %arg5[%c0_8, %c0_9], %14 {strides = array<i32>} : memref<64x64xf32, #tpu.memory_space<vmem>>, vector<64x64xf32>,
    return
  }
  func.func @transform_0(%arg0: i32, %arg1: i32) -> (i32, i32) {
    %c0_i32 = arith.constant 0 : i32
    %c0_i32_0 = arith.constant 0 : i32
    return %arg1, %c0_i32 : i32, i32
  }
  func.func @transform_1(%arg0: i32, %arg1: i32) -> (i32, i32) {
    %c0_i32 = arith.constant 0 : i32
    %c0_i32_0 = arith.constant 0 : i32
    return %c0_i32, %arg0 : i32, i32
  }
  func.func @transform_2(%arg0: i32, %arg1: i32) -> (i32, i32) {
    %c0_i32 = arith.constant 0 : i32
    %c0_i32_0 = arith.constant 0 : i32
    return %c0_i32, %arg0 : i32, i32
  }
  func.func @transform_3(%arg0: i32, %arg1: i32) -> (i32, i32) {
    %c0_i32 = arith.constant 0 : i32
    return %arg1, %arg0 : i32, i32
  }
}

module attributes {stable_mosaic.version = 11 : i64} {
  func.func @_linear_add_ln_kernel(%arg0: i32, %arg1: memref<64x32xf32, #tpu.memory_space<vmem>>, %arg2: memref<32x32xbf16, #tpu.memory_space<vmem>>, %arg3: memref<1x32xf32, #tpu.memory_space<vmem>>, %arg4: memref<64x32xf32, #tpu.memory_space<vmem>>, %arg5: memref<1x32xf32, #tpu.memory_space<vmem>>, %arg6: memref<1x32xf32, #tpu.memory_space<vmem>>, %arg7: memref<64x32xf32, #tpu.memory_space<vmem>>) attributes {dimension_semantics = [#tpu.dimension_semantics<parallel>], iteration_bounds = array<i64: 1>, scalar_prefetch = 0 : i64, scratch_operands = 0 : i64, tpu.core_type = #tpu.core_type<tc>, window_params = [{transform_indices = @transform_0, window_bounds = array<i64: 64, 32>}, {pipeline_mode = #tpu.pipeline_mode<synchronous>, transform_indices = @transform_1, window_bounds = array<i64: 32, 32>}, {pipeline_mode = #tpu.pipeline_mode<synchronous>, transform_indices = @transform_2, window_bounds = array<i64: 1, 32>}, {transform_indices = @transform_3, window_bounds = array<i64: 64, 32>}, {pipeline_mode = #tpu.pipeline_mode<synchronous>, transform_indices = @transform_4, window_bounds = array<i64: 1, 32>}, {pipeline_mode = #tpu.pipeline_mode<synchronous>, transform_indices = @transform_5, window_bounds = array<i64: 1, 32>}, {transform_indices = @transform_6, window_bounds = array<i64: 64, 32>}]} {
    %c0 = arith.constant 0 : index
    %c0_0 = arith.constant 0 : index
    %0 = vector.load %arg1[%c0, %c0_0] : memref<64x32xf32, #tpu.memory_space<vmem>>, vector<64x32xf32>
    %1 = arith.truncf %0 : vector<64x32xf32> to vector<64x32xbf16>
    %c0_1 = arith.constant 0 : index
    %c0_2 = arith.constant 0 : index
    %2 = vector.load %arg2[%c0_1, %c0_2] : memref<32x32xbf16, #tpu.memory_space<vmem>>, vector<32x32xbf16>
    %cst = arith.constant dense<0.000000e+00> : vector<64x32xf32>
    %3 = tpu.matmul %1, %2, %cst {dimension_numbers = #tpu.dot_dimension_numbers<[1], [0], [0], [1], [0, 0, 1, 1], [], []>} : vector<64x32xbf16>, vector<32x32xbf16>, vector<64x32xf32> -> vector<64x32xf32>
    %c0_3 = arith.constant 0 : index
    %c0_4 = arith.constant 0 : index
    %4 = vector.load %arg3[%c0_3, %c0_4] : memref<1x32xf32, #tpu.memory_space<vmem>>, vector<1x32xf32>
    %5 = vector.broadcast %4 : vector<1x32xf32> to vector<64x32xf32>
    %6 = arith.addf %3, %5 : vector<64x32xf32>
    %c0_5 = arith.constant 0 : index
    %c0_6 = arith.constant 0 : index
    %7 = vector.load %arg4[%c0_5, %c0_6] : memref<64x32xf32, #tpu.memory_space<vmem>>, vector<64x32xf32>
    %8 = arith.addf %6, %7 : vector<64x32xf32>
    %cst_7 = arith.constant dense<0.000000e+00> : vector<64xf32>
    %9 = vector.multi_reduction <add>, %8, %cst_7 [1] : vector<64x32xf32> to vector<64xf32>
    %10 = vector.shape_cast %9 : vector<64xf32> to vector<64x1xf32>
    %cst_8 = arith.constant 3.200000e+01 : f32
    %11 = vector.broadcast %cst_8 : f32 to vector<64x1xf32>
    %12 = arith.divf %10, %11 : vector<64x1xf32>
    %13 = vector.broadcast %12 : vector<64x1xf32> to vector<64x32xf32>
    %14 = arith.subf %8, %13 : vector<64x32xf32>
    %15 = arith.mulf %14, %14 : vector<64x32xf32>
    %cst_9 = arith.constant dense<0.000000e+00> : vector<64xf32>
    %16 = vector.multi_reduction <add>, %15, %cst_9 [1] : vector<64x32xf32> to vector<64xf32>
    %17 = vector.shape_cast %16 : vector<64xf32> to vector<64x1xf32>
    %cst_10 = arith.constant 3.200000e+01 : f32
    %18 = vector.broadcast %cst_10 : f32 to vector<64x1xf32>
    %19 = arith.divf %17, %18 : vector<64x1xf32>
    %20 = vector.broadcast %12 : vector<64x1xf32> to vector<64x32xf32>
    %21 = arith.subf %8, %20 : vector<64x32xf32>
    %cst_11 = arith.constant 9.99999996E-13 : f32
    %22 = vector.broadcast %cst_11 : f32 to vector<64x1xf32>
    %23 = arith.addf %19, %22 : vector<64x1xf32>
    %24 = math.rsqrt %23 : vector<64x1xf32>
    %25 = vector.broadcast %24 : vector<64x1xf32> to vector<64x32xf32>
    %26 = arith.mulf %21, %25 : vector<64x32xf32>
    %c0_12 = arith.constant 0 : index
    %c0_13 = arith.constant 0 : index
    %27 = vector.load %arg5[%c0_12, %c0_13] : memref<1x32xf32, #tpu.memory_space<vmem>>, vector<1x32xf32>
    %28 = vector.broadcast %27 : vector<1x32xf32> to vector<64x32xf32>
    %29 = arith.mulf %26, %28 : vector<64x32xf32>
    %c0_14 = arith.constant 0 : index
    %c0_15 = arith.constant 0 : index
    %30 = vector.load %arg6[%c0_14, %c0_15] : memref<1x32xf32, #tpu.memory_space<vmem>>, vector<1x32xf32>
    %31 = vector.broadcast %30 : vector<1x32xf32> to vector<64x32xf32>
    %32 = arith.addf %29, %31 : vector<64x32xf32>
    %c0_16 = arith.constant 0 : index
    %c0_17 = arith.constant 0 : index
    %33 = vector.load %arg7[%c0_16, %c0_17] : memref<64x32xf32, #tpu.memory_space<vmem>>, vector<64x32xf32>
    tpu.vector_store %arg7[%c0_16, %c0_17], %32 {strides = array<i32>} : memref<64x32xf32, #tpu.memory_space<vmem>>, vector<64x32xf32>,
    return
  }
  func.func @transform_0(%arg0: i32) -> (i32, i32) {
    %c0_i32 = arith.constant 0 : i32
    %c0_i32_0 = arith.constant 0 : i32
    return %arg0, %c0_i32 : i32, i32
  }
  func.func @transform_1(%arg0: i32) -> (i32, i32) {
    %c0_i32 = arith.constant 0 : i32
    %c0_i32_0 = arith.constant 0 : i32
    %c0_i32_1 = arith.constant 0 : i32
    return %c0_i32, %c0_i32_0 : i32, i32
  }
  func.func @transform_2(%arg0: i32) -> (i32, i32) {
    %c0_i32 = arith.constant 0 : i32
    %c0_i32_0 = arith.constant 0 : i32
    %c0_i32_1 = arith.constant 0 : i32
    return %c0_i32, %c0_i32_0 : i32, i32
  }
  func.func @transform_3(%arg0: i32) -> (i32, i32) {
    %c0_i32 = arith.constant 0 : i32
    %c0_i32_0 = arith.constant 0 : i32
    return %arg0, %c0_i32 : i32, i32
  }
  func.func @transform_4(%arg0: i32) -> (i32, i32) {
    %c0_i32 = arith.constant 0 : i32
    %c0_i32_0 = arith.constant 0 : i32
    %c0_i32_1 = arith.constant 0 : i32
    return %c0_i32, %c0_i32_0 : i32, i32
  }
  func.func @transform_5(%arg0: i32) -> (i32, i32) {
    %c0_i32 = arith.constant 0 : i32
    %c0_i32_0 = arith.constant 0 : i32
    %c0_i32_1 = arith.constant 0 : i32
    return %c0_i32, %c0_i32_0 : i32, i32
  }
  func.func @transform_6(%arg0: i32) -> (i32, i32) {
    %c0_i32 = arith.constant 0 : i32
    %c0_i32_0 = arith.constant 0 : i32
    return %arg0, %c0_i32 : i32, i32
  }
}

module attributes {stable_mosaic.version = 11 : i64} {
  func.func @_linear_add_ln_kernel(%arg0: i32, %arg1: memref<64x64xf32, #tpu.memory_space<vmem>>, %arg2: memref<64x32xbf16, #tpu.memory_space<vmem>>, %arg3: memref<1x32xf32, #tpu.memory_space<vmem>>, %arg4: memref<64x32xf32, #tpu.memory_space<vmem>>, %arg5: memref<1x32xf32, #tpu.memory_space<vmem>>, %arg6: memref<1x32xf32, #tpu.memory_space<vmem>>, %arg7: memref<64x32xf32, #tpu.memory_space<vmem>>) attributes {dimension_semantics = [#tpu.dimension_semantics<parallel>], iteration_bounds = array<i64: 1>, scalar_prefetch = 0 : i64, scratch_operands = 0 : i64, tpu.core_type = #tpu.core_type<tc>, window_params = [{transform_indices = @transform_0, window_bounds = array<i64: 64, 64>}, {pipeline_mode = #tpu.pipeline_mode<synchronous>, transform_indices = @transform_1, window_bounds = array<i64: 64, 32>}, {pipeline_mode = #tpu.pipeline_mode<synchronous>, transform_indices = @transform_2, window_bounds = array<i64: 1, 32>}, {transform_indices = @transform_3, window_bounds = array<i64: 64, 32>}, {pipeline_mode = #tpu.pipeline_mode<synchronous>, transform_indices = @transform_4, window_bounds = array<i64: 1, 32>}, {pipeline_mode = #tpu.pipeline_mode<synchronous>, transform_indices = @transform_5, window_bounds = array<i64: 1, 32>}, {transform_indices = @transform_6, window_bounds = array<i64: 64, 32>}]} {
    %c0 = arith.constant 0 : index
    %c0_0 = arith.constant 0 : index
    %0 = vector.load %arg1[%c0, %c0_0] : memref<64x64xf32, #tpu.memory_space<vmem>>, vector<64x64xf32>
    %1 = arith.truncf %0 : vector<64x64xf32> to vector<64x64xbf16>
    %c0_1 = arith.constant 0 : index
    %c0_2 = arith.constant 0 : index
    %2 = vector.load %arg2[%c0_1, %c0_2] : memref<64x32xbf16, #tpu.memory_space<vmem>>, vector<64x32xbf16>
    %cst = arith.constant dense<0.000000e+00> : vector<64x32xf32>
    %3 = tpu.matmul %1, %2, %cst {dimension_numbers = #tpu.dot_dimension_numbers<[1], [0], [0], [1], [0, 0, 1, 1], [], []>} : vector<64x64xbf16>, vector<64x32xbf16>, vector<64x32xf32> -> vector<64x32xf32>
    %c0_3 = arith.constant 0 : index
    %c0_4 = arith.constant 0 : index
    %4 = vector.load %arg3[%c0_3, %c0_4] : memref<1x32xf32, #tpu.memory_space<vmem>>, vector<1x32xf32>
    %5 = vector.broadcast %4 : vector<1x32xf32> to vector<64x32xf32>
    %6 = arith.addf %3, %5 : vector<64x32xf32>
    %c0_5 = arith.constant 0 : index
    %c0_6 = arith.constant 0 : index
    %7 = vector.load %arg4[%c0_5, %c0_6] : memref<64x32xf32, #tpu.memory_space<vmem>>, vector<64x32xf32>
    %8 = arith.addf %6, %7 : vector<64x32xf32>
    %cst_7 = arith.constant dense<0.000000e+00> : vector<64xf32>
    %9 = vector.multi_reduction <add>, %8, %cst_7 [1] : vector<64x32xf32> to vector<64xf32>
    %10 = vector.shape_cast %9 : vector<64xf32> to vector<64x1xf32>
    %cst_8 = arith.constant 3.200000e+01 : f32
    %11 = vector.broadcast %cst_8 : f32 to vector<64x1xf32>
    %12 = arith.divf %10, %11 : vector<64x1xf32>
    %13 = vector.broadcast %12 : vector<64x1xf32> to vector<64x32xf32>
    %14 = arith.subf %8, %13 : vector<64x32xf32>
    %15 = arith.mulf %14, %14 : vector<64x32xf32>
    %cst_9 = arith.constant dense<0.000000e+00> : vector<64xf32>
    %16 = vector.multi_reduction <add>, %15, %cst_9 [1] : vector<64x32xf32> to vector<64xf32>
    %17 = vector.shape_cast %16 : vector<64xf32> to vector<64x1xf32>
    %cst_10 = arith.constant 3.200000e+01 : f32
    %18 = vector.broadcast %cst_10 : f32 to vector<64x1xf32>
    %19 = arith.divf %17, %18 : vector<64x1xf32>
    %20 = vector.broadcast %12 : vector<64x1xf32> to vector<64x32xf32>
    %21 = arith.subf %8, %20 : vector<64x32xf32>
    %cst_11 = arith.constant 9.99999996E-13 : f32
    %22 = vector.broadcast %cst_11 : f32 to vector<64x1xf32>
    %23 = arith.addf %19, %22 : vector<64x1xf32>
    %24 = math.rsqrt %23 : vector<64x1xf32>
    %25 = vector.broadcast %24 : vector<64x1xf32> to vector<64x32xf32>
    %26 = arith.mulf %21, %25 : vector<64x32xf32>
    %c0_12 = arith.constant 0 : index
    %c0_13 = arith.constant 0 : index
    %27 = vector.load %arg5[%c0_12, %c0_13] : memref<1x32xf32, #tpu.memory_space<vmem>>, vector<1x32xf32>
    %28 = vector.broadcast %27 : vector<1x32xf32> to vector<64x32xf32>
    %29 = arith.mulf %26, %28 : vector<64x32xf32>
    %c0_14 = arith.constant 0 : index
    %c0_15 = arith.constant 0 : index
    %30 = vector.load %arg6[%c0_14, %c0_15] : memref<1x32xf32, #tpu.memory_space<vmem>>, vector<1x32xf32>
    %31 = vector.broadcast %30 : vector<1x32xf32> to vector<64x32xf32>
    %32 = arith.addf %29, %31 : vector<64x32xf32>
    %c0_16 = arith.constant 0 : index
    %c0_17 = arith.constant 0 : index
    %33 = vector.load %arg7[%c0_16, %c0_17] : memref<64x32xf32, #tpu.memory_space<vmem>>, vector<64x32xf32>
    tpu.vector_store %arg7[%c0_16, %c0_17], %32 {strides = array<i32>} : memref<64x32xf32, #tpu.memory_space<vmem>>, vector<64x32xf32>,
    return
  }
  func.func @transform_0(%arg0: i32) -> (i32, i32) {
    %c0_i32 = arith.constant 0 : i32
    %c0_i32_0 = arith.constant 0 : i32
    return %arg0, %c0_i32 : i32, i32
  }
  func.func @transform_1(%arg0: i32) -> (i32, i32) {
    %c0_i32 = arith.constant 0 : i32
    %c0_i32_0 = arith.constant 0 : i32
    %c0_i32_1 = arith.constant 0 : i32
    return %c0_i32, %c0_i32_0 : i32, i32
  }
  func.func @transform_2(%arg0: i32) -> (i32, i32) {
    %c0_i32 = arith.constant 0 : i32
    %c0_i32_0 = arith.constant 0 : i32
    %c0_i32_1 = arith.constant 0 : i32
    return %c0_i32, %c0_i32_0 : i32, i32
  }
  func.func @transform_3(%arg0: i32) -> (i32, i32) {
    %c0_i32 = arith.constant 0 : i32
    %c0_i32_0 = arith.constant 0 : i32
    return %arg0, %c0_i32 : i32, i32
  }
  func.func @transform_4(%arg0: i32) -> (i32, i32) {
    %c0_i32 = arith.constant 0 : i32
    %c0_i32_0 = arith.constant 0 : i32
    %c0_i32_1 = arith.constant 0 : i32
    return %c0_i32, %c0_i32_0 : i32, i32
  }
  func.func @transform_5(%arg0: i32) -> (i32, i32) {
    %c0_i32 = arith.constant 0 : i32
    %c0_i32_0 = arith.constant 0 : i32
    %c0_i32_1 = arith.constant 0 : i32
    return %c0_i32, %c0_i32_0 : i32, i32
  }
  func.func @transform_6(%arg0: i32) -> (i32, i32) {
    %c0_i32 = arith.constant 0 : i32
    %c0_i32_0 = arith.constant 0 : i32
    return %arg0, %c0_i32 : i32, i32
  }
}

module attributes {stable_mosaic.version = 11 : i64} {
  func.func @_fused_qkv_attn_kernel(%arg0: i32, %arg1: memref<1x8x32xf32, #tpu.memory_space<vmem>>, %arg2: memref<1x1x8xf32, #tpu.memory_space<vmem>>, %arg3: memref<32x96xbf16, #tpu.memory_space<vmem>>, %arg4: memref<1x96xf32, #tpu.memory_space<vmem>>, %arg5: memref<1x8x32xf32, #tpu.memory_space<vmem>>) attributes {dimension_semantics = [#tpu.dimension_semantics<parallel>], iteration_bounds = array<i64: 8>, scalar_prefetch = 0 : i64, scratch_operands = 0 : i64, tpu.core_type = #tpu.core_type<tc>, window_params = [{transform_indices = @transform_0, window_bounds = array<i64: 1, 8, 32>}, {transform_indices = @transform_1, window_bounds = array<i64: 1, 1, 8>}, {pipeline_mode = #tpu.pipeline_mode<synchronous>, transform_indices = @transform_2, window_bounds = array<i64: 32, 96>}, {pipeline_mode = #tpu.pipeline_mode<synchronous>, transform_indices = @transform_3, window_bounds = array<i64: 1, 96>}, {transform_indices = @transform_4, window_bounds = array<i64: 1, 8, 32>}]} {
    %c0 = arith.constant 0 : index
    %c0_0 = arith.constant 0 : index
    %c0_1 = arith.constant 0 : index
    %0 = vector.load %arg1[%c0, %c0_0, %c0_1] : memref<1x8x32xf32, #tpu.memory_space<vmem>>, vector<1x8x32xf32>
    %1 = vector.shape_cast %0 : vector<1x8x32xf32> to vector<8x32xf32>
    %2 = arith.truncf %1 : vector<8x32xf32> to vector<8x32xbf16>
    %c0_2 = arith.constant 0 : index
    %c0_3 = arith.constant 0 : index
    %3 = vector.load %arg3[%c0_2, %c0_3] : memref<32x96xbf16, #tpu.memory_space<vmem>>, vector<32x96xbf16>
    %cst = arith.constant dense<0.000000e+00> : vector<8x96xf32>
    %4 = tpu.matmul %2, %3, %cst {dimension_numbers = #tpu.dot_dimension_numbers<[1], [0], [0], [1], [0, 0, 1, 1], [], []>} : vector<8x32xbf16>, vector<32x96xbf16>, vector<8x96xf32> -> vector<8x96xf32>
    %c0_4 = arith.constant 0 : index
    %c0_5 = arith.constant 0 : index
    %5 = vector.load %arg4[%c0_4, %c0_5] : memref<1x96xf32, #tpu.memory_space<vmem>>, vector<1x96xf32>
    %6 = vector.broadcast %5 : vector<1x96xf32> to vector<8x96xf32>
    %7 = arith.addf %4, %6 : vector<8x96xf32>
    %c0_6 = arith.constant 0 : index
    %c0_7 = arith.constant 0 : index
    %c0_8 = arith.constant 0 : index
    %8 = vector.load %arg2[%c0_6, %c0_7, %c0_8] : memref<1x1x8xf32, #tpu.memory_space<vmem>>, vector<1x1x8xf32>
    %9 = vector.shape_cast %8 : vector<1x1x8xf32> to vector<1x8xf32>
    %10 = vector.extract_strided_slice %7 {offsets = [0, 0], sizes = [8, 16], strides = [1, 1]} : vector<8x96xf32> to vector<8x16xf32>
    %11 = vector.extract_strided_slice %7 {offsets = [0, 32], sizes = [8, 16], strides = [1, 1]} : vector<8x96xf32> to vector<8x16xf32>
    %12 = vector.extract_strided_slice %7 {offsets = [0, 64], sizes = [8, 16], strides = [1, 1]} : vector<8x96xf32> to vector<8x16xf32>
    %13 = arith.truncf %10 : vector<8x16xf32> to vector<8x16xbf16>
    %14 = arith.truncf %11 : vector<8x16xf32> to vector<8x16xbf16>
    %cst_9 = arith.constant dense<0.000000e+00> : vector<8x8xf32>
    %15 = tpu.matmul %13, %14, %cst_9 {dimension_numbers = #tpu.dot_dimension_numbers<[1], [1], [0], [0], [0, 0, 1, 0], [], []>} : vector<8x16xbf16>, vector<8x16xbf16>, vector<8x8xf32> -> vector<8x8xf32>
    %cst_10 = arith.constant 2.500000e-01 : f32
    %16 = vector.broadcast %cst_10 : f32 to vector<8x8xf32>
    %17 = arith.mulf %15, %16 : vector<8x8xf32>
    %18 = vector.broadcast %9 : vector<1x8xf32> to vector<8x8xf32>
    %19 = arith.addf %17, %18 : vector<8x8xf32>
    %cst_11 = arith.constant dense<0xFF800000> : vector<8xf32>
    %20 = vector.multi_reduction <maximumf>, %19, %cst_11 [1] : vector<8x8xf32> to vector<8xf32>
    %21 = vector.shape_cast %20 : vector<8xf32> to vector<8x1xf32>
    %22 = vector.broadcast %21 : vector<8x1xf32> to vector<8x8xf32>
    %23 = arith.subf %19, %22 : vector<8x8xf32>
    %24 = math.exp %23 : vector<8x8xf32>
    %cst_12 = arith.constant dense<0.000000e+00> : vector<8xf32>
    %25 = vector.multi_reduction <add>, %24, %cst_12 [1] : vector<8x8xf32> to vector<8xf32>
    %26 = vector.shape_cast %25 : vector<8xf32> to vector<8x1xf32>
    %27 = tpu.reciprocal %26 {approx = true} : vector<8x1xf32> -> vector<8x1xf32>
    %28 = vector.broadcast %27 : vector<8x1xf32> to vector<8x8xf32>
    %29 = arith.mulf %24, %28 : vector<8x8xf32>
    %30 = arith.truncf %29 : vector<8x8xf32> to vector<8x8xbf16>
    %31 = arith.truncf %12 : vector<8x16xf32> to vector<8x16xbf16>
    %cst_13 = arith.constant dense<0.000000e+00> : vector<8x16xf32>
    %32 = tpu.matmul %30, %31, %cst_13 {dimension_numbers = #tpu.dot_dimension_numbers<[1], [0], [0], [1], [0, 0, 1, 1], [], []>} : vector<8x8xbf16>, vector<8x16xbf16>, vector<8x16xf32> -> vector<8x16xf32>
    %33 = vector.extract_strided_slice %7 {offsets = [0, 16], sizes = [8, 16], strides = [1, 1]} : vector<8x96xf32> to vector<8x16xf32>
    %34 = vector.extract_strided_slice %7 {offsets = [0, 48], sizes = [8, 16], strides = [1, 1]} : vector<8x96xf32> to vector<8x16xf32>
    %35 = vector.extract_strided_slice %7 {offsets = [0, 80], sizes = [8, 16], strides = [1, 1]} : vector<8x96xf32> to vector<8x16xf32>
    %36 = arith.truncf %33 : vector<8x16xf32> to vector<8x16xbf16>
    %37 = arith.truncf %34 : vector<8x16xf32> to vector<8x16xbf16>
    %cst_14 = arith.constant dense<0.000000e+00> : vector<8x8xf32>
    %38 = tpu.matmul %36, %37, %cst_14 {dimension_numbers = #tpu.dot_dimension_numbers<[1], [1], [0], [0], [0, 0, 1, 0], [], []>} : vector<8x16xbf16>, vector<8x16xbf16>, vector<8x8xf32> -> vector<8x8xf32>
    %cst_15 = arith.constant 2.500000e-01 : f32
    %39 = vector.broadcast %cst_15 : f32 to vector<8x8xf32>
    %40 = arith.mulf %38, %39 : vector<8x8xf32>
    %41 = vector.broadcast %9 : vector<1x8xf32> to vector<8x8xf32>
    %42 = arith.addf %40, %41 : vector<8x8xf32>
    %cst_16 = arith.constant dense<0xFF800000> : vector<8xf32>
    %43 = vector.multi_reduction <maximumf>, %42, %cst_16 [1] : vector<8x8xf32> to vector<8xf32>
    %44 = vector.shape_cast %43 : vector<8xf32> to vector<8x1xf32>
    %45 = vector.broadcast %44 : vector<8x1xf32> to vector<8x8xf32>
    %46 = arith.subf %42, %45 : vector<8x8xf32>
    %47 = math.exp %46 : vector<8x8xf32>
    %cst_17 = arith.constant dense<0.000000e+00> : vector<8xf32>
    %48 = vector.multi_reduction <add>, %47, %cst_17 [1] : vector<8x8xf32> to vector<8xf32>
    %49 = vector.shape_cast %48 : vector<8xf32> to vector<8x1xf32>
    %50 = tpu.reciprocal %49 {approx = true} : vector<8x1xf32> -> vector<8x1xf32>
    %51 = vector.broadcast %50 : vector<8x1xf32> to vector<8x8xf32>
    %52 = arith.mulf %47, %51 : vector<8x8xf32>
    %53 = arith.truncf %52 : vector<8x8xf32> to vector<8x8xbf16>
    %54 = arith.truncf %35 : vector<8x16xf32> to vector<8x16xbf16>
    %cst_18 = arith.constant dense<0.000000e+00> : vector<8x16xf32>
    %55 = tpu.matmul %53, %54, %cst_18 {dimension_numbers = #tpu.dot_dimension_numbers<[1], [0], [0], [1], [0, 0, 1, 1], [], []>} : vector<8x8xbf16>, vector<8x16xbf16>, vector<8x16xf32> -> vector<8x16xf32>
    %56 = tpu.concatenate %32, %55 in 1 : vector<8x16xf32>, vector<8x16xf32> -> vector<8x32xf32>
    %c0_19 = arith.constant 0 : index
    %c0_20 = arith.constant 0 : index
    %c0_21 = arith.constant 0 : index
    %57 = vector.load %arg5[%c0_19, %c0_20, %c0_21] : memref<1x8x32xf32, #tpu.memory_space<vmem>>, vector<1x8x32xf32>
    %58 = vector.shape_cast %57 : vector<1x8x32xf32> to vector<8x32xf32>
    %59 = vector.shape_cast %56 : vector<8x32xf32> to vector<1x8x32xf32>
    tpu.vector_store %arg5[%c0_19, %c0_20, %c0_21], %59 {strides = array<i32>} : memref<1x8x32xf32, #tpu.memory_space<vmem>>, vector<1x8x32xf32>,
    return
  }
  func.func @transform_0(%arg0: i32) -> (i32, i32, i32) {
    %c0_i32 = arith.constant 0 : i32
    %c0_i32_0 = arith.constant 0 : i32
    %c0_i32_1 = arith.constant 0 : i32
    return %arg0, %c0_i32, %c0_i32_0 : i32, i32, i32
  }
  func.func @transform_1(%arg0: i32) -> (i32, i32, i32) {
    %c0_i32 = arith.constant 0 : i32
    %c0_i32_0 = arith.constant 0 : i32
    %c0_i32_1 = arith.constant 0 : i32
    return %arg0, %c0_i32, %c0_i32_0 : i32, i32, i32
  }
  func.func @transform_2(%arg0: i32) -> (i32, i32) {
    %c0_i32 = arith.constant 0 : i32
    %c0_i32_0 = arith.constant 0 : i32
    %c0_i32_1 = arith.constant 0 : i32
    return %c0_i32, %c0_i32_0 : i32, i32
  }
  func.func @transform_3(%arg0: i32) -> (i32, i32) {
    %c0_i32 = arith.constant 0 : i32
    %c0_i32_0 = arith.constant 0 : i32
    %c0_i32_1 = arith.constant 0 : i32
    return %c0_i32, %c0_i32_0 : i32, i32
  }
  func.func @transform_4(%arg0: i32) -> (i32, i32, i32) {
    %c0_i32 = arith.constant 0 : i32
    %c0_i32_0 = arith.constant 0 : i32
    %c0_i32_1 = arith.constant 0 : i32
    return %arg0, %c0_i32, %c0_i32_0 : i32, i32, i32
  }
}

module attributes {stable_mosaic.version = 11 : i64} {
  func.func @_station_write_kernel(%arg0: i32, %arg1: memref<1x8x32xf32, #tpu.memory_space<vmem>>, %arg2: memref<1x1x32xf32, #tpu.memory_space<vmem>>, %arg3: memref<1x8x32xf32, #tpu.memory_space<vmem>>) attributes {dimension_semantics = [#tpu.dimension_semantics<parallel>], iteration_bounds = array<i64: 2>, scalar_prefetch = 0 : i64, scratch_operands = 0 : i64, tpu.core_type = #tpu.core_type<tc>, window_params = [{transform_indices = @transform_0, window_bounds = array<i64: 1, 8, 32>}, {transform_indices = @transform_1, window_bounds = array<i64: 1, 1, 32>}, {transform_indices = @transform_2, window_bounds = array<i64: 1, 8, 32>}]} {
    %c0 = arith.constant 0 : index
    %c0_0 = arith.constant 0 : index
    %c0_1 = arith.constant 0 : index
    %0 = vector.load %arg1[%c0, %c0_0, %c0_1] : memref<1x8x32xf32, #tpu.memory_space<vmem>>, vector<1x8x32xf32>
    %c0_2 = arith.constant 0 : index
    %c0_3 = arith.constant 0 : index
    %c0_4 = arith.constant 0 : index
    %1 = vector.load %arg2[%c0_2, %c0_3, %c0_4] : memref<1x1x32xf32, #tpu.memory_space<vmem>>, vector<1x1x32xf32>
    %2 = tpu.iota {dimensions = array<i32: 1>} : vector<1x8x32xi32>
    %c0_i32 = arith.constant 0 : i32
    %3 = vector.broadcast %c0_i32 : i32 to vector<1x8x32xi32>
    %4 = arith.cmpi eq, %2, %3 : vector<1x8x32xi32>
    %5 = vector.shape_cast %1 : vector<1x1x32xf32> to vector<1x1x32xf32>
    %6 = vector.broadcast %5 : vector<1x1x32xf32> to vector<1x8x32xf32>
    %7 = arith.select %4, %6, %0 : vector<1x8x32xi1>, vector<1x8x32xf32>
    %c0_5 = arith.constant 0 : index
    %c0_6 = arith.constant 0 : index
    %c0_7 = arith.constant 0 : index
    %8 = vector.load %arg3[%c0_5, %c0_6, %c0_7] : memref<1x8x32xf32, #tpu.memory_space<vmem>>, vector<1x8x32xf32>
    tpu.vector_store %arg3[%c0_5, %c0_6, %c0_7], %7 {strides = array<i32>} : memref<1x8x32xf32, #tpu.memory_space<vmem>>, vector<1x8x32xf32>,
    return
  }
  func.func @transform_0(%arg0: i32) -> (i32, i32, i32) {
    %c4_i32 = arith.constant 4 : i32
    %0 = arith.muli %arg0, %c4_i32 : i32
    %c0_i32 = arith.constant 0 : i32
    %c0_i32_0 = arith.constant 0 : i32
    %c0_i32_1 = arith.constant 0 : i32
    return %0, %c0_i32, %c0_i32_0 : i32, i32, i32
  }
  func.func @transform_1(%arg0: i32) -> (i32, i32, i32) {
    %c0_i32 = arith.constant 0 : i32
    %c0_i32_0 = arith.constant 0 : i32
    %c0_i32_1 = arith.constant 0 : i32
    return %arg0, %c0_i32, %c0_i32_0 : i32, i32, i32
  }
  func.func @transform_2(%arg0: i32) -> (i32, i32, i32) {
    %c4_i32 = arith.constant 4 : i32
    %0 = arith.muli %arg0, %c4_i32 : i32
    %c0_i32 = arith.constant 0 : i32
    %c0_i32_0 = arith.constant 0 : i32
    %c0_i32_1 = arith.constant 0 : i32
    return %0, %c0_i32, %c0_i32_0 : i32, i32, i32
  }
}

module attributes {stable_mosaic.version = 11 : i64} {
  func.func @_linear_add_ln_kernel(%arg0: i32, %arg1: memref<64x64xf32, #tpu.memory_space<vmem>>, %arg2: memref<64x32xbf16, #tpu.memory_space<vmem>>, %arg3: memref<1x32xf32, #tpu.memory_space<vmem>>, %arg4: memref<64x32xf32, #tpu.memory_space<vmem>>, %arg5: memref<1x32xf32, #tpu.memory_space<vmem>>, %arg6: memref<1x32xf32, #tpu.memory_space<vmem>>, %arg7: memref<64x32xf32, #tpu.memory_space<vmem>>) attributes {dimension_semantics = [#tpu.dimension_semantics<parallel>], iteration_bounds = array<i64: 1>, scalar_prefetch = 0 : i64, scratch_operands = 0 : i64, tpu.core_type = #tpu.core_type<tc>, window_params = [{transform_indices = @transform_0, window_bounds = array<i64: 64, 64>}, {pipeline_mode = #tpu.pipeline_mode<synchronous>, transform_indices = @transform_1, window_bounds = array<i64: 64, 32>}, {pipeline_mode = #tpu.pipeline_mode<synchronous>, transform_indices = @transform_2, window_bounds = array<i64: 1, 32>}, {transform_indices = @transform_3, window_bounds = array<i64: 64, 32>}, {pipeline_mode = #tpu.pipeline_mode<synchronous>, transform_indices = @transform_4, window_bounds = array<i64: 1, 32>}, {pipeline_mode = #tpu.pipeline_mode<synchronous>, transform_indices = @transform_5, window_bounds = array<i64: 1, 32>}, {transform_indices = @transform_6, window_bounds = array<i64: 64, 32>}]} {
    %c0 = arith.constant 0 : index
    %c0_0 = arith.constant 0 : index
    %0 = vector.load %arg1[%c0, %c0_0] : memref<64x64xf32, #tpu.memory_space<vmem>>, vector<64x64xf32>
    %1 = arith.truncf %0 : vector<64x64xf32> to vector<64x64xbf16>
    %c0_1 = arith.constant 0 : index
    %c0_2 = arith.constant 0 : index
    %2 = vector.load %arg2[%c0_1, %c0_2] : memref<64x32xbf16, #tpu.memory_space<vmem>>, vector<64x32xbf16>
    %cst = arith.constant dense<0.000000e+00> : vector<64x32xf32>
    %3 = tpu.matmul %1, %2, %cst {dimension_numbers = #tpu.dot_dimension_numbers<[1], [0], [0], [1], [0, 0, 1, 1], [], []>} : vector<64x64xbf16>, vector<64x32xbf16>, vector<64x32xf32> -> vector<64x32xf32>
    %c0_3 = arith.constant 0 : index
    %c0_4 = arith.constant 0 : index
    %4 = vector.load %arg3[%c0_3, %c0_4] : memref<1x32xf32, #tpu.memory_space<vmem>>, vector<1x32xf32>
    %5 = vector.broadcast %4 : vector<1x32xf32> to vector<64x32xf32>
    %6 = arith.addf %3, %5 : vector<64x32xf32>
    %c0_5 = arith.constant 0 : index
    %c0_6 = arith.constant 0 : index
    %7 = vector.load %arg4[%c0_5, %c0_6] : memref<64x32xf32, #tpu.memory_space<vmem>>, vector<64x32xf32>
    %8 = arith.addf %6, %7 : vector<64x32xf32>
    %cst_7 = arith.constant dense<0.000000e+00> : vector<64xf32>
    %9 = vector.multi_reduction <add>, %8, %cst_7 [1] : vector<64x32xf32> to vector<64xf32>
    %10 = vector.shape_cast %9 : vector<64xf32> to vector<64x1xf32>
    %cst_8 = arith.constant 3.200000e+01 : f32
    %11 = vector.broadcast %cst_8 : f32 to vector<64x1xf32>
    %12 = arith.divf %10, %11 : vector<64x1xf32>
    %13 = vector.broadcast %12 : vector<64x1xf32> to vector<64x32xf32>
    %14 = arith.subf %8, %13 : vector<64x32xf32>
    %15 = arith.mulf %14, %14 : vector<64x32xf32>
    %cst_9 = arith.constant dense<0.000000e+00> : vector<64xf32>
    %16 = vector.multi_reduction <add>, %15, %cst_9 [1] : vector<64x32xf32> to vector<64xf32>
    %17 = vector.shape_cast %16 : vector<64xf32> to vector<64x1xf32>
    %cst_10 = arith.constant 3.200000e+01 : f32
    %18 = vector.broadcast %cst_10 : f32 to vector<64x1xf32>
    %19 = arith.divf %17, %18 : vector<64x1xf32>
    %20 = vector.broadcast %12 : vector<64x1xf32> to vector<64x32xf32>
    %21 = arith.subf %8, %20 : vector<64x32xf32>
    %cst_11 = arith.constant 9.99999996E-13 : f32
    %22 = vector.broadcast %cst_11 : f32 to vector<64x1xf32>
    %23 = arith.addf %19, %22 : vector<64x1xf32>
    %24 = math.rsqrt %23 : vector<64x1xf32>
    %25 = vector.broadcast %24 : vector<64x1xf32> to vector<64x32xf32>
    %26 = arith.mulf %21, %25 : vector<64x32xf32>
    %c0_12 = arith.constant 0 : index
    %c0_13 = arith.constant 0 : index
    %27 = vector.load %arg5[%c0_12, %c0_13] : memref<1x32xf32, #tpu.memory_space<vmem>>, vector<1x32xf32>
    %28 = vector.broadcast %27 : vector<1x32xf32> to vector<64x32xf32>
    %29 = arith.mulf %26, %28 : vector<64x32xf32>
    %c0_14 = arith.constant 0 : index
    %c0_15 = arith.constant 0 : index
    %30 = vector.load %arg6[%c0_14, %c0_15] : memref<1x32xf32, #tpu.memory_space<vmem>>, vector<1x32xf32>
    %31 = vector.broadcast %30 : vector<1x32xf32> to vector<64x32xf32>
    %32 = arith.addf %29, %31 : vector<64x32xf32>
    %c0_16 = arith.constant 0 : index
    %c0_17 = arith.constant 0 : index
    %33 = vector.load %arg7[%c0_16, %c0_17] : memref<64x32xf32, #tpu.memory_space<vmem>>, vector<64x32xf32>
    tpu.vector_store %arg7[%c0_16, %c0_17], %32 {strides = array<i32>} : memref<64x32xf32, #tpu.memory_space<vmem>>, vector<64x32xf32>,
    return
  }
  func.func @transform_0(%arg0: i32) -> (i32, i32) {
    %c0_i32 = arith.constant 0 : i32
    %c0_i32_0 = arith.constant 0 : i32
    return %arg0, %c0_i32 : i32, i32
  }
  func.func @transform_1(%arg0: i32) -> (i32, i32) {
    %c0_i32 = arith.constant 0 : i32
    %c0_i32_0 = arith.constant 0 : i32
    %c0_i32_1 = arith.constant 0 : i32
    return %c0_i32, %c0_i32_0 : i32, i32
  }
  func.func @transform_2(%arg0: i32) -> (i32, i32) {
    %c0_i32 = arith.constant 0 : i32
    %c0_i32_0 = arith.constant 0 : i32
    %c0_i32_1 = arith.constant 0 : i32
    return %c0_i32, %c0_i32_0 : i32, i32
  }
  func.func @transform_3(%arg0: i32) -> (i32, i32) {
    %c0_i32 = arith.constant 0 : i32
    %c0_i32_0 = arith.constant 0 : i32
    return %arg0, %c0_i32 : i32, i32
  }
  func.func @transform_4(%arg0: i32) -> (i32, i32) {
    %c0_i32 = arith.constant 0 : i32
    %c0_i32_0 = arith.constant 0 : i32
    %c0_i32_1 = arith.constant 0 : i32
    return %c0_i32, %c0_i32_0 : i32, i32
  }
  func.func @transform_5(%arg0: i32) -> (i32, i32) {
    %c0_i32 = arith.constant 0 : i32
    %c0_i32_0 = arith.constant 0 : i32
    %c0_i32_1 = arith.constant 0 : i32
    return %c0_i32, %c0_i32_0 : i32, i32
  }
  func.func @transform_6(%arg0: i32) -> (i32, i32) {
    %c0_i32 = arith.constant 0 : i32
    %c0_i32_0 = arith.constant 0 : i32
    return %arg0, %c0_i32 : i32, i32
  }
}

module attributes {stable_mosaic.version = 11 : i64} {
  func.func @_graph_qkv_attn_kernel(%arg0: i32, %arg1: memref<1x4x32xf32, #tpu.memory_space<vmem>>, %arg2: memref<1x1x4xf32, #tpu.memory_space<vmem>>, %arg3: memref<32x96xbf16, #tpu.memory_space<vmem>>, %arg4: memref<1x96xf32, #tpu.memory_space<vmem>>, %arg5: memref<1x1x32xf32, #tpu.memory_space<vmem>>) attributes {dimension_semantics = [#tpu.dimension_semantics<parallel>], iteration_bounds = array<i64: 2>, scalar_prefetch = 0 : i64, scratch_operands = 0 : i64, tpu.core_type = #tpu.core_type<tc>, window_params = [{transform_indices = @transform_0, window_bounds = array<i64: 1, 4, 32>}, {transform_indices = @transform_1, window_bounds = array<i64: 1, 1, 4>}, {pipeline_mode = #tpu.pipeline_mode<synchronous>, transform_indices = @transform_2, window_bounds = array<i64: 32, 96>}, {pipeline_mode = #tpu.pipeline_mode<synchronous>, transform_indices = @transform_3, window_bounds = array<i64: 1, 96>}, {transform_indices = @transform_4, window_bounds = array<i64: 1, 1, 32>}]} {
    %c0 = arith.constant 0 : index
    %c0_0 = arith.constant 0 : index
    %c0_1 = arith.constant 0 : index
    %0 = vector.load %arg1[%c0, %c0_0, %c0_1] : memref<1x4x32xf32, #tpu.memory_space<vmem>>, vector<1x4x32xf32>
    %1 = vector.shape_cast %0 : vector<1x4x32xf32> to vector<4x32xf32>
    %2 = arith.truncf %1 : vector<4x32xf32> to vector<4x32xbf16>
    %c0_2 = arith.constant 0 : index
    %c0_3 = arith.constant 0 : index
    %3 = vector.load %arg3[%c0_2, %c0_3] : memref<32x96xbf16, #tpu.memory_space<vmem>>, vector<32x96xbf16>
    %cst = arith.constant dense<0.000000e+00> : vector<4x96xf32>
    %4 = tpu.matmul %2, %3, %cst {dimension_numbers = #tpu.dot_dimension_numbers<[1], [0], [0], [1], [0, 0, 1, 1], [], []>} : vector<4x32xbf16>, vector<32x96xbf16>, vector<4x96xf32> -> vector<4x96xf32>
    %c0_4 = arith.constant 0 : index
    %c0_5 = arith.constant 0 : index
    %5 = vector.load %arg4[%c0_4, %c0_5] : memref<1x96xf32, #tpu.memory_space<vmem>>, vector<1x96xf32>
    %6 = vector.broadcast %5 : vector<1x96xf32> to vector<4x96xf32>
    %7 = arith.addf %4, %6 : vector<4x96xf32>
    %c0_6 = arith.constant 0 : index
    %c0_7 = arith.constant 0 : index
    %c0_8 = arith.constant 0 : index
    %8 = vector.load %arg2[%c0_6, %c0_7, %c0_8] : memref<1x1x4xf32, #tpu.memory_space<vmem>>, vector<1x1x4xf32>
    %9 = vector.shape_cast %8 : vector<1x1x4xf32> to vector<1x4xf32>
    %10 = vector.extract_strided_slice %7 {offsets = [0, 0], sizes = [1, 16], strides = [1, 1]} : vector<4x96xf32> to vector<1x16xf32>
    %11 = vector.extract_strided_slice %7 {offsets = [0, 32], sizes = [4, 16], strides = [1, 1]} : vector<4x96xf32> to vector<4x16xf32>
    %12 = vector.extract_strided_slice %7 {offsets = [0, 64], sizes = [4, 16], strides = [1, 1]} : vector<4x96xf32> to vector<4x16xf32>
    %13 = arith.truncf %10 : vector<1x16xf32> to vector<1x16xbf16>
    %14 = arith.truncf %11 : vector<4x16xf32> to vector<4x16xbf16>
    %cst_9 = arith.constant dense<0.000000e+00> : vector<1x4xf32>
    %15 = tpu.matmul %13, %14, %cst_9 {dimension_numbers = #tpu.dot_dimension_numbers<[1], [1], [0], [0], [0, 0, 1, 0], [], []>} : vector<1x16xbf16>, vector<4x16xbf16>, vector<1x4xf32> -> vector<1x4xf32>
    %cst_10 = arith.constant 2.500000e-01 : f32
    %16 = vector.broadcast %cst_10 : f32 to vector<1x4xf32>
    %17 = arith.mulf %15, %16 : vector<1x4xf32>
    %18 = arith.addf %17, %9 : vector<1x4xf32>
    %cst_11 = arith.constant dense<0xFF800000> : vector<1xf32>
    %19 = vector.multi_reduction <maximumf>, %18, %cst_11 [1] : vector<1x4xf32> to vector<1xf32>
    %20 = vector.shape_cast %19 : vector<1xf32> to vector<1x1xf32>
    %21 = vector.broadcast %20 : vector<1x1xf32> to vector<1x4xf32>
    %22 = arith.subf %18, %21 : vector<1x4xf32>
    %23 = math.exp %22 : vector<1x4xf32>
    %cst_12 = arith.constant dense<0.000000e+00> : vector<1xf32>
    %24 = vector.multi_reduction <add>, %23, %cst_12 [1] : vector<1x4xf32> to vector<1xf32>
    %25 = vector.shape_cast %24 : vector<1xf32> to vector<1x1xf32>
    %26 = tpu.reciprocal %25 {approx = true} : vector<1x1xf32> -> vector<1x1xf32>
    %27 = vector.broadcast %26 : vector<1x1xf32> to vector<1x4xf32>
    %28 = arith.mulf %23, %27 : vector<1x4xf32>
    %29 = arith.truncf %28 : vector<1x4xf32> to vector<1x4xbf16>
    %30 = arith.truncf %12 : vector<4x16xf32> to vector<4x16xbf16>
    %cst_13 = arith.constant dense<0.000000e+00> : vector<1x16xf32>
    %31 = tpu.matmul %29, %30, %cst_13 {dimension_numbers = #tpu.dot_dimension_numbers<[1], [0], [0], [1], [0, 0, 1, 1], [], []>} : vector<1x4xbf16>, vector<4x16xbf16>, vector<1x16xf32> -> vector<1x16xf32>
    %32 = vector.extract_strided_slice %7 {offsets = [0, 16], sizes = [1, 16], strides = [1, 1]} : vector<4x96xf32> to vector<1x16xf32>
    %33 = vector.extract_strided_slice %7 {offsets = [0, 48], sizes = [4, 16], strides = [1, 1]} : vector<4x96xf32> to vector<4x16xf32>
    %34 = vector.extract_strided_slice %7 {offsets = [0, 80], sizes = [4, 16], strides = [1, 1]} : vector<4x96xf32> to vector<4x16xf32>
    %35 = arith.truncf %32 : vector<1x16xf32> to vector<1x16xbf16>
    %36 = arith.truncf %33 : vector<4x16xf32> to vector<4x16xbf16>
    %cst_14 = arith.constant dense<0.000000e+00> : vector<1x4xf32>
    %37 = tpu.matmul %35, %36, %cst_14 {dimension_numbers = #tpu.dot_dimension_numbers<[1], [1], [0], [0], [0, 0, 1, 0], [], []>} : vector<1x16xbf16>, vector<4x16xbf16>, vector<1x4xf32> -> vector<1x4xf32>
    %cst_15 = arith.constant 2.500000e-01 : f32
    %38 = vector.broadcast %cst_15 : f32 to vector<1x4xf32>
    %39 = arith.mulf %37, %38 : vector<1x4xf32>
    %40 = arith.addf %39, %9 : vector<1x4xf32>
    %cst_16 = arith.constant dense<0xFF800000> : vector<1xf32>
    %41 = vector.multi_reduction <maximumf>, %40, %cst_16 [1] : vector<1x4xf32> to vector<1xf32>
    %42 = vector.shape_cast %41 : vector<1xf32> to vector<1x1xf32>
    %43 = vector.broadcast %42 : vector<1x1xf32> to vector<1x4xf32>
    %44 = arith.subf %40, %43 : vector<1x4xf32>
    %45 = math.exp %44 : vector<1x4xf32>
    %cst_17 = arith.constant dense<0.000000e+00> : vector<1xf32>
    %46 = vector.multi_reduction <add>, %45, %cst_17 [1] : vector<1x4xf32> to vector<1xf32>
    %47 = vector.shape_cast %46 : vector<1xf32> to vector<1x1xf32>
    %48 = tpu.reciprocal %47 {approx = true} : vector<1x1xf32> -> vector<1x1xf32>
    %49 = vector.broadcast %48 : vector<1x1xf32> to vector<1x4xf32>
    %50 = arith.mulf %45, %49 : vector<1x4xf32>
    %51 = arith.truncf %50 : vector<1x4xf32> to vector<1x4xbf16>
    %52 = arith.truncf %34 : vector<4x16xf32> to vector<4x16xbf16>
    %cst_18 = arith.constant dense<0.000000e+00> : vector<1x16xf32>
    %53 = tpu.matmul %51, %52, %cst_18 {dimension_numbers = #tpu.dot_dimension_numbers<[1], [0], [0], [1], [0, 0, 1, 1], [], []>} : vector<1x4xbf16>, vector<4x16xbf16>, vector<1x16xf32> -> vector<1x16xf32>
    %54 = tpu.concatenate %31, %53 in 1 : vector<1x16xf32>, vector<1x16xf32> -> vector<1x32xf32>
    %c0_19 = arith.constant 0 : index
    %c0_20 = arith.constant 0 : index
    %c0_21 = arith.constant 0 : index
    %55 = vector.load %arg5[%c0_19, %c0_20, %c0_21] : memref<1x1x32xf32, #tpu.memory_space<vmem>>, vector<1x1x32xf32>
    %56 = vector.shape_cast %55 : vector<1x1x32xf32> to vector<1x32xf32>
    %57 = vector.shape_cast %54 : vector<1x32xf32> to vector<1x1x32xf32>
    tpu.vector_store %arg5[%c0_19, %c0_20, %c0_21], %57 {strides = array<i32>} : memref<1x1x32xf32, #tpu.memory_space<vmem>>, vector<1x1x32xf32>,
    return
  }
  func.func @transform_0(%arg0: i32) -> (i32, i32, i32) {
    %c0_i32 = arith.constant 0 : i32
    %c0_i32_0 = arith.constant 0 : i32
    %c0_i32_1 = arith.constant 0 : i32
    return %arg0, %c0_i32, %c0_i32_0 : i32, i32, i32
  }
  func.func @transform_1(%arg0: i32) -> (i32, i32, i32) {
    %c0_i32 = arith.constant 0 : i32
    %c0_i32_0 = arith.constant 0 : i32
    %c0_i32_1 = arith.constant 0 : i32
    return %arg0, %c0_i32, %c0_i32_0 : i32, i32, i32
  }
  func.func @transform_2(%arg0: i32) -> (i32, i32) {
    %c0_i32 = arith.constant 0 : i32
    %c0_i32_0 = arith.constant 0 : i32
    %c0_i32_1 = arith.constant 0 : i32
    return %c0_i32, %c0_i32_0 : i32, i32
  }
  func.func @transform_3(%arg0: i32) -> (i32, i32) {
    %c0_i32 = arith.constant 0 : i32
    %c0_i32_0 = arith.constant 0 : i32
    %c0_i32_1 = arith.constant 0 : i32
    return %c0_i32, %c0_i32_0 : i32, i32
  }
  func.func @transform_4(%arg0: i32) -> (i32, i32, i32) {
    %c0_i32 = arith.constant 0 : i32
    %c0_i32_0 = arith.constant 0 : i32
    %c0_i32_1 = arith.constant 0 : i32
    return %arg0, %c0_i32, %c0_i32_0 : i32, i32, i32
  }
}

</mosaic_0001>

<llo_original>
// kernel: graph_bert_encoder.13
$region0: #{graph_bert_encoder.13}
  #allocation0 [shape = 'u32[]', space=smem, size = 0x4, offset = 0x4, fixed_abs, tag = 'smem constant byte address 0x4 - core index']
  #allocation1 [shape = 'u32[72,128]{1,0:T(1,128)}', space=vmem, size = 0x9000, scoped, tag = 'internal scratch']
  %s0 = inlined_call_operand.vmem [shape: f32[64,64], index: 0, kind: input, shape index: {}]
  %s1 = inlined_call_operand.vmem [shape: bf16[64,32], index: 1, kind: input, shape index: {}]
  %s2 = inlined_call_operand.vmem [shape: f32[1,32], index: 2, kind: input, shape index: {}]
  %s3 = inlined_call_operand.vmem [shape: f32[64,32], index: 3, kind: input, shape index: {}]
  %s4 = inlined_call_operand.vmem [shape: f32[1,32], index: 4, kind: input, shape index: {}]
  %s5 = inlined_call_operand.vmem [shape: f32[1,32], index: 5, kind: input, shape index: {}]
  %s6 = inlined_call_operand.vmem [shape: f32[64,32], index: 6, kind: output, shape index: {}]
  %s7 = sld [smem:[#allocation0]]
  $region34: #{graph_bert_encoder.13} parent=0
    _
  %s9 = ssub.s32 1, %s7
  %s10 = scalar_select 0, %s9, %s7
  // Predicated region
  $region2: #{graph_bert_encoder.13} parent=0 // pred_check
    _
  $region3: #{graph_bert_encoder.13} parent=0 // pred_check_branch
    %12 = sbr.rel (0) target = $region5
  $region4: #{graph_bert_encoder.13} parent=0 // pred_region
    _
  $region5: #{graph_bert_encoder.13} parent=0 // pred_fallthru
    _
  // Predicated region
  $region6: #{graph_bert_encoder.13} parent=0 // pred_check
    _
  $region7: #{graph_bert_encoder.13} parent=0 // pred_check_branch
    %14 = sbr.rel (0) target = $region9
  $region8: #{graph_bert_encoder.13} parent=0 // pred_region
    _
  $region9: #{graph_bert_encoder.13} parent=0 // pred_fallthru
    _
  // Predicated region
  $region10: #{graph_bert_encoder.13} parent=0 // pred_check
    _
  $region11: #{graph_bert_encoder.13} parent=0 // pred_check_branch
    %16 = sbr.rel (0) target = $region13
  $region12: #{graph_bert_encoder.13} parent=0 // pred_region
    _
  $region13: #{graph_bert_encoder.13} parent=0 // pred_fallthru
    _
  // Predicated region
  $region14: #{graph_bert_encoder.13} parent=0 // pred_check
    _
  $region15: #{graph_bert_encoder.13} parent=0 // pred_check_branch
    %18 = sbr.rel (0) target = $region17
  $region16: #{graph_bert_encoder.13} parent=0 // pred_region
    _
  $region17: #{graph_bert_encoder.13} parent=0 // pred_fallthru
    _
  // Predicated region
  $region18: #{graph_bert_encoder.13} parent=0 // pred_check
    _
  $region19: #{graph_bert_encoder.13} parent=0 // pred_check_branch
    %20 = sbr.rel (0) target = $region21
  $region20: #{graph_bert_encoder.13} parent=0 // pred_region
    _
  $region21: #{graph_bert_encoder.13} parent=0 // pred_fallthru
    _
  // Predicated region
  $region22: #{graph_bert_encoder.13} parent=0 // pred_check
    _
  $region23: #{graph_bert_encoder.13} parent=0 // pred_check_branch
    %22 = sbr.rel (0) target = $region25
  $region24: #{graph_bert_encoder.13} parent=0 // pred_region
    _
  $region25: #{graph_bert_encoder.13} parent=0 // pred_fallthru
    _
  %v24 = vld [vmem:[%s0] sm:$0xff]
  %v25 = vld [vmem:[%s0 + $0x8] sm:$0xff]
  %v26 = vld [vmem:[%s0 + $0x10] sm:$0xff]
  %v27 = vld [vmem:[%s0 + $0x18] sm:$0xff]
  %v28 = vld [vmem:[%s0 + $0x20] sm:$0xff]
  %v29 = vld [vmem:[%s0 + $0x28] sm:$0xff]
  %v30 = vld [vmem:[%s0 + $0x30] sm:$0xff]
  %v31 = vld [vmem:[%s0 + $0x38] sm:$0xff]
  %v32 = vpack.c.bf16 %v25, %v24
  %v33 = vpack.c.bf16 %v27, %v26
  %v34 = vpack.c.bf16 %v29, %v28
  %v35 = vpack.c.bf16 %v31, %v30
  %v36 = vld [vmem:[%s1] sm:$0xf]
  %v37 = vld [vmem:[%s1 + $0x4] sm:$0xf]
  %v38 = vld [vmem:[%s1 + $0x8] sm:$0xf]
  %v39 = vld [vmem:[%s1 + $0xc] sm:$0xf]
  %v40 = vld [vmem:[%s1 + $0x10] sm:$0xf]
  %v41 = vld [vmem:[%s1 + $0x14] sm:$0xf]
  %v42 = vld [vmem:[%s1 + $0x18] sm:$0xf]
  %v43 = vld [vmem:[%s1 + $0x1c] sm:$0xf]
  %v44 = vld [vmem:[%s2] sm:$0x1]
  %v46 = vperm.slane %v44, 0
  %v56 = vunpack.c.l.b16 %v36
  %v57 = vunpack.c.l.b16 %v37
  %v58 = vunpack.c.l.b16 %v38
  %v59 = vunpack.c.l.b16 %v39
  %v60 = vunpack.c.l.b16 %v40
  %v61 = vunpack.c.l.b16 %v41
  %v62 = vunpack.c.l.b16 %v42
  %v63 = vunpack.c.l.b16 %v43
  %v64 = vpack.c.b16 %v57, %v56
  %v65 = vpack.c.b16 %v59, %v58
  %v66 = vpack.c.b16 %v61, %v60
  %v67 = vpack.c.b16 %v63, %v62
  %vm72 = vcmask 523264
  %v74 = vsel %vm72, %v32, 0
  %v77 = vsel %vm72, %v33, 0
  %v80 = vsel %vm72, %v34, 0
  %v83 = vsel %vm72, %v35, 0
  %85 = vmatpush.bf16.msra.mxu0 0
  %86 = vmatpush.bf16.msra.mxu0 0
  %87 = vmatpush.bf16.msra.mxu0 0
  %88 = vmatpush.bf16.msra.mxu0 0
  %89 = vmatpush.bf16.msra.mxu0 %v67
  %90 = vmatpush.bf16.msra.mxu0 %v66
  %91 = vmatpush.bf16.msra.mxu0 %v65
  %92 = vmatpush.bf16.msra.mxu0 %v64
  %93 = vmatmul.bf16.gmra.mxu0 %v74
  %v94 = vpop.f32.mrf.mxu0
  %v95 = vadd.f32 %v46, %v94
  %v96 = vpop.f32.mrf.mxu0
  %v97 = vadd.f32 %v46, %v96
  %98 = vmatmul.bf16.gmra.mxu0 %v77
  %v99 = vpop.f32.mrf.mxu0
  %v100 = vadd.f32 %v46, %v99
  %v101 = vpop.f32.mrf.mxu0
  %v102 = vadd.f32 %v46, %v101
  %103 = vmatmul.bf16.gmra.mxu0 %v80
  %v104 = vpop.f32.mrf.mxu0
  %v105 = vadd.f32 %v46, %v104
  %v106 = vpop.f32.mrf.mxu0
  %v107 = vadd.f32 %v46, %v106
  %108 = vmatmul.bf16.gmra.mxu0 %v83
  %v109 = vpop.f32.mrf.mxu0
  %v110 = vadd.f32 %v46, %v109
  %v111 = vpop.f32.mrf.mxu0
  %v112 = vadd.f32 %v46, %v111
  %113 = vdwg.mxu0
  %v114 = vld [vmem:[%s3] sm:$0xff]
  %v115 = vld [vmem:[%s3 + $0x8] sm:$0xff]
  %v116 = vld [vmem:[%s3 + $0x10] sm:$0xff]
  %v117 = vld [vmem:[%s3 + $0x18] sm:$0xff]
  %v118 = vld [vmem:[%s3 + $0x20] sm:$0xff]
  %v119 = vld [vmem:[%s3 + $0x28] sm:$0xff]
  %v120 = vld [vmem:[%s3 + $0x30] sm:$0xff]
  %v121 = vld [vmem:[%s3 + $0x38] sm:$0xff]
  %v122 = vadd.f32 %v95, %v114
  %v123 = vadd.f32 %v97, %v115
  %v124 = vadd.f32 %v100, %v116
  %v125 = vadd.f32 %v102, %v117
  %v126 = vadd.f32 %v105, %v118
  %v127 = vadd.f32 %v107, %v119
  %v128 = vadd.f32 %v110, %v120
  %v129 = vadd.f32 %v112, %v121
  %vm130 = vcmask 261120
  %v131 = vsel %vm130, %v122, 0.0
  %132 = vadd.xlane.f32.xlu0 %v131
  %v133 = vpop.xlane.xlu0 %132
  %v134 = vsel %vm130, %v123, 0.0
  %135 = vadd.xlane.f32.xlu0 %v134
  %v136 = vpop.xlane.xlu0 %135
  %v137 = vsel %vm130, %v124, 0.0
  %138 = vadd.xlane.f32.xlu0 %v137
  %v139 = vpop.xlane.xlu0 %138
  %v140 = vsel %vm130, %v125, 0.0
  %141 = vadd.xlane.f32.xlu0 %v140
  %v142 = vpop.xlane.xlu0 %141
  %v143 = vsel %vm130, %v126, 0.0
  %144 = vadd.xlane.f32.xlu0 %v143
  %v145 = vpop.xlane.xlu0 %144
  %v146 = vsel %vm130, %v127, 0.0
  %147 = vadd.xlane.f32.xlu0 %v146
  %v148 = vpop.xlane.xlu0 %147
  %v149 = vsel %vm130, %v128, 0.0
  %150 = vadd.xlane.f32.xlu0 %v149
  %v151 = vpop.xlane.xlu0 %150
  %v152 = vsel %vm130, %v129, 0.0
  %153 = vadd.xlane.f32.xlu0 %v152
  %v154 = vpop.xlane.xlu0 %153
  %v155 = vrcp.pop 32.0
  %v156 = vmul.f32 32.0, %v155
  %v157 = vsub.f32 1.0, %v156
  %v158 = vmul.f32 %v155, %v157
  %v159 = vadd.f32 %v155, %v158
  %vm160 = vweird.f32 %v155
  %v161 = vsel %vm160, %v155, %v159
  %v162 = vmul.f32 %v133, %v161
  %v163 = vmul.f32 %v136, %v161
  %v164 = vmul.f32 %v139, %v161
  %v165 = vmul.f32 %v142, %v161
  %v166 = vmul.f32 %v145, %v161
  %v167 = vmul.f32 %v148, %v161
  %v168 = vmul.f32 %v151, %v161
  %v169 = vmul.f32 %v154, %v161
  %v170 = vsub.f32 %v122, %v162
  %v171 = vsub.f32 %v123, %v163
  %v172 = vsub.f32 %v124, %v164
  %v173 = vsub.f32 %v125, %v165
  %v174 = vsub.f32 %v126, %v166
  %v175 = vsub.f32 %v127, %v167
  %v176 = vsub.f32 %v128, %v168
  %v177 = vsub.f32 %v129, %v169
  %v178 = vmul.f32 %v170, %v170
  %v179 = vmul.f32 %v171, %v171
  %v180 = vmul.f32 %v172, %v172
  %v181 = vmul.f32 %v173, %v173
  %v182 = vmul.f32 %v174, %v174
  %v183 = vmul.f32 %v175, %v175
  %v184 = vmul.f32 %v176, %v176
  %v185 = vmul.f32 %v177, %v177
  %v186 = vsel %vm130, %v178, 0.0
  %187 = vadd.xlane.f32.xlu0 %v186
  %v188 = vpop.xlane.xlu0 %187
  %v189 = vsel %vm130, %v179, 0.0
  %190 = vadd.xlane.f32.xlu0 %v189
  %v191 = vpop.xlane.xlu0 %190
  %v192 = vsel %vm130, %v180, 0.0
  %193 = vadd.xlane.f32.xlu0 %v192
  %v194 = vpop.xlane.xlu0 %193
  %v195 = vsel %vm130, %v181, 0.0
  %196 = vadd.xlane.f32.xlu0 %v195
  %v197 = vpop.xlane.xlu0 %196
  %v198 = vsel %vm130, %v182, 0.0
  %199 = vadd.xlane.f32.xlu0 %v198
  %v200 = vpop.xlane.xlu0 %199
  %v201 = vsel %vm130, %v183, 0.0
  %202 = vadd.xlane.f32.xlu0 %v201
  %v203 = vpop.xlane.xlu0 %202
  %v204 = vsel %vm130, %v184, 0.0
  %205 = vadd.xlane.f32.xlu0 %v204
  %v206 = vpop.xlane.xlu0 %205
  %v207 = vsel %vm130, %v185, 0.0
  %208 = vadd.xlane.f32.xlu0 %v207
  %v209 = vpop.xlane.xlu0 %208
  %v210 = vmul.f32 %v188, %v161
  %v211 = vmul.f32 %v191, %v161
  %v212 = vmul.f32 %v194, %v161
  %v213 = vmul.f32 %v197, %v161
  %v214 = vmul.f32 %v200, %v161
  %v215 = vmul.f32 %v203, %v161
  %v216 = vmul.f32 %v206, %v161
  %v217 = vmul.f32 %v209, %v161
  %v218 = vadd.f32 %v210, 1e-12
  %v219 = vadd.f32 %v211, 1e-12
  %v220 = vadd.f32 %v212, 1e-12
  %v221 = vadd.f32 %v213, 1e-12
  %v222 = vadd.f32 %v214, 1e-12
  %v223 = vadd.f32 %v215, 1e-12
  %v224 = vadd.f32 %v216, 1e-12
  %v225 = vadd.f32 %v217, 1e-12
  %v226 = vrsqrt.pop %v218
  %v227 = vmul.f32 %v226, %v218
  %v228 = vmul.f32 %v227, %v226
  %v229 = vmul.f32 0.5, %v228
  %v230 = vsub.f32 1.5, %v229
  %v231 = vmul.f32 %v226, %v230
  %vm232 = vweird.f32 %v218
  %vm233 = vweird.f32 %v226
  %vm234 = vmor %vm232, %vm233
  %v235 = vsel %vm234, %v226, %v231
  %v236 = vrsqrt.pop %v219
  %v237 = vmul.f32 %v236, %v219
  %v238 = vmul.f32 %v237, %v236
  %v239 = vmul.f32 0.5, %v238
  %v240 = vsub.f32 1.5, %v239
  %v241 = vmul.f32 %v236, %v240
  %vm242 = vweird.f32 %v219
  %vm243 = vweird.f32 %v236
  %vm244 = vmor %vm242, %vm243
  %v245 = vsel %vm244, %v236, %v241
  %v246 = vrsqrt.pop %v220
  %v247 = vmul.f32 %v246, %v220
  %v248 = vmul.f32 %v247, %v246
  %v249 = vmul.f32 0.5, %v248
  %v250 = vsub.f32 1.5, %v249
  %v251 = vmul.f32 %v246, %v250
  %vm252 = vweird.f32 %v220
  %vm253 = vweird.f32 %v246
  %vm254 = vmor %vm252, %vm253
  %v255 = vsel %vm254, %v246, %v251
  %v256 = vrsqrt.pop %v221
  %v257 = vmul.f32 %v256, %v221
  %v258 = vmul.f32 %v257, %v256
  %v259 = vmul.f32 0.5, %v258
  %v260 = vsub.f32 1.5, %v259
  %v261 = vmul.f32 %v256, %v260
  %vm262 = vweird.f32 %v221
  %vm263 = vweird.f32 %v256
  %vm264 = vmor %vm262, %vm263
  %v265 = vsel %vm264, %v256, %v261
  %v266 = vrsqrt.pop %v222
  %v267 = vmul.f32 %v266, %v222
  %v268 = vmul.f32 %v267, %v266
  %v269 = vmul.f32 0.5, %v268
  %v270 = vsub.f32 1.5, %v269
  %v271 = vmul.f32 %v266, %v270
  %vm272 = vweird.f32 %v222
  %vm273 = vweird.f32 %v266
  %vm274 = vmor %vm272, %vm273
  %v275 = vsel %vm274, %v266, %v271
  %v276 = vrsqrt.pop %v223
  %v277 = vmul.f32 %v276, %v223
  %v278 = vmul.f32 %v277, %v276
  %v279 = vmul.f32 0.5, %v278
  %v280 = vsub.f32 1.5, %v279
  %v281 = vmul.f32 %v276, %v280
  %vm282 = vweird.f32 %v223
  %vm283 = vweird.f32 %v276
  %vm284 = vmor %vm282, %vm283
  %v285 = vsel %vm284, %v276, %v281
  %v286 = vrsqrt.pop %v224
  %v287 = vmul.f32 %v286, %v224
  %v288 = vmul.f32 %v287, %v286
  %v289 = vmul.f32 0.5, %v288
  %v290 = vsub.f32 1.5, %v289
  %v291 = vmul.f32 %v286, %v290
  %vm292 = vweird.f32 %v224
  %vm293 = vweird.f32 %v286
  %vm294 = vmor %vm292, %vm293
  %v295 = vsel %vm294, %v286, %v291
  %v296 = vrsqrt.pop %v225
  %v297 = vmul.f32 %v296, %v225
  %v298 = vmul.f32 %v297, %v296
  %v299 = vmul.f32 0.5, %v298
  %v300 = vsub.f32 1.5, %v299
  %v301 = vmul.f32 %v296, %v300
  %vm302 = vweird.f32 %v225
  %vm303 = vweird.f32 %v296
  %vm304 = vmor %vm302, %vm303
  %v305 = vsel %vm304, %v296, %v301
  %v306 = vmul.f32 %v170, %v235
  %v307 = vmul.f32 %v171, %v245
  %v308 = vmul.f32 %v172, %v255
  %v309 = vmul.f32 %v173, %v265
  %v310 = vmul.f32 %v174, %v275
  %v311 = vmul.f32 %v175, %v285
  %v312 = vmul.f32 %v176, %v295
  %v313 = vmul.f32 %v177, %v305
  %v314 = vld [vmem:[%s4] sm:$0x1]
  %v316 = vperm.slane %v314, 0
  %v318 = vmul.f32 %v306, %v316
  %v319 = vmul.f32 %v307, %v316
  %v320 = vmul.f32 %v308, %v316
  %v321 = vmul.f32 %v309, %v316
  %v322 = vmul.f32 %v310, %v316
  %v323 = vmul.f32 %v311, %v316
  %v324 = vmul.f32 %v312, %v316
  %v325 = vmul.f32 %v313, %v316
  %v326 = vld [vmem:[%s5] sm:$0x1]
  %v328 = vperm.slane %v326, 0
  %v330 = vadd.f32 %v318, %v328
  %v331 = vadd.f32 %v319, %v328
  %v332 = vadd.f32 %v320, %v328
  %v333 = vadd.f32 %v321, %v328
  %v334 = vadd.f32 %v322, %v328
  %v335 = vadd.f32 %v323, %v328
  %v336 = vadd.f32 %v324, %v328
  %v337 = vadd.f32 %v325, %v328
  %338 = vst.msk [vmem:[%s6] sm:$0xff] %vm130, %v330
  %339 = vst.msk [vmem:[%s6 + $0x8] sm:$0xff] %vm130, %v331
  %340 = vst.msk [vmem:[%s6 + $0x10] sm:$0xff] %vm130, %v332
  %341 = vst.msk [vmem:[%s6 + $0x18] sm:$0xff] %vm130, %v333
  %342 = vst.msk [vmem:[%s6 + $0x20] sm:$0xff] %vm130, %v334
  %343 = vst.msk [vmem:[%s6 + $0x28] sm:$0xff] %vm130, %v335
  %344 = vst.msk [vmem:[%s6 + $0x30] sm:$0xff] %vm130, %v336
  %345 = vst.msk [vmem:[%s6 + $0x38] sm:$0xff] %vm130, %v337
  // Predicated region
  $region26: #{graph_bert_encoder.13} parent=0 // pred_check
    _
  $region27: #{graph_bert_encoder.13} parent=0 // pred_check_branch
    %347 = sbr.rel (0) target = $region29
  $region28: #{graph_bert_encoder.13} parent=0 // pred_region
    _
  $region29: #{graph_bert_encoder.13} parent=0 // pred_fallthru
    _
  // Predicated region
  $region30: #{graph_bert_encoder.13} parent=0 // pred_check
    _
  $region31: #{graph_bert_encoder.13} parent=0 // pred_check_branch
    %349 = sbr.rel (0) target = $region33
  $region32: #{graph_bert_encoder.13} parent=0 // pred_region
    _
  $region33: #{graph_bert_encoder.13} parent=0 // pred_fallthru
    _

// kernel: graph_bert_encoder.11
$region0: #{graph_bert_encoder.11}
  #allocation0 [shape = 'u32[]', space=smem, size = 0x4, offset = 0x4, fixed_abs, tag = 'smem constant byte address 0x4 - core index']
  #allocation1 [shape = 'u32[72,128]{1,0:T(1,128)}', space=vmem, size = 0x9000, scoped, tag = 'internal scratch']
  %s0 = inlined_call_operand.vmem [shape: f32[64,32], index: 0, kind: input, shape index: {}]
  %s1 = inlined_call_operand.vmem [shape: bf16[32,32], index: 1, kind: input, shape index: {}]
  %s2 = inlined_call_operand.vmem [shape: f32[1,32], index: 2, kind: input, shape index: {}]
  %s3 = inlined_call_operand.vmem [shape: f32[64,32], index: 3, kind: input, shape index: {}]
  %s4 = inlined_call_operand.vmem [shape: f32[1,32], index: 4, kind: input, shape index: {}]
  %s5 = inlined_call_operand.vmem [shape: f32[1,32], index: 5, kind: input, shape index: {}]
  %s6 = inlined_call_operand.vmem [shape: f32[64,32], index: 6, kind: output, shape index: {}]
  %s7 = sld [smem:[#allocation0]]
  $region34: #{graph_bert_encoder.11} parent=0
    _
  %s9 = ssub.s32 1, %s7
  %s10 = scalar_select 0, %s9, %s7
  // Predicated region
  $region2: #{graph_bert_encoder.11} parent=0 // pred_check
    _
  $region3: #{graph_bert_encoder.11} parent=0 // pred_check_branch
    %12 = sbr.rel (0) target = $region5
  $region4: #{graph_bert_encoder.11} parent=0 // pred_region
    _
  $region5: #{graph_bert_encoder.11} parent=0 // pred_fallthru
    _
  // Predicated region
  $region6: #{graph_bert_encoder.11} parent=0 // pred_check
    _
  $region7: #{graph_bert_encoder.11} parent=0 // pred_check_branch
    %14 = sbr.rel (0) target = $region9
  $region8: #{graph_bert_encoder.11} parent=0 // pred_region
    _
  $region9: #{graph_bert_encoder.11} parent=0 // pred_fallthru
    _
  // Predicated region
  $region10: #{graph_bert_encoder.11} parent=0 // pred_check
    _
  $region11: #{graph_bert_encoder.11} parent=0 // pred_check_branch
    %16 = sbr.rel (0) target = $region13
  $region12: #{graph_bert_encoder.11} parent=0 // pred_region
    _
  $region13: #{graph_bert_encoder.11} parent=0 // pred_fallthru
    _
  // Predicated region
  $region14: #{graph_bert_encoder.11} parent=0 // pred_check
    _
  $region15: #{graph_bert_encoder.11} parent=0 // pred_check_branch
    %18 = sbr.rel (0) target = $region17
  $region16: #{graph_bert_encoder.11} parent=0 // pred_region
    _
  $region17: #{graph_bert_encoder.11} parent=0 // pred_fallthru
    _
  // Predicated region
  $region18: #{graph_bert_encoder.11} parent=0 // pred_check
    _
  $region19: #{graph_bert_encoder.11} parent=0 // pred_check_branch
    %20 = sbr.rel (0) target = $region21
  $region20: #{graph_bert_encoder.11} parent=0 // pred_region
    _
  $region21: #{graph_bert_encoder.11} parent=0 // pred_fallthru
    _
  // Predicated region
  $region22: #{graph_bert_encoder.11} parent=0 // pred_check
    _
  $region23: #{graph_bert_encoder.11} parent=0 // pred_check_branch
    %22 = sbr.rel (0) target = $region25
  $region24: #{graph_bert_encoder.11} parent=0 // pred_region
    _
  $region25: #{graph_bert_encoder.11} parent=0 // pred_fallthru
    _
  %v24 = vld [vmem:[%s0] sm:$0xff]
  %v25 = vld [vmem:[%s0 + $0x8] sm:$0xff]
  %v26 = vld [vmem:[%s0 + $0x10] sm:$0xff]
  %v27 = vld [vmem:[%s0 + $0x18] sm:$0xff]
  %v28 = vld [vmem:[%s0 + $0x20] sm:$0xff]
  %v29 = vld [vmem:[%s0 + $0x28] sm:$0xff]
  %v30 = vld [vmem:[%s0 + $0x30] sm:$0xff]
  %v31 = vld [vmem:[%s0 + $0x38] sm:$0xff]
  %v32 = vpack.c.bf16 %v25, %v24
  %v33 = vpack.c.bf16 %v27, %v26
  %v34 = vpack.c.bf16 %v29, %v28
  %v35 = vpack.c.bf16 %v31, %v30
  %v36 = vld [vmem:[%s1] sm:$0xf]
  %v37 = vld [vmem:[%s1 + $0x4] sm:$0xf]
  %v38 = vld [vmem:[%s1 + $0x8] sm:$0xf]
  %v39 = vld [vmem:[%s1 + $0xc] sm:$0xf]
  %v40 = vld [vmem:[%s2] sm:$0x1]
  %v42 = vperm.slane %v40, 0
  %v48 = vunpack.c.l.b16 %v36
  %v49 = vunpack.c.l.b16 %v37
  %v50 = vunpack.c.l.b16 %v38
  %v51 = vunpack.c.l.b16 %v39
  %v52 = vpack.c.b16 %v49, %v48
  %v53 = vpack.c.b16 %v51, %v50
  %vm56 = vcmask 261120
  %v58 = vsel %vm56, %v32, 0
  %v61 = vsel %vm56, %v33, 0
  %v64 = vsel %vm56, %v34, 0
  %v67 = vsel %vm56, %v35, 0
  %69 = vmatpush.bf16.msra.mxu0 0
  %70 = vmatpush.bf16.msra.mxu0 0
  %71 = vmatpush.bf16.msra.mxu0 0
  %72 = vmatpush.bf16.msra.mxu0 0
  %73 = vmatpush.bf16.msra.mxu0 0
  %74 = vmatpush.bf16.msra.mxu0 0
  %75 = vmatpush.bf16.msra.mxu0 %v53
  %76 = vmatpush.bf16.msra.mxu0 %v52
  %77 = vmatmul.bf16.gmra.mxu0 %v58
  %v78 = vpop.f32.mrf.mxu0
  %v79 = vadd.f32 %v42, %v78
  %v80 = vpop.f32.mrf.mxu0
  %v81 = vadd.f32 %v42, %v80
  %82 = vmatmul.bf16.gmra.mxu0 %v61
  %v83 = vpop.f32.mrf.mxu0
  %v84 = vadd.f32 %v42, %v83
  %v85 = vpop.f32.mrf.mxu0
  %v86 = vadd.f32 %v42, %v85
  %87 = vmatmul.bf16.gmra.mxu0 %v64
  %v88 = vpop.f32.mrf.mxu0
  %v89 = vadd.f32 %v42, %v88
  %v90 = vpop.f32.mrf.mxu0
  %v91 = vadd.f32 %v42, %v90
  %92 = vmatmul.bf16.gmra.mxu0 %v67
  %v93 = vpop.f32.mrf.mxu0
  %v94 = vadd.f32 %v42, %v93
  %v95 = vpop.f32.mrf.mxu0
  %v96 = vadd.f32 %v42, %v95
  %97 = vdwg.mxu0
  %v98 = vld [vmem:[%s3] sm:$0xff]
  %v99 = vld [vmem:[%s3 + $0x8] sm:$0xff]
  %v100 = vld [vmem:[%s3 + $0x10] sm:$0xff]
  %v101 = vld [vmem:[%s3 + $0x18] sm:$0xff]
  %v102 = vld [vmem:[%s3 + $0x20] sm:$0xff]
  %v103 = vld [vmem:[%s3 + $0x28] sm:$0xff]
  %v104 = vld [vmem:[%s3 + $0x30] sm:$0xff]
  %v105 = vld [vmem:[%s3 + $0x38] sm:$0xff]
  %v106 = vadd.f32 %v79, %v98
  %v107 = vadd.f32 %v81, %v99
  %v108 = vadd.f32 %v84, %v100
  %v109 = vadd.f32 %v86, %v101
  %v110 = vadd.f32 %v89, %v102
  %v111 = vadd.f32 %v91, %v103
  %v112 = vadd.f32 %v94, %v104
  %v113 = vadd.f32 %v96, %v105
  %v114 = vsel %vm56, %v106, 0.0
  %115 = vadd.xlane.f32.xlu0 %v114
  %v116 = vpop.xlane.xlu0 %115
  %v117 = vsel %vm56, %v107, 0.0
  %118 = vadd.xlane.f32.xlu0 %v117
  %v119 = vpop.xlane.xlu0 %118
  %v120 = vsel %vm56, %v108, 0.0
  %121 = vadd.xlane.f32.xlu0 %v120
  %v122 = vpop.xlane.xlu0 %121
  %v123 = vsel %vm56, %v109, 0.0
  %124 = vadd.xlane.f32.xlu0 %v123
  %v125 = vpop.xlane.xlu0 %124
  %v126 = vsel %vm56, %v110, 0.0
  %127 = vadd.xlane.f32.xlu0 %v126
  %v128 = vpop.xlane.xlu0 %127
  %v129 = vsel %vm56, %v111, 0.0
  %130 = vadd.xlane.f32.xlu0 %v129
  %v131 = vpop.xlane.xlu0 %130
  %v132 = vsel %vm56, %v112, 0.0
  %133 = vadd.xlane.f32.xlu0 %v132
  %v134 = vpop.xlane.xlu0 %133
  %v135 = vsel %vm56, %v113, 0.0
  %136 = vadd.xlane.f32.xlu0 %v135
  %v137 = vpop.xlane.xlu0 %136
  %v138 = vrcp.pop 32.0
  %v139 = vmul.f32 32.0, %v138
  %v140 = vsub.f32 1.0, %v139
  %v141 = vmul.f32 %v138, %v140
  %v142 = vadd.f32 %v138, %v141
  %vm143 = vweird.f32 %v138
  %v144 = vsel %vm143, %v138, %v142
  %v145 = vmul.f32 %v116, %v144
  %v146 = vmul.f32 %v119, %v144
  %v147 = vmul.f32 %v122, %v144
  %v148 = vmul.f32 %v125, %v144
  %v149 = vmul.f32 %v128, %v144
  %v150 = vmul.f32 %v131, %v144
  %v151 = vmul.f32 %v134, %v144
  %v152 = vmul.f32 %v137, %v144
  %v153 = vsub.f32 %v106, %v145
  %v154 = vsub.f32 %v107, %v146
  %v155 = vsub.f32 %v108, %v147
  %v156 = vsub.f32 %v109, %v148
  %v157 = vsub.f32 %v110, %v149
  %v158 = vsub.f32 %v111, %v150
  %v159 = vsub.f32 %v112, %v151
  %v160 = vsub.f32 %v113, %v152
  %v161 = vmul.f32 %v153, %v153
  %v162 = vmul.f32 %v154, %v154
  %v163 = vmul.f32 %v155, %v155
  %v164 = vmul.f32 %v156, %v156
  %v165 = vmul.f32 %v157, %v157
  %v166 = vmul.f32 %v158, %v158
  %v167 = vmul.f32 %v159, %v159
  %v168 = vmul.f32 %v160, %v160
  %v169 = vsel %vm56, %v161, 0.0
  %170 = vadd.xlane.f32.xlu0 %v169
  %v171 = vpop.xlane.xlu0 %170
  %v172 = vsel %vm56, %v162, 0.0
  %173 = vadd.xlane.f32.xlu0 %v172
  %v174 = vpop.xlane.xlu0 %173
  %v175 = vsel %vm56, %v163, 0.0
  %176 = vadd.xlane.f32.xlu0 %v175
  %v177 = vpop.xlane.xlu0 %176
  %v178 = vsel %vm56, %v164, 0.0
  %179 = vadd.xlane.f32.xlu0 %v178
  %v180 = vpop.xlane.xlu0 %179
  %v181 = vsel %vm56, %v165, 0.0
  %182 = vadd.xlane.f32.xlu0 %v181
  %v183 = vpop.xlane.xlu0 %182
  %v184 = vsel %vm56, %v166, 0.0
  %185 = vadd.xlane.f32.xlu0 %v184
  %v186 = vpop.xlane.xlu0 %185
  %v187 = vsel %vm56, %v167, 0.0
  %188 = vadd.xlane.f32.xlu0 %v187
  %v189 = vpop.xlane.xlu0 %188
  %v190 = vsel %vm56, %v168, 0.0
  %191 = vadd.xlane.f32.xlu0 %v190
  %v192 = vpop.xlane.xlu0 %191
  %v193 = vmul.f32 %v171, %v144
  %v194 = vmul.f32 %v174, %v144
  %v195 = vmul.f32 %v177, %v144
  %v196 = vmul.f32 %v180, %v144
  %v197 = vmul.f32 %v183, %v144
  %v198 = vmul.f32 %v186, %v144
  %v199 = vmul.f32 %v189, %v144
  %v200 = vmul.f32 %v192, %v144
  %v201 = vadd.f32 %v193, 1e-12
  %v202 = vadd.f32 %v194, 1e-12
  %v203 = vadd.f32 %v195, 1e-12
  %v204 = vadd.f32 %v196, 1e-12
  %v205 = vadd.f32 %v197, 1e-12
  %v206 = vadd.f32 %v198, 1e-12
  %v207 = vadd.f32 %v199, 1e-12
  %v208 = vadd.f32 %v200, 1e-12
  %v209 = vrsqrt.pop %v201
  %v210 = vmul.f32 %v209, %v201
  %v211 = vmul.f32 %v210, %v209
  %v212 = vmul.f32 0.5, %v211
  %v213 = vsub.f32 1.5, %v212
  %v214 = vmul.f32 %v209, %v213
  %vm215 = vweird.f32 %v201
  %vm216 = vweird.f32 %v209
  %vm217 = vmor %vm215, %vm216
  %v218 = vsel %vm217, %v209, %v214
  %v219 = vrsqrt.pop %v202
  %v220 = vmul.f32 %v219, %v202
  %v221 = vmul.f32 %v220, %v219
  %v222 = vmul.f32 0.5, %v221
  %v223 = vsub.f32 1.5, %v222
  %v224 = vmul.f32 %v219, %v223
  %vm225 = vweird.f32 %v202
  %vm226 = vweird.f32 %v219
  %vm227 = vmor %vm225, %vm226
  %v228 = vsel %vm227, %v219, %v224
  %v229 = vrsqrt.pop %v203
  %v230 = vmul.f32 %v229, %v203
  %v231 = vmul.f32 %v230, %v229
  %v232 = vmul.f32 0.5, %v231
  %v233 = vsub.f32 1.5, %v232
  %v234 = vmul.f32 %v229, %v233
  %vm235 = vweird.f32 %v203
  %vm236 = vweird.f32 %v229
  %vm237 = vmor %vm235, %vm236
  %v238 = vsel %vm237, %v229, %v234
  %v239 = vrsqrt.pop %v204
  %v240 = vmul.f32 %v239, %v204
  %v241 = vmul.f32 %v240, %v239
  %v242 = vmul.f32 0.5, %v241
  %v243 = vsub.f32 1.5, %v242
  %v244 = vmul.f32 %v239, %v243
  %vm245 = vweird.f32 %v204
  %vm246 = vweird.f32 %v239
  %vm247 = vmor %vm245, %vm246
  %v248 = vsel %vm247, %v239, %v244
  %v249 = vrsqrt.pop %v205
  %v250 = vmul.f32 %v249, %v205
  %v251 = vmul.f32 %v250, %v249
  %v252 = vmul.f32 0.5, %v251
  %v253 = vsub.f32 1.5, %v252
  %v254 = vmul.f32 %v249, %v253
  %vm255 = vweird.f32 %v205
  %vm256 = vweird.f32 %v249
  %vm257 = vmor %vm255, %vm256
  %v258 = vsel %vm257, %v249, %v254
  %v259 = vrsqrt.pop %v206
  %v260 = vmul.f32 %v259, %v206
  %v261 = vmul.f32 %v260, %v259
  %v262 = vmul.f32 0.5, %v261
  %v263 = vsub.f32 1.5, %v262
  %v264 = vmul.f32 %v259, %v263
  %vm265 = vweird.f32 %v206
  %vm266 = vweird.f32 %v259
  %vm267 = vmor %vm265, %vm266
  %v268 = vsel %vm267, %v259, %v264
  %v269 = vrsqrt.pop %v207
  %v270 = vmul.f32 %v269, %v207
  %v271 = vmul.f32 %v270, %v269
  %v272 = vmul.f32 0.5, %v271
  %v273 = vsub.f32 1.5, %v272
  %v274 = vmul.f32 %v269, %v273
  %vm275 = vweird.f32 %v207
  %vm276 = vweird.f32 %v269
  %vm277 = vmor %vm275, %vm276
  %v278 = vsel %vm277, %v269, %v274
  %v279 = vrsqrt.pop %v208
  %v280 = vmul.f32 %v279, %v208
  %v281 = vmul.f32 %v280, %v279
  %v282 = vmul.f32 0.5, %v281
  %v283 = vsub.f32 1.5, %v282
  %v284 = vmul.f32 %v279, %v283
  %vm285 = vweird.f32 %v208
  %vm286 = vweird.f32 %v279
  %vm287 = vmor %vm285, %vm286
  %v288 = vsel %vm287, %v279, %v284
  %v289 = vmul.f32 %v153, %v218
  %v290 = vmul.f32 %v154, %v228
  %v291 = vmul.f32 %v155, %v238
  %v292 = vmul.f32 %v156, %v248
  %v293 = vmul.f32 %v157, %v258
  %v294 = vmul.f32 %v158, %v268
  %v295 = vmul.f32 %v159, %v278
  %v296 = vmul.f32 %v160, %v288
  %v297 = vld [vmem:[%s4] sm:$0x1]
  %v299 = vperm.slane %v297, 0
  %v301 = vmul.f32 %v289, %v299
  %v302 = vmul.f32 %v290, %v299
  %v303 = vmul.f32 %v291, %v299
  %v304 = vmul.f32 %v292, %v299
  %v305 = vmul.f32 %v293, %v299
  %v306 = vmul.f32 %v294, %v299
  %v307 = vmul.f32 %v295, %v299
  %v308 = vmul.f32 %v296, %v299
  %v309 = vld [vmem:[%s5] sm:$0x1]
  %v311 = vperm.slane %v309, 0
  %v313 = vadd.f32 %v301, %v311
  %v314 = vadd.f32 %v302, %v311
  %v315 = vadd.f32 %v303, %v311
  %v316 = vadd.f32 %v304, %v311
  %v317 = vadd.f32 %v305, %v311
  %v318 = vadd.f32 %v306, %v311
  %v319 = vadd.f32 %v307, %v311
  %v320 = vadd.f32 %v308, %v311
  %321 = vst.msk [vmem:[%s6] sm:$0xff] %vm56, %v313
  %322 = vst.msk [vmem:[%s6 + $0x8] sm:$0xff] %vm56, %v314
  %323 = vst.msk [vmem:[%s6 + $0x10] sm:$0xff] %vm56, %v315
  %324 = vst.msk [vmem:[%s6 + $0x18] sm:$0xff] %vm56, %v316
  %325 = vst.msk [vmem:[%s6 + $0x20] sm:$0xff] %vm56, %v317
  %326 = vst.msk [vmem:[%s6 + $0x28] sm:$0xff] %vm56, %v318
  %327 = vst.msk [vmem:[%s6 + $0x30] sm:$0xff] %vm56, %v319
  %328 = vst.msk [vmem:[%s6 + $0x38] sm:$0xff] %vm56, %v320
  // Predicated region
  $region26: #{graph_bert_encoder.11} parent=0 // pred_check
    _
  $region27: #{graph_bert_encoder.11} parent=0 // pred_check_branch
    %330 = sbr.rel (0) target = $region29
  $region28: #{graph_bert_encoder.11} parent=0 // pred_region
    _
  $region29: #{graph_bert_encoder.11} parent=0 // pred_fallthru
    _
  // Predicated region
  $region30: #{graph_bert_encoder.11} parent=0 // pred_check
    _
  $region31: #{graph_bert_encoder.11} parent=0 // pred_check_branch
    %332 = sbr.rel (0) target = $region33
  $region32: #{graph_bert_encoder.11} parent=0 // pred_region
    _
  $region33: #{graph_bert_encoder.11} parent=0 // pred_fallthru
    _

// kernel: graph_bert_encoder.12
$region0: #{graph_bert_encoder.12}
  #allocation0 [shape = 'u32[]', space=smem, size = 0x4, offset = 0x4, fixed_abs, tag = 'smem constant byte address 0x4 - core index']
  #allocation1 [shape = 'u32[72,128]{1,0:T(1,128)}', space=vmem, size = 0x9000, scoped, tag = 'internal scratch']
  %s0 = inlined_call_operand.vmem [shape: f32[64,32], index: 0, kind: input, shape index: {}]
  %s1 = inlined_call_operand.vmem [shape: bf16[32,64], index: 1, kind: input, shape index: {}]
  %s2 = inlined_call_operand.vmem [shape: f32[1,64], index: 2, kind: input, shape index: {}]
  %s3 = inlined_call_operand.vmem [shape: f32[64,64], index: 3, kind: output, shape index: {}]
  %s4 = sld [smem:[#allocation0]]
  $region22: #{graph_bert_encoder.12} parent=0
    _
  %s6 = ssub.s32 1, %s4
  %s7 = scalar_select 0, %s6, %s4
  // Predicated region
  $region2: #{graph_bert_encoder.12} parent=0 // pred_check
    _
  $region3: #{graph_bert_encoder.12} parent=0 // pred_check_branch
    %9 = sbr.rel (0) target = $region5
  $region4: #{graph_bert_encoder.12} parent=0 // pred_region
    _
  $region5: #{graph_bert_encoder.12} parent=0 // pred_fallthru
    _
  // Predicated region
  $region6: #{graph_bert_encoder.12} parent=0 // pred_check
    _
  $region7: #{graph_bert_encoder.12} parent=0 // pred_check_branch
    %11 = sbr.rel (0) target = $region9
  $region8: #{graph_bert_encoder.12} parent=0 // pred_region
    _
  $region9: #{graph_bert_encoder.12} parent=0 // pred_fallthru
    _
  // Predicated region
  $region10: #{graph_bert_encoder.12} parent=0 // pred_check
    _
  $region11: #{graph_bert_encoder.12} parent=0 // pred_check_branch
    %13 = sbr.rel (0) target = $region13
  $region12: #{graph_bert_encoder.12} parent=0 // pred_region
    _
  $region13: #{graph_bert_encoder.12} parent=0 // pred_fallthru
    _
  %v15 = vld [vmem:[%s0] sm:$0xff]
  %v16 = vld [vmem:[%s0 + $0x8] sm:$0xff]
  %v17 = vld [vmem:[%s0 + $0x10] sm:$0xff]
  %v18 = vld [vmem:[%s0 + $0x18] sm:$0xff]
  %v19 = vld [vmem:[%s0 + $0x20] sm:$0xff]
  %v20 = vld [vmem:[%s0 + $0x28] sm:$0xff]
  %v21 = vld [vmem:[%s0 + $0x30] sm:$0xff]
  %v22 = vld [vmem:[%s0 + $0x38] sm:$0xff]
  %v23 = vpack.c.bf16 %v16, %v15
  %v24 = vpack.c.bf16 %v18, %v17
  %v25 = vpack.c.bf16 %v20, %v19
  %v26 = vpack.c.bf16 %v22, %v21
  %v27 = vld [vmem:[%s1] sm:$0xf]
  %v28 = vld [vmem:[%s1 + $0x4] sm:$0xf]
  %v29 = vld [vmem:[%s1 + $0x8] sm:$0xf]
  %v30 = vld [vmem:[%s1 + $0xc] sm:$0xf]
  %v31 = vld [vmem:[%s2] sm:$0x1]
  %v33 = vperm.slane %v31, 0
  %v39 = vunpack.c.l.b16 %v27
  %v40 = vunpack.c.l.b16 %v28
  %v41 = vunpack.c.l.b16 %v29
  %v42 = vunpack.c.l.b16 %v30
  %v43 = vpack.c.b16 %v40, %v39
  %v44 = vpack.c.b16 %v42, %v41
  %vm47 = vcmask 261120
  %v49 = vsel %vm47, %v23, 0
  %v52 = vsel %vm47, %v24, 0
  %v55 = vsel %vm47, %v25, 0
  %v58 = vsel %vm47, %v26, 0
  %60 = vmatpush.bf16.msra.mxu0 0
  %61 = vmatpush.bf16.msra.mxu0 0
  %62 = vmatpush.bf16.msra.mxu0 0
  %63 = vmatpush.bf16.msra.mxu0 0
  %64 = vmatpush.bf16.msra.mxu0 0
  %65 = vmatpush.bf16.msra.mxu0 0
  %66 = vmatpush.bf16.msra.mxu0 %v44
  %67 = vmatpush.bf16.msra.mxu0 %v43
  %68 = vmatmul.bf16.gmra.mxu0 %v49
  %v69 = vpop.f32.mrf.mxu0
  %v70 = vadd.f32 %v33, %v69
  %v71 = vpop.f32.mrf.mxu0
  %v72 = vadd.f32 %v33, %v71
  %73 = vmatmul.bf16.gmra.mxu0 %v52
  %v74 = vpop.f32.mrf.mxu0
  %v75 = vadd.f32 %v33, %v74
  %v76 = vpop.f32.mrf.mxu0
  %v77 = vadd.f32 %v33, %v76
  %78 = vmatmul.bf16.gmra.mxu0 %v55
  %v79 = vpop.f32.mrf.mxu0
  %v80 = vadd.f32 %v33, %v79
  %v81 = vpop.f32.mrf.mxu0
  %v82 = vadd.f32 %v33, %v81
  %83 = vmatmul.bf16.gmra.mxu0 %v58
  %v84 = vpop.f32.mrf.mxu0
  %v85 = vadd.f32 %v33, %v84
  %v86 = vpop.f32.mrf.mxu0
  %v87 = vadd.f32 %v33, %v86
  %88 = vdwg.mxu0
  %v89 = vmul.f32 %v70, 0.5
  %v90 = vmul.f32 %v72, 0.5
  %v91 = vmul.f32 %v75, 0.5
  %v92 = vmul.f32 %v77, 0.5
  %v93 = vmul.f32 %v80, 0.5
  %v94 = vmul.f32 %v82, 0.5
  %v95 = vmul.f32 %v85, 0.5
  %v96 = vmul.f32 %v87, 0.5
  %v97 = vmul.f32 %v70, 0.70710677
  %v98 = vmul.f32 %v72, 0.70710677
  %v99 = vmul.f32 %v75, 0.70710677
  %v100 = vmul.f32 %v77, 0.70710677
  %v101 = vmul.f32 %v80, 0.70710677
  %v102 = vmul.f32 %v82, 0.70710677
  %v103 = vmul.f32 %v85, 0.70710677
  %v104 = vmul.f32 %v87, 0.70710677
  %v105 = vmul.f32 %v97, %v97
  %v106 = vmin.f32 16.0, %v105
  %v107 = vmul.f32 %v106, 2.1237322e-06
  %v108 = vadd.f32 %v107, 0.00028619796
  %v109 = vmul.f32 %v106, %v108
  %v110 = vadd.f32 %v109, 0.0036580483
  %v111 = vmul.f32 %v106, %v110
  %v112 = vadd.f32 %v111, 0.05243302
  %v113 = vmul.f32 %v106, %v112
  %v114 = vadd.f32 %v113, 0.18741608
  %v115 = vmul.f32 %v106, %v114
  %v116 = vadd.f32 %v115, 1.1283791
  %v117 = vmul.f32 %v97, %v116
  %v118 = vmul.f32 %v106, 3.8918573e-05
  %v119 = vadd.f32 %v118, 0.001143296
  %v120 = vmul.f32 %v106, %v119
  %v121 = vadd.f32 %v120, 0.014752088
  %v122 = vmul.f32 %v106, %v121
  %v123 = vadd.f32 %v122, 0.112945676
  %v124 = vmul.f32 %v106, %v123
  %v125 = vadd.f32 %v124, 0.4994258
  %v126 = vmul.f32 %v106, %v125
  %v127 = vadd.f32 %v126, 1.0
  %v128 = vrcp.pop %v127
  %v129 = vmul.f32 %v127, %v128
  %v130 = vsub.f32 1.0, %v129
  %v131 = vmul.f32 %v128, %v130
  %v132 = vadd.f32 %v128, %v131
  %vm133 = vweird.f32 %v127
  %vm134 = vweird.f32 %v128
  %vm135 = vmor %vm133, %vm134
  %v136 = vsel %vm135, %v128, %v132
  %v137 = vand.u32 2147483647, %v127
  %vm138 = vcmp.eq.f32.partialorder %v137, 8.507059e+37
  %v139 = vand.u32 %v127, 2147483648
  %v140 = vor.u32 1.1754944e-38, %v139
  %v141 = vsel %vm138, %v140, %v136
  %v142 = vmul.f32 %v117, %v141
  %v143 = vmin.f32 %v142, 1.0
  %v144 = vmax.f32 %v143, -1.0
  %v145 = vmul.f32 %v98, %v98
  %v146 = vmin.f32 16.0, %v145
  %v147 = vmul.f32 %v146, 2.1237322e-06
  %v148 = vadd.f32 %v147, 0.00028619796
  %v149 = vmul.f32 %v146, %v148
  %v150 = vadd.f32 %v149, 0.0036580483
  %v151 = vmul.f32 %v146, %v150
  %v152 = vadd.f32 %v151, 0.05243302
  %v153 = vmul.f32 %v146, %v152
  %v154 = vadd.f32 %v153, 0.18741608
  %v155 = vmul.f32 %v146, %v154
  %v156 = vadd.f32 %v155, 1.1283791
  %v157 = vmul.f32 %v98, %v156
  %v158 = vmul.f32 %v146, 3.8918573e-05
  %v159 = vadd.f32 %v158, 0.001143296
  %v160 = vmul.f32 %v146, %v159
  %v161 = vadd.f32 %v160, 0.014752088
  %v162 = vmul.f32 %v146, %v161
  %v163 = vadd.f32 %v162, 0.112945676
  %v164 = vmul.f32 %v146, %v163
  %v165 = vadd.f32 %v164, 0.4994258
  %v166 = vmul.f32 %v146, %v165
  %v167 = vadd.f32 %v166, 1.0
  %v168 = vrcp.pop %v167
  %v169 = vmul.f32 %v167, %v168
  %v170 = vsub.f32 1.0, %v169
  %v171 = vmul.f32 %v168, %v170
  %v172 = vadd.f32 %v168, %v171
  %vm173 = vweird.f32 %v167
  %vm174 = vweird.f32 %v168
  %vm175 = vmor %vm173, %vm174
  %v176 = vsel %vm175, %v168, %v172
  %v177 = vand.u32 2147483647, %v167
  %vm178 = vcmp.eq.f32.partialorder %v177, 8.507059e+37
  %v179 = vand.u32 %v167, 2147483648
  %v180 = vor.u32 1.1754944e-38, %v179
  %v181 = vsel %vm178, %v180, %v176
  %v182 = vmul.f32 %v157, %v181
  %v183 = vmin.f32 %v182, 1.0
  %v184 = vmax.f32 %v183, -1.0
  %v185 = vmul.f32 %v99, %v99
  %v186 = vmin.f32 16.0, %v185
  %v187 = vmul.f32 %v186, 2.1237322e-06
  %v188 = vadd.f32 %v187, 0.00028619796
  %v189 = vmul.f32 %v186, %v188
  %v190 = vadd.f32 %v189, 0.0036580483
  %v191 = vmul.f32 %v186, %v190
  %v192 = vadd.f32 %v191, 0.05243302
  %v193 = vmul.f32 %v186, %v192
  %v194 = vadd.f32 %v193, 0.18741608
  %v195 = vmul.f32 %v186, %v194
  %v196 = vadd.f32 %v195, 1.1283791
  %v197 = vmul.f32 %v99, %v196
  %v198 = vmul.f32 %v186, 3.8918573e-05
  %v199 = vadd.f32 %v198, 0.001143296
  %v200 = vmul.f32 %v186, %v199
  %v201 = vadd.f32 %v200, 0.014752088
  %v202 = vmul.f32 %v186, %v201
  %v203 = vadd.f32 %v202, 0.112945676
  %v204 = vmul.f32 %v186, %v203
  %v205 = vadd.f32 %v204, 0.4994258
  %v206 = vmul.f32 %v186, %v205
  %v207 = vadd.f32 %v206, 1.0
  %v208 = vrcp.pop %v207
  %v209 = vmul.f32 %v207, %v208
  %v210 = vsub.f32 1.0, %v209
  %v211 = vmul.f32 %v208, %v210
  %v212 = vadd.f32 %v208, %v211
  %vm213 = vweird.f32 %v207
  %vm214 = vweird.f32 %v208
  %vm215 = vmor %vm213, %vm214
  %v216 = vsel %vm215, %v208, %v212
  %v217 = vand.u32 2147483647, %v207
  %vm218 = vcmp.eq.f32.partialorder %v217, 8.507059e+37
  %v219 = vand.u32 %v207, 2147483648
  %v220 = vor.u32 1.1754944e-38, %v219
  %v221 = vsel %vm218, %v220, %v216
  %v222 = vmul.f32 %v197, %v221
  %v223 = vmin.f32 %v222, 1.0
  %v224 = vmax.f32 %v223, -1.0
  %v225 = vmul.f32 %v100, %v100
  %v226 = vmin.f32 16.0, %v225
  %v227 = vmul.f32 %v226, 2.1237322e-06
  %v228 = vadd.f32 %v227, 0.00028619796
  %v229 = vmul.f32 %v226, %v228
  %v230 = vadd.f32 %v229, 0.0036580483
  %v231 = vmul.f32 %v226, %v230
  %v232 = vadd.f32 %v231, 0.05243302
  %v233 = vmul.f32 %v226, %v232
  %v234 = vadd.f32 %v233, 0.18741608
  %v235 = vmul.f32 %v226, %v234
  %v236 = vadd.f32 %v235, 1.1283791
  %v237 = vmul.f32 %v100, %v236
  %v238 = vmul.f32 %v226, 3.8918573e-05
  %v239 = vadd.f32 %v238, 0.001143296
  %v240 = vmul.f32 %v226, %v239
  %v241 = vadd.f32 %v240, 0.014752088
  %v242 = vmul.f32 %v226, %v241
  %v243 = vadd.f32 %v242, 0.112945676
  %v244 = vmul.f32 %v226, %v243
  %v245 = vadd.f32 %v244, 0.4994258
  %v246 = vmul.f32 %v226, %v245
  %v247 = vadd.f32 %v246, 1.0
  %v248 = vrcp.pop %v247
  %v249 = vmul.f32 %v247, %v248
  %v250 = vsub.f32 1.0, %v249
  %v251 = vmul.f32 %v248, %v250
  %v252 = vadd.f32 %v248, %v251
  %vm253 = vweird.f32 %v247
  %vm254 = vweird.f32 %v248
  %vm255 = vmor %vm253, %vm254
  %v256 = vsel %vm255, %v248, %v252
  %v257 = vand.u32 2147483647, %v247
  %vm258 = vcmp.eq.f32.partialorder %v257, 8.507059e+37
  %v259 = vand.u32 %v247, 2147483648
  %v260 = vor.u32 1.1754944e-38, %v259
  %v261 = vsel %vm258, %v260, %v256
  %v262 = vmul.f32 %v237, %v261
  %v263 = vmin.f32 %v262, 1.0
  %v264 = vmax.f32 %v263, -1.0
  %v265 = vmul.f32 %v101, %v101
  %v266 = vmin.f32 16.0, %v265
  %v267 = vmul.f32 %v266, 2.1237322e-06
  %v268 = vadd.f32 %v267, 0.00028619796
  %v269 = vmul.f32 %v266, %v268
  %v270 = vadd.f32 %v269, 0.0036580483
  %v271 = vmul.f32 %v266, %v270
  %v272 = vadd.f32 %v271, 0.05243302
  %v273 = vmul.f32 %v266, %v272
  %v274 = vadd.f32 %v273, 0.18741608
  %v275 = vmul.f32 %v266, %v274
  %v276 = vadd.f32 %v275, 1.1283791
  %v277 = vmul.f32 %v101, %v276
  %v278 = vmul.f32 %v266, 3.8918573e-05
  %v279 = vadd.f32 %v278, 0.001143296
  %v280 = vmul.f32 %v266, %v279
  %v281 = vadd.f32 %v280, 0.014752088
  %v282 = vmul.f32 %v266, %v281
  %v283 = vadd.f32 %v282, 0.112945676
  %v284 = vmul.f32 %v266, %v283
  %v285 = vadd.f32 %v284, 0.4994258
  %v286 = vmul.f32 %v266, %v285
  %v287 = vadd.f32 %v286, 1.0
  %v288 = vrcp.pop %v287
  %v289 = vmul.f32 %v287, %v288
  %v290 = vsub.f32 1.0, %v289
  %v291 = vmul.f32 %v288, %v290
  %v292 = vadd.f32 %v288, %v291
  %vm293 = vweird.f32 %v287
  %vm294 = vweird.f32 %v288
  %vm295 = vmor %vm293, %vm294
  %v296 = vsel %vm295, %v288, %v292
  %v297 = vand.u32 2147483647, %v287
  %vm298 = vcmp.eq.f32.partialorder %v297, 8.507059e+37
  %v299 = vand.u32 %v287, 2147483648
  %v300 = vor.u32 1.1754944e-38, %v299
  %v301 = vsel %vm298, %v300, %v296
  %v302 = vmul.f32 %v277, %v301
  %v303 = vmin.f32 %v302, 1.0
  %v304 = vmax.f32 %v303, -1.0
  %v305 = vmul.f32 %v102, %v102
  %v306 = vmin.f32 16.0, %v305
  %v307 = vmul.f32 %v306, 2.1237322e-06
  %v308 = vadd.f32 %v307, 0.00028619796
  %v309 = vmul.f32 %v306, %v308
  %v310 = vadd.f32 %v309, 0.0036580483
  %v311 = vmul.f32 %v306, %v310
  %v312 = vadd.f32 %v311, 0.05243302
  %v313 = vmul.f32 %v306, %v312
  %v314 = vadd.f32 %v313, 0.18741608
  %v315 = vmul.f32 %v306, %v314
  %v316 = vadd.f32 %v315, 1.1283791
  %v317 = vmul.f32 %v102, %v316
  %v318 = vmul.f32 %v306, 3.8918573e-05
  %v319 = vadd.f32 %v318, 0.001143296
  %v320 = vmul.f32 %v306, %v319
  %v321 = vadd.f32 %v320, 0.014752088
  %v322 = vmul.f32 %v306, %v321
  %v323 = vadd.f32 %v322, 0.112945676
  %v324 = vmul.f32 %v306, %v323
  %v325 = vadd.f32 %v324, 0.4994258
  %v326 = vmul.f32 %v306, %v325
  %v327 = vadd.f32 %v326, 1.0
  %v328 = vrcp.pop %v327
  %v329 = vmul.f32 %v327, %v328
  %v330 = vsub.f32 1.0, %v329
  %v331 = vmul.f32 %v328, %v330
  %v332 = vadd.f32 %v328, %v331
  %vm333 = vweird.f32 %v327
  %vm334 = vweird.f32 %v328
  %vm335 = vmor %vm333, %vm334
  %v336 = vsel %vm335, %v328, %v332
  %v337 = vand.u32 2147483647, %v327
  %vm338 = vcmp.eq.f32.partialorder %v337, 8.507059e+37
  %v339 = vand.u32 %v327, 2147483648
  %v340 = vor.u32 1.1754944e-38, %v339
  %v341 = vsel %vm338, %v340, %v336
  %v342 = vmul.f32 %v317, %v341
  %v343 = vmin.f32 %v342, 1.0
  %v344 = vmax.f32 %v343, -1.0
  %v345 = vmul.f32 %v103, %v103
  %v346 = vmin.f32 16.0, %v345
  %v347 = vmul.f32 %v346, 2.1237322e-06
  %v348 = vadd.f32 %v347, 0.00028619796
  %v349 = vmul.f32 %v346, %v348
  %v350 = vadd.f32 %v349, 0.0036580483
  %v351 = vmul.f32 %v346, %v350
  %v352 = vadd.f32 %v351, 0.05243302
  %v353 = vmul.f32 %v346, %v352
  %v354 = vadd.f32 %v353, 0.18741608
  %v355 = vmul.f32 %v346, %v354
  %v356 = vadd.f32 %v355, 1.1283791
  %v357 = vmul.f32 %v103, %v356
  %v358 = vmul.f32 %v346, 3.8918573e-05
  %v359 = vadd.f32 %v358, 0.001143296
  %v360 = vmul.f32 %v346, %v359
  %v361 = vadd.f32 %v360, 0.014752088
  %v362 = vmul.f32 %v346, %v361
  %v363 = vadd.f32 %v362, 0.112945676
  %v364 = vmul.f32 %v346, %v363
  %v365 = vadd.f32 %v364, 0.4994258
  %v366 = vmul.f32 %v346, %v365
  %v367 = vadd.f32 %v366, 1.0
  %v368 = vrcp.pop %v367
  %v369 = vmul.f32 %v367, %v368
  %v370 = vsub.f32 1.0, %v369
  %v371 = vmul.f32 %v368, %v370
  %v372 = vadd.f32 %v368, %v371
  %vm373 = vweird.f32 %v367
  %vm374 = vweird.f32 %v368
  %vm375 = vmor %vm373, %vm374
  %v376 = vsel %vm375, %v368, %v372
  %v377 = vand.u32 2147483647, %v367
  %vm378 = vcmp.eq.f32.partialorder %v377, 8.507059e+37
  %v379 = vand.u32 %v367, 2147483648
  %v380 = vor.u32 1.1754944e-38, %v379
  %v381 = vsel %vm378, %v380, %v376
  %v382 = vmul.f32 %v357, %v381
  %v383 = vmin.f32 %v382, 1.0
  %v384 = vmax.f32 %v383, -1.0
  %v385 = vmul.f32 %v104, %v104
  %v386 = vmin.f32 16.0, %v385
  %v387 = vmul.f32 %v386, 2.1237322e-06
  %v388 = vadd.f32 %v387, 0.00028619796
  %v389 = vmul.f32 %v386, %v388
  %v390 = vadd.f32 %v389, 0.0036580483
  %v391 = vmul.f32 %v386, %v390
  %v392 = vadd.f32 %v391, 0.05243302
  %v393 = vmul.f32 %v386, %v392
  %v394 = vadd.f32 %v393, 0.18741608
  %v395 = vmul.f32 %v386, %v394
  %v396 = vadd.f32 %v395, 1.1283791
  %v397 = vmul.f32 %v104, %v396
  %v398 = vmul.f32 %v386, 3.8918573e-05
  %v399 = vadd.f32 %v398, 0.001143296
  %v400 = vmul.f32 %v386, %v399
  %v401 = vadd.f32 %v400, 0.014752088
  %v402 = vmul.f32 %v386, %v401
  %v403 = vadd.f32 %v402, 0.112945676
  %v404 = vmul.f32 %v386, %v403
  %v405 = vadd.f32 %v404, 0.4994258
  %v406 = vmul.f32 %v386, %v405
  %v407 = vadd.f32 %v406, 1.0
  %v408 = vrcp.pop %v407
  %v409 = vmul.f32 %v407, %v408
  %v410 = vsub.f32 1.0, %v409
  %v411 = vmul.f32 %v408, %v410
  %v412 = vadd.f32 %v408, %v411
  %vm413 = vweird.f32 %v407
  %vm414 = vweird.f32 %v408
  %vm415 = vmor %vm413, %vm414
  %v416 = vsel %vm415, %v408, %v412
  %v417 = vand.u32 2147483647, %v407
  %vm418 = vcmp.eq.f32.partialorder %v417, 8.507059e+37
  %v419 = vand.u32 %v407, 2147483648
  %v420 = vor.u32 1.1754944e-38, %v419
  %v421 = vsel %vm418, %v420, %v416
  %v422 = vmul.f32 %v397, %v421
  %v423 = vmin.f32 %v422, 1.0
  %v424 = vmax.f32 %v423, -1.0
  %v425 = vadd.f32 %v144, 1.0
  %v426 = vadd.f32 %v184, 1.0
  %v427 = vadd.f32 %v224, 1.0
  %v428 = vadd.f32 %v264, 1.0
  %v429 = vadd.f32 %v304, 1.0
  %v430 = vadd.f32 %v344, 1.0
  %v431 = vadd.f32 %v384, 1.0
  %v432 = vadd.f32 %v424, 1.0
  %v433 = vmul.f32 %v89, %v425
  %v434 = vmul.f32 %v90, %v426
  %v435 = vmul.f32 %v91, %v427
  %v436 = vmul.f32 %v92, %v428
  %v437 = vmul.f32 %v93, %v429
  %v438 = vmul.f32 %v94, %v430
  %v439 = vmul.f32 %v95, %v431
  %v440 = vmul.f32 %v96, %v432
  %vm441 = vcmask 523264
  %442 = vst.msk [vmem:[%s3] sm:$0xff] %vm441, %v433
  %443 = vst.msk [vmem:[%s3 + $0x8] sm:$0xff] %vm441, %v434
  %444 = vst.msk [vmem:[%s3 + $0x10] sm:$0xff] %vm441, %v435
  %445 = vst.msk [vmem:[%s3 + $0x18] sm:$0xff] %vm441, %v436
  %446 = vst.msk [vmem:[%s3 + $0x20] sm:$0xff] %vm441, %v437
  %447 = vst.msk [vmem:[%s3 + $0x28] sm:$0xff] %vm441, %v438
  %448 = vst.msk [vmem:[%s3 + $0x30] sm:$0xff] %vm441, %v439
  %449 = vst.msk [vmem:[%s3 + $0x38] sm:$0xff] %vm441, %v440
  // Predicated region
  $region14: #{graph_bert_encoder.12} parent=0 // pred_check
    _
  $region15: #{graph_bert_encoder.12} parent=0 // pred_check_branch
    %451 = sbr.rel (0) target = $region17
  $region16: #{graph_bert_encoder.12} parent=0 // pred_region
    _
  $region17: #{graph_bert_encoder.12} parent=0 // pred_fallthru
    _
  // Predicated region
  $region18: #{graph_bert_encoder.12} parent=0 // pred_check
    _
  $region19: #{graph_bert_encoder.12} parent=0 // pred_check_branch
    %453 = sbr.rel (0) target = $region21
  $region20: #{graph_bert_encoder.12} parent=0 // pred_region
    _
  $region21: #{graph_bert_encoder.12} parent=0 // pred_fallthru
    _

// kernel: graph_bert_encoder.10
$region0: #{graph_bert_encoder.10}
  #allocation0 [shape = 'u32[]', space=smem, size = 0x4, offset = 0x4, fixed_abs, tag = 'smem constant byte address 0x4 - core index']
  #allocation1 [shape = 'u32[72,128]{1,0:T(1,128)}', space=vmem, size = 0x9000, scoped, tag = 'internal scratch']
  %s0 = inlined_call_operand.vmem [shape: f32[8,8,32], index: 0, kind: input, shape index: {}]
  %s1 = inlined_call_operand.vmem [shape: f32[8,1,8], index: 1, kind: input, shape index: {}]
  %s2 = inlined_call_operand.vmem [shape: bf16[32,96], index: 2, kind: input, shape index: {}]
  %s3 = inlined_call_operand.vmem [shape: f32[1,96], index: 3, kind: input, shape index: {}]
  %s4 = inlined_call_operand.vmem [shape: f32[8,8,32], index: 4, kind: output, shape index: {}]
  %s5 = sld [smem:[#allocation0]]
  $region49: #{graph_bert_encoder.10} parent=0
    _
  %s7 = ssub.s32 1, %s5
  %s8 = scalar_select 0, %s7, %s5
  loop: start=0, step=1, limit=10
  $region2: #{graph_bert_encoder.10} parent=0 // loop_pre_header
    _
  $region3: #{graph_bert_encoder.10} parent=0 // loop_header
    %s10 = sphi 0, %s14
    %p11 = scmp.ge.s32.totalorder %s10, 10
    %s20 = sphi 0, %s22
    %s23 = sphi 0, %s20
    %s24 = sphi 0, %s23
    %s40 = sphi 0, %s24
    %s46 = sphi 0, %s48
    %s49 = sphi 0, %s46
    %s50 = sphi 0, %s49
    %s66 = sphi 0, %s50
    %s70 = sphi 0, %s70
    %s72 = sphi 0, %s70
    %s73 = sphi 0, %s72
    %s87 = sphi 0, %s73
    %s91 = sphi 0, %s91
    %s93 = sphi 0, %s91
    %s94 = sphi 0, %s93
    %s108 = sphi 0, %s94
    %s114 = sphi 0, %s116
    %s117 = sphi 0, %s114
    %s118 = sphi 0, %s117
    %s134 = sphi 0, %s118
  $region4: #{graph_bert_encoder.10} parent=0 // loop_header_branch
    %13 = sbr.rel (%p11) target = $region8
  $region5: #{graph_bert_encoder.10} parent=0 // loop_body
    %s15 = ssub.s32 %s10, 1
    %s16 = ssub.s32 %s10, 2
    %s17 = sadd.s32 %s10, 1
    %s18 = ssub.s32 %s10, %s17
    %p19 = scmp.eq.s32.totalorder %s18, 0
    %s21 = sadd.s32 %s20, 1
    %s22 = scalar_select %p19, %s20, %s21
    %p25 = pneg %p19
    %p26 = scmp.eq.s32.totalorder %s10, 7
    %p27 = por %p25, %p26
    %p28 = scmp.ne.s32.totalorder %s20, %s23
    %p29 = scmp.eq.s32.totalorder %s10, 0
    %p30 = por %p28, %p29
    %p31 = scmp.ne.s32.totalorder %s20, %s23
    %p32 = scmp.eq.s32.totalorder %s15, 7
    %p33 = por %p31, %p32
    %p34 = scmp.ne.s32.totalorder %s23, %s24
    %p35 = scmp.eq.s32.totalorder %s15, 0
    %p36 = por %p34, %p35
    %p37 = scmp.ne.s32.totalorder %s23, %s24
    %p38 = scmp.eq.s32.totalorder %s16, 7
    %p39 = por %p37, %p38
    %p41 = scmp.ne.s32.totalorder %s24, %s40
    %p42 = scmp.eq.s32.totalorder %s16, 0
    %p43 = por %p41, %p42
    %s44 = ssub.s32 %s10, %s17
    %p45 = scmp.eq.s32.totalorder %s44, 0
    %s47 = sadd.s32 %s46, 1
    %s48 = scalar_select %p45, %s46, %s47
    %p51 = pneg %p45
    %p52 = scmp.eq.s32.totalorder %s10, 7
    %p53 = por %p51, %p52
    %p54 = scmp.ne.s32.totalorder %s46, %s49
    %p55 = scmp.eq.s32.totalorder %s10, 0
    %p56 = por %p54, %p55
    %p57 = scmp.ne.s32.totalorder %s46, %s49
    %p58 = scmp.eq.s32.totalorder %s15, 7
    %p59 = por %p57, %p58
    %p60 = scmp.ne.s32.totalorder %s49, %s50
    %p61 = scmp.eq.s32.totalorder %s15, 0
    %p62 = por %p60, %p61
    %p63 = scmp.ne.s32.totalorder %s49, %s50
    %p64 = scmp.eq.s32.totalorder %s16, 7
    %p65 = por %p63, %p64
    %p67 = scmp.ne.s32.totalorder %s50, %s66
    %p68 = scmp.eq.s32.totalorder %s16, 0
    %p69 = por %p67, %p68
    %s71 = sadd.s32 %s70, 1
    %p74 = scmp.eq.s32.totalorder %s10, 7
    %p75 = scmp.ne.s32.totalorder %s70, %s72
    %p76 = scmp.eq.s32.totalorder %s10, 0
    %p77 = por %p75, %p76
    %p78 = scmp.ne.s32.totalorder %s70, %s72
    %p79 = scmp.eq.s32.totalorder %s15, 7
    %p80 = por %p78, %p79
    %p81 = scmp.ne.s32.totalorder %s72, %s73
    %p82 = scmp.eq.s32.totalorder %s15, 0
    %p83 = por %p81, %p82
    %p84 = scmp.ne.s32.totalorder %s72, %s73
    %p85 = scmp.eq.s32.totalorder %s16, 7
    %p86 = por %p84, %p85
    %p88 = scmp.ne.s32.totalorder %s73, %s87
    %p89 = scmp.eq.s32.totalorder %s16, 0
    %p90 = por %p88, %p89
    %s92 = sadd.s32 %s91, 1
    %p95 = scmp.eq.s32.totalorder %s10, 7
    %p96 = scmp.ne.s32.totalorder %s91, %s93
    %p97 = scmp.eq.s32.totalorder %s10, 0
    %p98 = por %p96, %p97
    %p99 = scmp.ne.s32.totalorder %s91, %s93
    %p100 = scmp.eq.s32.totalorder %s15, 7
    %p101 = por %p99, %p100
    %p102 = scmp.ne.s32.totalorder %s93, %s94
    %p103 = scmp.eq.s32.totalorder %s15, 0
    %p104 = por %p102, %p103
    %p105 = scmp.ne.s32.totalorder %s93, %s94
    %p106 = scmp.eq.s32.totalorder %s16, 7
    %p107 = por %p105, %p106
    %p109 = scmp.ne.s32.totalorder %s94, %s108
    %p110 = scmp.eq.s32.totalorder %s16, 0
    %p111 = por %p109, %p110
    %s112 = ssub.s32 %s10, %s17
    %p113 = scmp.eq.s32.totalorder %s112, 0
    %s115 = sadd.s32 %s114, 1
    %s116 = scalar_select %p113, %s114, %s115
    %p119 = pneg %p113
    %p120 = scmp.eq.s32.totalorder %s10, 7
    %p121 = por %p119, %p120
    %p122 = scmp.ne.s32.totalorder %s114, %s117
    %p123 = scmp.eq.s32.totalorder %s10, 0
    %p124 = por %p122, %p123
    %p125 = scmp.ne.s32.totalorder %s114, %s117
    %p126 = scmp.eq.s32.totalorder %s15, 7
    %p127 = por %p125, %p126
    %p128 = scmp.ne.s32.totalorder %s117, %s118
    %p129 = scmp.eq.s32.totalorder %s15, 0
    %p130 = por %p128, %p129
    %p131 = scmp.ne.s32.totalorder %s117, %s118
    %p132 = scmp.eq.s32.totalorder %s16, 7
    %p133 = por %p131, %p132
    %p135 = scmp.ne.s32.totalorder %s118, %s134
    %p136 = scmp.eq.s32.totalorder %s16, 0
    %p137 = por %p135, %p136
    %p138 = scmp.le.s32.totalorder 1, %s10
    %p139 = scmp.lt.s32.totalorder %s10, 9
    %p140 = pnand %p138, %p139
    %p141 = pneg %p140
    // Predicated region
    $region9: #{graph_bert_encoder.10} parent=5 // pred_check
      _
    $region10: #{graph_bert_encoder.10} parent=5 // pred_check_branch
      %143 = sbr.rel (%p140) target = $region12
    $region11: #{graph_bert_encoder.10} parent=5 // pred_region
      %s144 = ssub.s32 %s10, 1
      // Predicated region
      $region13: #{graph_bert_encoder.10} parent=11 // pred_check
        %p145 = pneg %p83
      $region14: #{graph_bert_encoder.10} parent=11 // pred_check_branch
        %147 = sbr.rel (%p145) target = $region16
      $region15: #{graph_bert_encoder.10} parent=11 // pred_region
        _
      $region16: #{graph_bert_encoder.10} parent=11 // pred_fallthru
        _
      // Predicated region
      $region17: #{graph_bert_encoder.10} parent=11 // pred_check
        %p148 = pneg %p104
      $region18: #{graph_bert_encoder.10} parent=11 // pred_check_branch
        %150 = sbr.rel (%p148) target = $region20
      $region19: #{graph_bert_encoder.10} parent=11 // pred_region
        _
      $region20: #{graph_bert_encoder.10} parent=11 // pred_fallthru
        _
    $region12: #{graph_bert_encoder.10} parent=5 // pred_fallthru
      _
    %p151 = scmp.lt.s32.totalorder %s10, 8
    // Predicated region
    $region21: #{graph_bert_encoder.10} parent=5 // pred_check
      %p152 = pneg %p151
    $region22: #{graph_bert_encoder.10} parent=5 // pred_check_branch
      %154 = sbr.rel (%p152) target = $region24
    $region23: #{graph_bert_encoder.10} parent=5 // pred_region
      // Predicated region
      $region25: #{graph_bert_encoder.10} parent=23 // pred_check
        %p155 = pneg %p30
      $region26: #{graph_bert_encoder.10} parent=23 // pred_check_branch
        %157 = sbr.rel (%p155) target = $region28
      $region27: #{graph_bert_encoder.10} parent=23 // pred_region
        %p158 = scmp.lt.s32.totalorder %s10, 7
        %s159 = scalar_select %p158, %s10, 7
        %s160 = smul.addr %s159, 8
        %s161 = scalar_lea.vmem %s0, %s160
      $region28: #{graph_bert_encoder.10} parent=23 // pred_fallthru
        _
      // Predicated region
      $region29: #{graph_bert_encoder.10} parent=23 // pred_check
        %p162 = pneg %p56
      $region30: #{graph_bert_encoder.10} parent=23 // pred_check_branch
        %164 = sbr.rel (%p162) target = $region32
      $region31: #{graph_bert_encoder.10} parent=23 // pred_region
        %p165 = scmp.lt.s32.totalorder %s10, 7
        %s166 = scalar_select %p165, %s10, 7
        %s167 = scalar_lea.vmem %s1, %s166
      $region32: #{graph_bert_encoder.10} parent=23 // pred_fallthru
        _
    $region24: #{graph_bert_encoder.10} parent=5 // pred_fallthru
      _
    %p168 = scmp.le.s32.totalorder 1, %s10
    %p169 = scmp.lt.s32.totalorder %s10, 9
    %p170 = pnand %p168, %p169
    %p171 = pneg %p170
    // Predicated region
    $region33: #{graph_bert_encoder.10} parent=5 // pred_check
      _
    $region34: #{graph_bert_encoder.10} parent=5 // pred_check_branch
      %173 = sbr.rel (%p170) target = $region36
    $region35: #{graph_bert_encoder.10} parent=5 // pred_region
      %s174 = ssub.s32 %s10, 1
      %p175 = scmp.lt.s32.totalorder %s15, 7
      %s176 = scalar_select %p175, %s15, 7
      %s177 = smul.addr %s176, 8
      %s178 = scalar_lea.vmem %s0, %s177
      %p179 = pneg %p36
      %p180 = pneg %p33
      %p181 = scmp.lt.s32.totalorder %s15, 7
      %s182 = scalar_select %p181, %s15, 7
      %s183 = scalar_lea.vmem %s1, %s182
      %p184 = pneg %p62
      %p185 = pneg %p59
      %p186 = pneg %p83
      %p187 = pneg %p80
      %p188 = pneg %p104
      %p189 = pneg %p101
      %p190 = pneg %p130
      %p191 = pneg %p127
      %p192 = scmp.lt.s32.totalorder %s15, 7
      %s193 = scalar_select %p192, %s15, 7
      %s194 = smul.addr %s193, 8
      %s195 = scalar_lea.vmem %s4, %s194
      %p196 = scmp.lt.s32.totalorder %s15, 7
      %s197 = scalar_select %p196, %s15, 7
      %s198 = smul.addr %s197, 8
      %s199 = scalar_lea.vmem %s0, %s198
      %p200 = scmp.lt.s32.totalorder %s15, 7
      %s201 = scalar_select %p200, %s15, 7
      %s202 = scalar_lea.vmem %s1, %s201
      %p203 = scmp.lt.s32.totalorder %s15, 7
      %s204 = scalar_select %p203, %s15, 7
      %s205 = smul.addr %s204, 8
      %s206 = scalar_lea.vmem %s4, %s205
      %v208 = vld [vmem:[%s199] sm:$0xff]
      %v209 = vpack.c.bf16 %v208, %v208
      %v210 = vld [vmem:[%s2] sm:$0xf]
      %v211 = vld [vmem:[%s2 + $0x4] sm:$0xf]
      %v212 = vld [vmem:[%s2 + $0x8] sm:$0xf]
      %v213 = vld [vmem:[%s2 + $0xc] sm:$0xf]
      %v214 = vld [vmem:[%s3] sm:$0x1]
      %v216 = vperm.slane %v214, 0
      %v222 = vunpack.c.l.b16 %v210
      %v223 = vunpack.c.l.b16 %v211
      %v224 = vunpack.c.l.b16 %v212
      %v225 = vunpack.c.l.b16 %v213
      %v226 = vpack.c.b16 %v223, %v222
      %v227 = vpack.c.b16 %v225, %v224
      %vm230 = vcmask 261120
      %v232 = vsel %vm230, %v209, 0
      %234 = vmatpush.bf16.msra.mxu0 0
      %235 = vmatpush.bf16.msra.mxu0 0
      %236 = vmatpush.bf16.msra.mxu0 0
      %237 = vmatpush.bf16.msra.mxu0 0
      %238 = vmatpush.bf16.msra.mxu0 0
      %239 = vmatpush.bf16.msra.mxu0 0
      %240 = vmatpush.bf16.msra.mxu0 %v227
      %241 = vmatpush.bf16.msra.mxu0 %v226
      %242 = vmatmul.bf16.gmra.mxu0 %v232
      %v243 = vpop.f32.mrf.mxu0
      %v244 = vadd.f32 %v216, %v243
      %v245 = vpop.f32.mrf.mxu0
      %246 = vdwg.mxu0
      %v247 = vld [vmem:[%s202] sm:$0x1]
      %v248 = vpack.c.bf16 %v244, %v244
      %250 = vrot.lane.b32.xlu0 %v248, 96
      %v251 = vpop.permute.xlu0 %250
      %vm252 = vcmask 130048
      %v254 = vsel %vm252, %v248, 0
      %v257 = vsel %vm252, %v251, 0
      %259 = vmatpush.bf16.xpose.msra.mxu0 0
      %260 = vmatpush.bf16.xpose.msra.mxu0 0
      %261 = vmatpush.bf16.xpose.msra.mxu0 0
      %262 = vmatpush.bf16.xpose.msra.mxu0 0
      %263 = vmatpush.bf16.xpose.msra.mxu0 0
      %264 = vmatpush.bf16.xpose.msra.mxu0 0
      %265 = vmatpush.bf16.xpose.msra.mxu0 0
      %266 = vmatpush.bf16.xpose.msra.mxu0 %v257
      %267 = vmatmul.bf16.gmra.mxu0 %v254
      %v268 = vpop.f32.mrf.mxu0
      %v269 = vadd.f32 0.0, %v268
      %v270 = vpop.f32.mrf.mxu0
      %271 = vdwg.mxu0
      %v272 = vmul.f32 %v269, 0.25
      %v274 = vperm.slane %v247, 0
      %v276 = vadd.f32 %v272, %v274
      %vm277 = vcmask 64512
      %v278 = vsel %vm277, %v276, -inf
      %279 = vmax.xlane.f32.xlu0 %v278
      %v280 = vpop.xlane.xlu0 %279
      %v281 = vsub.f32 %v276, %v280
      %v282 = vmul.f32 %v281, 1.442695
      %v283 = vpow.pop %v282
      %v284 = vsel %vm277, %v283, 0.0
      %285 = vadd.xlane.f32.xlu0 %v284
      %v286 = vpop.xlane.xlu0 %285
      %v287 = vrcp.pop %v286
      %v288 = vmul.f32 %v283, %v287
      %v289 = vpack.c.bf16 %v288, %v288
      %290 = vrot.lane.b32.xlu0 %v248, 64
      %v291 = vpop.permute.xlu0 %290
      %v293 = vsel %vm277, %v289, 0
      %vm295 = vcmask 1043456
      %v297 = vsel %vm295, %v291, 0
      %299 = vmatpush.bf16.msra.mxu0 0
      %300 = vmatpush.bf16.msra.mxu0 0
      %301 = vmatpush.bf16.msra.mxu0 0
      %302 = vmatpush.bf16.msra.mxu0 0
      %303 = vmatpush.bf16.msra.mxu0 0
      %304 = vmatpush.bf16.msra.mxu0 0
      %305 = vmatpush.bf16.msra.mxu0 0
      %306 = vmatpush.bf16.msra.mxu0 %v297
      %307 = vmatmul.bf16.gmra.mxu0 %v293
      %v308 = vpop.f32.mrf.mxu0
      %v309 = vadd.f32 0.0, %v308
      %v310 = vpop.f32.mrf.mxu0
      %311 = vdwg.mxu0
      %312 = vrot.lane.b32.xlu0 %v248, 112
      %v313 = vpop.permute.xlu0 %312
      %314 = vrot.lane.b32.xlu0 %v248, 80
      %v315 = vpop.permute.xlu0 %314
      %v317 = vsel %vm252, %v313, 0
      %v320 = vsel %vm252, %v315, 0
      %322 = vmatpush.bf16.xpose.msra.mxu0 0
      %323 = vmatpush.bf16.xpose.msra.mxu0 0
      %324 = vmatpush.bf16.xpose.msra.mxu0 0
      %325 = vmatpush.bf16.xpose.msra.mxu0 0
      %326 = vmatpush.bf16.xpose.msra.mxu0 0
      %327 = vmatpush.bf16.xpose.msra.mxu0 0
      %328 = vmatpush.bf16.xpose.msra.mxu0 0
      %329 = vmatpush.bf16.xpose.msra.mxu0 %v320
      %330 = vmatmul.bf16.gmra.mxu0 %v317
      %v331 = vpop.f32.mrf.mxu0
      %v332 = vadd.f32 0.0, %v331
      %v333 = vpop.f32.mrf.mxu0
      %334 = vdwg.mxu0
      %v335 = vmul.f32 %v332, 0.25
      %v336 = vadd.f32 %v335, %v274
      %v337 = vsel %vm277, %v336, -inf
      %338 = vmax.xlane.f32.xlu0 %v337
      %v339 = vpop.xlane.xlu0 %338
      %v340 = vsub.f32 %v336, %v339
      %v341 = vmul.f32 %v340, 1.442695
      %v342 = vpow.pop %v341
      %v343 = vsel %vm277, %v342, 0.0
      %344 = vadd.xlane.f32.xlu0 %v343
      %v345 = vpop.xlane.xlu0 %344
      %v346 = vrcp.pop %v345
      %v347 = vmul.f32 %v342, %v346
      %v348 = vpack.c.bf16 %v347, %v347
      %349 = vrot.lane.b32.xlu0 %v248, 48
      %v350 = vpop.permute.xlu0 %349
      %v352 = vsel %vm277, %v348, 0
      %v355 = vsel %vm295, %v350, 0
      %357 = vmatpush.bf16.msra.mxu0 0
      %358 = vmatpush.bf16.msra.mxu0 0
      %359 = vmatpush.bf16.msra.mxu0 0
      %360 = vmatpush.bf16.msra.mxu0 0
      %361 = vmatpush.bf16.msra.mxu0 0
      %362 = vmatpush.bf16.msra.mxu0 0
      %363 = vmatpush.bf16.msra.mxu0 0
      %364 = vmatpush.bf16.msra.mxu0 %v355
      %365 = vmatmul.bf16.gmra.mxu0 %v352
      %v366 = vpop.f32.mrf.mxu0
      %v367 = vadd.f32 0.0, %v366
      %v368 = vpop.f32.mrf.mxu0
      %369 = vdwg.mxu0
      %371 = vrot.lane.b32.xlu0 %v367, 16
      %v372 = vpop.permute.xlu0 %371
      %v374 = vsel %vm252, %v309, %v372
      %375 = vst.msk [vmem:[%s206] sm:$0xff] %vm230, %v374
      %p376 = scmp.lt.s32.totalorder %s15, 7
      %s377 = scalar_select %p376, %s15, 7
      %s378 = smul.addr %s377, 8
      %s379 = scalar_lea.vmem %s4, %s378
      // Predicated region
      $region37: #{graph_bert_encoder.10} parent=35 // pred_check
        %p380 = pneg %p127
      $region38: #{graph_bert_encoder.10} parent=35 // pred_check_branch
        %382 = sbr.rel (%p380) target = $region40
      $region39: #{graph_bert_encoder.10} parent=35 // pred_region
        _
      $region40: #{graph_bert_encoder.10} parent=35 // pred_fallthru
        _
    $region36: #{graph_bert_encoder.10} parent=5 // pred_fallthru
      _
    %p383 = scmp.le.s32.totalorder 2, %s10
    // Predicated region
    $region41: #{graph_bert_encoder.10} parent=5 // pred_check
      %p384 = pneg %p383
    $region42: #{graph_bert_encoder.10} parent=5 // pred_check_branch
      %386 = sbr.rel (%p384) target = $region44
    $region43: #{graph_bert_encoder.10} parent=5 // pred_region
      %s387 = ssub.s32 %s10, 2
      // Predicated region
      $region45: #{graph_bert_encoder.10} parent=43 // pred_check
        %p388 = pneg %p133
      $region46: #{graph_bert_encoder.10} parent=43 // pred_check_branch
        %390 = sbr.rel (%p388) target = $region48
      $region47: #{graph_bert_encoder.10} parent=43 // pred_region
        %p391 = scmp.lt.s32.totalorder %s16, 7
        %s392 = scalar_select %p391, %s16, 7
        %s393 = smul.addr %s392, 8
        %s394 = scalar_lea.vmem %s4, %s393
      $region48: #{graph_bert_encoder.10} parent=43 // pred_fallthru
        _
    $region44: #{graph_bert_encoder.10} parent=5 // pred_fallthru
      _
  $region6: #{graph_bert_encoder.10} parent=0 // loop_footer
    %s14 = sadd.s32 1, %s10
  $region7: #{graph_bert_encoder.10} parent=0 // loop_footer_branch
    %9 = sbr.rel target = $region3
  $region8: #{graph_bert_encoder.10} parent=0 // loop_exit
    _

// kernel: graph_bert_encoder.15
$region0: #{graph_bert_encoder.15}
  #allocation0 [shape = 'u32[]', space=smem, size = 0x4, offset = 0x4, fixed_abs, tag = 'smem constant byte address 0x4 - core index']
  #allocation1 [shape = 'u32[72,128]{1,0:T(1,128)}', space=vmem, size = 0x9000, scoped, tag = 'internal scratch']
  %s0 = inlined_call_operand.vmem [shape: f32[8,8,32], index: 0, kind: input, shape index: {}, may-alias: {0,2}]
  %s1 = inlined_call_operand.vmem [shape: f32[2,1,32], index: 1, kind: input, shape index: {}]
  %s2 = inlined_call_operand.vmem [shape: f32[8,8,32], index: 2, kind: output, shape index: {}, may-alias: {0,2}]
  %s3 = sld [smem:[#allocation0]]
  $region41: #{graph_bert_encoder.15} parent=0
    _
  %s5 = ssub.s32 1, %s3
  %s6 = scalar_select 0, %s5, %s3
  loop: start=0, step=1, limit=4
  $region2: #{graph_bert_encoder.15} parent=0 // loop_pre_header
    _
  $region3: #{graph_bert_encoder.15} parent=0 // loop_header
    %s8 = sphi 0, %s12
    %p9 = scmp.ge.s32.totalorder %s8, 4
    %s20 = sphi 0, %s22
    %s23 = sphi 0, %s20
    %s24 = sphi 0, %s23
    %s40 = sphi 0, %s24
    %s46 = sphi 0, %s48
    %s49 = sphi 0, %s46
    %s50 = sphi 0, %s49
    %s66 = sphi 0, %s50
    %s74 = sphi 0, %s76
    %s77 = sphi 0, %s74
    %s78 = sphi 0, %s77
    %s94 = sphi 0, %s78
  $region4: #{graph_bert_encoder.15} parent=0 // loop_header_branch
    %11 = sbr.rel (%p9) target = $region8
  $region5: #{graph_bert_encoder.15} parent=0 // loop_body
    %s13 = ssub.s32 %s8, 1
    %s14 = ssub.s32 %s8, 2
    %s15 = sadd.s32 %s8, 1
    %s16 = smul.u32 %s8, 4
    %s17 = smul.u32 %s15, 4
    %s18 = ssub.s32 %s16, %s17
    %p19 = scmp.eq.s32.totalorder %s18, 0
    %s21 = sadd.s32 %s20, 1
    %s22 = scalar_select %p19, %s20, %s21
    %p25 = pneg %p19
    %p26 = scmp.eq.s32.totalorder %s8, 1
    %p27 = por %p25, %p26
    %p28 = scmp.ne.s32.totalorder %s20, %s23
    %p29 = scmp.eq.s32.totalorder %s8, 0
    %p30 = por %p28, %p29
    %p31 = scmp.ne.s32.totalorder %s20, %s23
    %p32 = scmp.eq.s32.totalorder %s13, 1
    %p33 = por %p31, %p32
    %p34 = scmp.ne.s32.totalorder %s23, %s24
    %p35 = scmp.eq.s32.totalorder %s13, 0
    %p36 = por %p34, %p35
    %p37 = scmp.ne.s32.totalorder %s23, %s24
    %p38 = scmp.eq.s32.totalorder %s14, 1
    %p39 = por %p37, %p38
    %p41 = scmp.ne.s32.totalorder %s24, %s40
    %p42 = scmp.eq.s32.totalorder %s14, 0
    %p43 = por %p41, %p42
    %s44 = ssub.s32 %s8, %s15
    %p45 = scmp.eq.s32.totalorder %s44, 0
    %s47 = sadd.s32 %s46, 1
    %s48 = scalar_select %p45, %s46, %s47
    %p51 = pneg %p45
    %p52 = scmp.eq.s32.totalorder %s8, 1
    %p53 = por %p51, %p52
    %p54 = scmp.ne.s32.totalorder %s46, %s49
    %p55 = scmp.eq.s32.totalorder %s8, 0
    %p56 = por %p54, %p55
    %p57 = scmp.ne.s32.totalorder %s46, %s49
    %p58 = scmp.eq.s32.totalorder %s13, 1
    %p59 = por %p57, %p58
    %p60 = scmp.ne.s32.totalorder %s49, %s50
    %p61 = scmp.eq.s32.totalorder %s13, 0
    %p62 = por %p60, %p61
    %p63 = scmp.ne.s32.totalorder %s49, %s50
    %p64 = scmp.eq.s32.totalorder %s14, 1
    %p65 = por %p63, %p64
    %p67 = scmp.ne.s32.totalorder %s50, %s66
    %p68 = scmp.eq.s32.totalorder %s14, 0
    %p69 = por %p67, %p68
    %s70 = smul.u32 %s8, 4
    %s71 = smul.u32 %s15, 4
    %s72 = ssub.s32 %s70, %s71
    %p73 = scmp.eq.s32.totalorder %s72, 0
    %s75 = sadd.s32 %s74, 1
    %s76 = scalar_select %p73, %s74, %s75
    %p79 = pneg %p73
    %p80 = scmp.eq.s32.totalorder %s8, 1
    %p81 = por %p79, %p80
    %p82 = scmp.ne.s32.totalorder %s74, %s77
    %p83 = scmp.eq.s32.totalorder %s8, 0
    %p84 = por %p82, %p83
    %p85 = scmp.ne.s32.totalorder %s74, %s77
    %p86 = scmp.eq.s32.totalorder %s13, 1
    %p87 = por %p85, %p86
    %p88 = scmp.ne.s32.totalorder %s77, %s78
    %p89 = scmp.eq.s32.totalorder %s13, 0
    %p90 = por %p88, %p89
    %p91 = scmp.ne.s32.totalorder %s77, %s78
    %p92 = scmp.eq.s32.totalorder %s14, 1
    %p93 = por %p91, %p92
    %p95 = scmp.ne.s32.totalorder %s78, %s94
    %p96 = scmp.eq.s32.totalorder %s14, 0
    %p97 = por %p95, %p96
    %p98 = scmp.le.s32.totalorder 1, %s8
    %p99 = scmp.lt.s32.totalorder %s8, 3
    %p100 = pnand %p98, %p99
    %p101 = pneg %p100
    // Predicated region
    $region9: #{graph_bert_encoder.15} parent=5 // pred_check
      _
    $region10: #{graph_bert_encoder.15} parent=5 // pred_check_branch
      %103 = sbr.rel (%p100) target = $region12
    $region11: #{graph_bert_encoder.15} parent=5 // pred_region
      %s104 = ssub.s32 %s8, 1
    $region12: #{graph_bert_encoder.15} parent=5 // pred_fallthru
      _
    %p105 = scmp.lt.s32.totalorder %s8, 2
    // Predicated region
    $region13: #{graph_bert_encoder.15} parent=5 // pred_check
      %p106 = pneg %p105
    $region14: #{graph_bert_encoder.15} parent=5 // pred_check_branch
      %108 = sbr.rel (%p106) target = $region16
    $region15: #{graph_bert_encoder.15} parent=5 // pred_region
      // Predicated region
      $region17: #{graph_bert_encoder.15} parent=15 // pred_check
        %p109 = pneg %p30
      $region18: #{graph_bert_encoder.15} parent=15 // pred_check_branch
        %111 = sbr.rel (%p109) target = $region20
      $region19: #{graph_bert_encoder.15} parent=15 // pred_region
        %s112 = smul.u32 %s8, 4
        %p113 = scmp.lt.s32.totalorder %s112, 7
        %s114 = scalar_select %p113, %s112, 7
        %s115 = smul.addr %s114, 8
        %s116 = scalar_lea.vmem %s0, %s115
        %s117 = smul.u32 %s8, 4
      $region20: #{graph_bert_encoder.15} parent=15 // pred_fallthru
        _
      // Predicated region
      $region21: #{graph_bert_encoder.15} parent=15 // pred_check
        %p118 = pneg %p56
      $region22: #{graph_bert_encoder.15} parent=15 // pred_check_branch
        %120 = sbr.rel (%p118) target = $region24
      $region23: #{graph_bert_encoder.15} parent=15 // pred_region
        %p121 = scmp.lt.s32.totalorder %s8, 1
        %s122 = scalar_select %p121, %s8, 1
        %s123 = scalar_lea.vmem %s1, %s122
      $region24: #{graph_bert_encoder.15} parent=15 // pred_fallthru
        _
    $region16: #{graph_bert_encoder.15} parent=5 // pred_fallthru
      _
    %p124 = scmp.le.s32.totalorder 1, %s8
    %p125 = scmp.lt.s32.totalorder %s8, 3
    %p126 = pnand %p124, %p125
    %p127 = pneg %p126
    // Predicated region
    $region25: #{graph_bert_encoder.15} parent=5 // pred_check
      _
    $region26: #{graph_bert_encoder.15} parent=5 // pred_check_branch
      %129 = sbr.rel (%p126) target = $region28
    $region27: #{graph_bert_encoder.15} parent=5 // pred_region
      %s130 = ssub.s32 %s8, 1
      %s131 = smul.u32 %s13, 4
      %p132 = scmp.lt.s32.totalorder %s131, 7
      %s133 = scalar_select %p132, %s131, 7
      %s134 = smul.addr %s133, 8
      %s135 = scalar_lea.vmem %s0, %s134
      %p136 = pneg %p36
      %p137 = pneg %p33
      %p138 = scmp.lt.s32.totalorder %s13, 1
      %s139 = scalar_select %p138, %s13, 1
      %s140 = scalar_lea.vmem %s1, %s139
      %p141 = pneg %p62
      %p142 = pneg %p59
      %p143 = pneg %p90
      %p144 = pneg %p87
      %s145 = smul.u32 %s13, 4
      %p146 = scmp.lt.s32.totalorder %s145, 7
      %s147 = scalar_select %p146, %s145, 7
      %s148 = smul.addr %s147, 8
      %s149 = scalar_lea.vmem %s2, %s148
      %s150 = smul.u32 %s13, 4
      %p151 = scmp.lt.s32.totalorder %s150, 7
      %s152 = scalar_select %p151, %s150, 7
      %s153 = smul.addr %s152, 8
      %s154 = scalar_lea.vmem %s0, %s153
      %s155 = smul.u32 %s13, 4
      %p156 = scmp.lt.s32.totalorder %s13, 1
      %s157 = scalar_select %p156, %s13, 1
      %s158 = scalar_lea.vmem %s1, %s157
      %s159 = smul.u32 %s13, 4
      %p160 = scmp.lt.s32.totalorder %s159, 7
      %s161 = scalar_select %p160, %s159, 7
      %s162 = smul.addr %s161, 8
      %s163 = scalar_lea.vmem %s2, %s162
      %s164 = smul.u32 %s13, 4
      %v165 = vld [vmem:[%s154] sm:$0xff]
      %v166 = vld [vmem:[%s158] sm:$0x1]
      %v167 = vlaneseq
      %v168 = vshrl.u32 %v167, 7
      %vm169 = vcmp.eq.s32.totalorder %v168, 0
      %v171 = vperm.slane %v166, 0
      %v173 = vsel %vm169, %v171, %v165
      %vm174 = vcmask 261120
      %175 = vst.msk [vmem:[%s163] sm:$0xff] %vm174, %v173
      %s176 = smul.u32 %s13, 4
      %p177 = scmp.lt.s32.totalorder %s176, 7
      %s178 = scalar_select %p177, %s176, 7
      %s179 = smul.addr %s178, 8
      %s180 = scalar_lea.vmem %s2, %s179
      // Predicated region
      $region29: #{graph_bert_encoder.15} parent=27 // pred_check
        %p181 = pneg %p87
      $region30: #{graph_bert_encoder.15} parent=27 // pred_check_branch
        %183 = sbr.rel (%p181) target = $region32
      $region31: #{graph_bert_encoder.15} parent=27 // pred_region
        %s184 = smul.u32 %s13, 4
      $region32: #{graph_bert_encoder.15} parent=27 // pred_fallthru
        _
    $region28: #{graph_bert_encoder.15} parent=5 // pred_fallthru
      _
    %p185 = scmp.le.s32.totalorder 2, %s8
    // Predicated region
    $region33: #{graph_bert_encoder.15} parent=5 // pred_check
      %p186 = pneg %p185
    $region34: #{graph_bert_encoder.15} parent=5 // pred_check_branch
      %188 = sbr.rel (%p186) target = $region36
    $region35: #{graph_bert_encoder.15} parent=5 // pred_region
      %s189 = ssub.s32 %s8, 2
      // Predicated region
      $region37: #{graph_bert_encoder.15} parent=35 // pred_check
        %p190 = pneg %p93
      $region38: #{graph_bert_encoder.15} parent=35 // pred_check_branch
        %192 = sbr.rel (%p190) target = $region40
      $region39: #{graph_bert_encoder.15} parent=35 // pred_region
        %s193 = smul.u32 %s14, 4
        %p194 = scmp.lt.s32.totalorder %s193, 7
        %s195 = scalar_select %p194, %s193, 7
        %s196 = smul.addr %s195, 8
        %s197 = scalar_lea.vmem %s2, %s196
      $region40: #{graph_bert_encoder.15} parent=35 // pred_fallthru
        _
    $region36: #{graph_bert_encoder.15} parent=5 // pred_fallthru
      _
  $region6: #{graph_bert_encoder.15} parent=0 // loop_footer
    %s12 = sadd.s32 1, %s8
  $region7: #{graph_bert_encoder.15} parent=0 // loop_footer_branch
    %7 = sbr.rel target = $region3
  $region8: #{graph_bert_encoder.15} parent=0 // loop_exit
    _

// kernel: graph_bert_encoder.19
$region0: #{graph_bert_encoder.19}
  #allocation0 [shape = 'u32[]', space=smem, size = 0x4, offset = 0x4, fixed_abs, tag = 'smem constant byte address 0x4 - core index']
  #allocation1 [shape = 'u32[72,128]{1,0:T(1,128)}', space=vmem, size = 0x9000, scoped, tag = 'internal scratch']
  %s0 = inlined_call_operand.vmem [shape: f32[64,64], index: 0, kind: input, shape index: {}]
  %s1 = inlined_call_operand.vmem [shape: bf16[64,32], index: 1, kind: input, shape index: {}]
  %s2 = inlined_call_operand.vmem [shape: f32[1,32], index: 2, kind: input, shape index: {}]
  %s3 = inlined_call_operand.vmem [shape: f32[64,32], index: 3, kind: input, shape index: {}]
  %s4 = inlined_call_operand.vmem [shape: f32[1,32], index: 4, kind: input, shape index: {}]
  %s5 = inlined_call_operand.vmem [shape: f32[1,32], index: 5, kind: input, shape index: {}]
  %s6 = inlined_call_operand.hbm [shape: f32[64,32], index: 6, kind: output, shape index: {}]
  %s7 = sld [smem:[#allocation0]]
  $region34: #{graph_bert_encoder.19} parent=0
    _
  %s9 = ssub.s32 1, %s7
  %s10 = scalar_select 0, %s9, %s7
  $region1: #{graph_bert_encoder.19} parent=0
    #allocation2 [shape = 'u8[32768]{0}', space=vmem, size = 0x8000, scoped, tag = 'output window, operand 0, single buffered']
    #allocation3 [shape = 's32[1]{0}', space=sflag, size = 0x4, scoped, tag = 'scoped memory for graph_bert_encoder.19']
    %11 = vsyncpa [#allocation3], 0
    // Predicated region
    $region2: #{graph_bert_encoder.19} parent=1 // pred_check
      _
    $region3: #{graph_bert_encoder.19} parent=1 // pred_check_branch
      %13 = sbr.rel (0) target = $region5
    $region4: #{graph_bert_encoder.19} parent=1 // pred_region
      _
    $region5: #{graph_bert_encoder.19} parent=1 // pred_fallthru
      _
    // Predicated region
    $region6: #{graph_bert_encoder.19} parent=1 // pred_check
      _
    $region7: #{graph_bert_encoder.19} parent=1 // pred_check_branch
      %15 = sbr.rel (0) target = $region9
    $region8: #{graph_bert_encoder.19} parent=1 // pred_region
      _
    $region9: #{graph_bert_encoder.19} parent=1 // pred_fallthru
      _
    // Predicated region
    $region10: #{graph_bert_encoder.19} parent=1 // pred_check
      _
    $region11: #{graph_bert_encoder.19} parent=1 // pred_check_branch
      %17 = sbr.rel (0) target = $region13
    $region12: #{graph_bert_encoder.19} parent=1 // pred_region
      _
    $region13: #{graph_bert_encoder.19} parent=1 // pred_fallthru
      _
    // Predicated region
    $region14: #{graph_bert_encoder.19} parent=1 // pred_check
      _
    $region15: #{graph_bert_encoder.19} parent=1 // pred_check_branch
      %19 = sbr.rel (0) target = $region17
    $region16: #{graph_bert_encoder.19} parent=1 // pred_region
      _
    $region17: #{graph_bert_encoder.19} parent=1 // pred_fallthru
      _
    // Predicated region
    $region18: #{graph_bert_encoder.19} parent=1 // pred_check
      _
    $region19: #{graph_bert_encoder.19} parent=1 // pred_check_branch
      %21 = sbr.rel (0) target = $region21
    $region20: #{graph_bert_encoder.19} parent=1 // pred_region
      _
    $region21: #{graph_bert_encoder.19} parent=1 // pred_fallthru
      _
    // Predicated region
    $region22: #{graph_bert_encoder.19} parent=1 // pred_check
      _
    $region23: #{graph_bert_encoder.19} parent=1 // pred_check_branch
      %23 = sbr.rel (0) target = $region25
    $region24: #{graph_bert_encoder.19} parent=1 // pred_region
      _
    $region25: #{graph_bert_encoder.19} parent=1 // pred_fallthru
      _
    %v25 = vld [vmem:[%s0] sm:$0xff]
    %v26 = vld [vmem:[%s0 + $0x8] sm:$0xff]
    %v27 = vld [vmem:[%s0 + $0x10] sm:$0xff]
    %v28 = vld [vmem:[%s0 + $0x18] sm:$0xff]
    %v29 = vld [vmem:[%s0 + $0x20] sm:$0xff]
    %v30 = vld [vmem:[%s0 + $0x28] sm:$0xff]
    %v31 = vld [vmem:[%s0 + $0x30] sm:$0xff]
    %v32 = vld [vmem:[%s0 + $0x38] sm:$0xff]
    %v33 = vpack.c.bf16 %v26, %v25
    %v34 = vpack.c.bf16 %v28, %v27
    %v35 = vpack.c.bf16 %v30, %v29
    %v36 = vpack.c.bf16 %v32, %v31
    %v37 = vld [vmem:[%s1] sm:$0xf]
    %v38 = vld [vmem:[%s1 + $0x4] sm:$0xf]
    %v39 = vld [vmem:[%s1 + $0x8] sm:$0xf]
    %v40 = vld [vmem:[%s1 + $0xc] sm:$0xf]
    %v41 = vld [vmem:[%s1 + $0x10] sm:$0xf]
    %v42 = vld [vmem:[%s1 + $0x14] sm:$0xf]
    %v43 = vld [vmem:[%s1 + $0x18] sm:$0xf]
    %v44 = vld [vmem:[%s1 + $0x1c] sm:$0xf]
    %v45 = vld [vmem:[%s2] sm:$0x1]
    %v47 = vperm.slane %v45, 0
    %v57 = vunpack.c.l.b16 %v37
    %v58 = vunpack.c.l.b16 %v38
    %v59 = vunpack.c.l.b16 %v39
    %v60 = vunpack.c.l.b16 %v40
    %v61 = vunpack.c.l.b16 %v41
    %v62 = vunpack.c.l.b16 %v42
    %v63 = vunpack.c.l.b16 %v43
    %v64 = vunpack.c.l.b16 %v44
    %v65 = vpack.c.b16 %v58, %v57
    %v66 = vpack.c.b16 %v60, %v59
    %v67 = vpack.c.b16 %v62, %v61
    %v68 = vpack.c.b16 %v64, %v63
    %vm73 = vcmask 523264
    %v75 = vsel %vm73, %v33, 0
    %v78 = vsel %vm73, %v34, 0
    %v81 = vsel %vm73, %v35, 0
    %v84 = vsel %vm73, %v36, 0
    %86 = vmatpush.bf16.msra.mxu0 0
    %87 = vmatpush.bf16.msra.mxu0 0
    %88 = vmatpush.bf16.msra.mxu0 0
    %89 = vmatpush.bf16.msra.mxu0 0
    %90 = vmatpush.bf16.msra.mxu0 %v68
    %91 = vmatpush.bf16.msra.mxu0 %v67
    %92 = vmatpush.bf16.msra.mxu0 %v66
    %93 = vmatpush.bf16.msra.mxu0 %v65
    %94 = vmatmul.bf16.gmra.mxu0 %v75
    %v95 = vpop.f32.mrf.mxu0
    %v96 = vadd.f32 %v47, %v95
    %v97 = vpop.f32.mrf.mxu0
    %v98 = vadd.f32 %v47, %v97
    %99 = vmatmul.bf16.gmra.mxu0 %v78
    %v100 = vpop.f32.mrf.mxu0
    %v101 = vadd.f32 %v47, %v100
    %v102 = vpop.f32.mrf.mxu0
    %v103 = vadd.f32 %v47, %v102
    %104 = vmatmul.bf16.gmra.mxu0 %v81
    %v105 = vpop.f32.mrf.mxu0
    %v106 = vadd.f32 %v47, %v105
    %v107 = vpop.f32.mrf.mxu0
    %v108 = vadd.f32 %v47, %v107
    %109 = vmatmul.bf16.gmra.mxu0 %v84
    %v110 = vpop.f32.mrf.mxu0
    %v111 = vadd.f32 %v47, %v110
    %v112 = vpop.f32.mrf.mxu0
    %v113 = vadd.f32 %v47, %v112
    %114 = vdwg.mxu0
    %v115 = vld [vmem:[%s3] sm:$0xff]
    %v116 = vld [vmem:[%s3 + $0x8] sm:$0xff]
    %v117 = vld [vmem:[%s3 + $0x10] sm:$0xff]
    %v118 = vld [vmem:[%s3 + $0x18] sm:$0xff]
    %v119 = vld [vmem:[%s3 + $0x20] sm:$0xff]
    %v120 = vld [vmem:[%s3 + $0x28] sm:$0xff]
    %v121 = vld [vmem:[%s3 + $0x30] sm:$0xff]
    %v122 = vld [vmem:[%s3 + $0x38] sm:$0xff]
    %v123 = vadd.f32 %v96, %v115
    %v124 = vadd.f32 %v98, %v116
    %v125 = vadd.f32 %v101, %v117
    %v126 = vadd.f32 %v103, %v118
    %v127 = vadd.f32 %v106, %v119
    %v128 = vadd.f32 %v108, %v120
    %v129 = vadd.f32 %v111, %v121
    %v130 = vadd.f32 %v113, %v122
    %vm131 = vcmask 261120
    %v132 = vsel %vm131, %v123, 0.0
    %133 = vadd.xlane.f32.xlu0 %v132
    %v134 = vpop.xlane.xlu0 %133
    %v135 = vsel %vm131, %v124, 0.0
    %136 = vadd.xlane.f32.xlu0 %v135
    %v137 = vpop.xlane.xlu0 %136
    %v138 = vsel %vm131, %v125, 0.0
    %139 = vadd.xlane.f32.xlu0 %v138
    %v140 = vpop.xlane.xlu0 %139
    %v141 = vsel %vm131, %v126, 0.0
    %142 = vadd.xlane.f32.xlu0 %v141
    %v143 = vpop.xlane.xlu0 %142
    %v144 = vsel %vm131, %v127, 0.0
    %145 = vadd.xlane.f32.xlu0 %v144
    %v146 = vpop.xlane.xlu0 %145
    %v147 = vsel %vm131, %v128, 0.0
    %148 = vadd.xlane.f32.xlu0 %v147
    %v149 = vpop.xlane.xlu0 %148
    %v150 = vsel %vm131, %v129, 0.0
    %151 = vadd.xlane.f32.xlu0 %v150
    %v152 = vpop.xlane.xlu0 %151
    %v153 = vsel %vm131, %v130, 0.0
    %154 = vadd.xlane.f32.xlu0 %v153
    %v155 = vpop.xlane.xlu0 %154
    %v156 = vrcp.pop 32.0
    %v157 = vmul.f32 32.0, %v156
    %v158 = vsub.f32 1.0, %v157
    %v159 = vmul.f32 %v156, %v158
    %v160 = vadd.f32 %v156, %v159
    %vm161 = vweird.f32 %v156
    %v162 = vsel %vm161, %v156, %v160
    %v163 = vmul.f32 %v134, %v162
    %v164 = vmul.f32 %v137, %v162
    %v165 = vmul.f32 %v140, %v162
    %v166 = vmul.f32 %v143, %v162
    %v167 = vmul.f32 %v146, %v162
    %v168 = vmul.f32 %v149, %v162
    %v169 = vmul.f32 %v152, %v162
    %v170 = vmul.f32 %v155, %v162
    %v171 = vsub.f32 %v123, %v163
    %v172 = vsub.f32 %v124, %v164
    %v173 = vsub.f32 %v125, %v165
    %v174 = vsub.f32 %v126, %v166
    %v175 = vsub.f32 %v127, %v167
    %v176 = vsub.f32 %v128, %v168
    %v177 = vsub.f32 %v129, %v169
    %v178 = vsub.f32 %v130, %v170
    %v179 = vmul.f32 %v171, %v171
    %v180 = vmul.f32 %v172, %v172
    %v181 = vmul.f32 %v173, %v173
    %v182 = vmul.f32 %v174, %v174
    %v183 = vmul.f32 %v175, %v175
    %v184 = vmul.f32 %v176, %v176
    %v185 = vmul.f32 %v177, %v177
    %v186 = vmul.f32 %v178, %v178
    %v187 = vsel %vm131, %v179, 0.0
    %188 = vadd.xlane.f32.xlu0 %v187
    %v189 = vpop.xlane.xlu0 %188
    %v190 = vsel %vm131, %v180, 0.0
    %191 = vadd.xlane.f32.xlu0 %v190
    %v192 = vpop.xlane.xlu0 %191
    %v193 = vsel %vm131, %v181, 0.0
    %194 = vadd.xlane.f32.xlu0 %v193
    %v195 = vpop.xlane.xlu0 %194
    %v196 = vsel %vm131, %v182, 0.0
    %197 = vadd.xlane.f32.xlu0 %v196
    %v198 = vpop.xlane.xlu0 %197
    %v199 = vsel %vm131, %v183, 0.0
    %200 = vadd.xlane.f32.xlu0 %v199
    %v201 = vpop.xlane.xlu0 %200
    %v202 = vsel %vm131, %v184, 0.0
    %203 = vadd.xlane.f32.xlu0 %v202
    %v204 = vpop.xlane.xlu0 %203
    %v205 = vsel %vm131, %v185, 0.0
    %206 = vadd.xlane.f32.xlu0 %v205
    %v207 = vpop.xlane.xlu0 %206
    %v208 = vsel %vm131, %v186, 0.0
    %209 = vadd.xlane.f32.xlu0 %v208
    %v210 = vpop.xlane.xlu0 %209
    %v211 = vmul.f32 %v189, %v162
    %v212 = vmul.f32 %v192, %v162
    %v213 = vmul.f32 %v195, %v162
    %v214 = vmul.f32 %v198, %v162
    %v215 = vmul.f32 %v201, %v162
    %v216 = vmul.f32 %v204, %v162
    %v217 = vmul.f32 %v207, %v162
    %v218 = vmul.f32 %v210, %v162
    %v219 = vadd.f32 %v211, 1e-12
    %v220 = vadd.f32 %v212, 1e-12
    %v221 = vadd.f32 %v213, 1e-12
    %v222 = vadd.f32 %v214, 1e-12
    %v223 = vadd.f32 %v215, 1e-12
    %v224 = vadd.f32 %v216, 1e-12
    %v225 = vadd.f32 %v217, 1e-12
    %v226 = vadd.f32 %v218, 1e-12
    %v227 = vrsqrt.pop %v219
    %v228 = vmul.f32 %v227, %v219
    %v229 = vmul.f32 %v228, %v227
    %v230 = vmul.f32 0.5, %v229
    %v231 = vsub.f32 1.5, %v230
    %v232 = vmul.f32 %v227, %v231
    %vm233 = vweird.f32 %v219
    %vm234 = vweird.f32 %v227
    %vm235 = vmor %vm233, %vm234
    %v236 = vsel %vm235, %v227, %v232
    %v237 = vrsqrt.pop %v220
    %v238 = vmul.f32 %v237, %v220
    %v239 = vmul.f32 %v238, %v237
    %v240 = vmul.f32 0.5, %v239
    %v241 = vsub.f32 1.5, %v240
    %v242 = vmul.f32 %v237, %v241
    %vm243 = vweird.f32 %v220
    %vm244 = vweird.f32 %v237
    %vm245 = vmor %vm243, %vm244
    %v246 = vsel %vm245, %v237, %v242
    %v247 = vrsqrt.pop %v221
    %v248 = vmul.f32 %v247, %v221
    %v249 = vmul.f32 %v248, %v247
    %v250 = vmul.f32 0.5, %v249
    %v251 = vsub.f32 1.5, %v250
    %v252 = vmul.f32 %v247, %v251
    %vm253 = vweird.f32 %v221
    %vm254 = vweird.f32 %v247
    %vm255 = vmor %vm253, %vm254
    %v256 = vsel %vm255, %v247, %v252
    %v257 = vrsqrt.pop %v222
    %v258 = vmul.f32 %v257, %v222
    %v259 = vmul.f32 %v258, %v257
    %v260 = vmul.f32 0.5, %v259
    %v261 = vsub.f32 1.5, %v260
    %v262 = vmul.f32 %v257, %v261
    %vm263 = vweird.f32 %v222
    %vm264 = vweird.f32 %v257
    %vm265 = vmor %vm263, %vm264
    %v266 = vsel %vm265, %v257, %v262
    %v267 = vrsqrt.pop %v223
    %v268 = vmul.f32 %v267, %v223
    %v269 = vmul.f32 %v268, %v267
    %v270 = vmul.f32 0.5, %v269
    %v271 = vsub.f32 1.5, %v270
    %v272 = vmul.f32 %v267, %v271
    %vm273 = vweird.f32 %v223
    %vm274 = vweird.f32 %v267
    %vm275 = vmor %vm273, %vm274
    %v276 = vsel %vm275, %v267, %v272
    %v277 = vrsqrt.pop %v224
    %v278 = vmul.f32 %v277, %v224
    %v279 = vmul.f32 %v278, %v277
    %v280 = vmul.f32 0.5, %v279
    %v281 = vsub.f32 1.5, %v280
    %v282 = vmul.f32 %v277, %v281
    %vm283 = vweird.f32 %v224
    %vm284 = vweird.f32 %v277
    %vm285 = vmor %vm283, %vm284
    %v286 = vsel %vm285, %v277, %v282
    %v287 = vrsqrt.pop %v225
    %v288 = vmul.f32 %v287, %v225
    %v289 = vmul.f32 %v288, %v287
    %v290 = vmul.f32 0.5, %v289
    %v291 = vsub.f32 1.5, %v290
    %v292 = vmul.f32 %v287, %v291
    %vm293 = vweird.f32 %v225
    %vm294 = vweird.f32 %v287
    %vm295 = vmor %vm293, %vm294
    %v296 = vsel %vm295, %v287, %v292
    %v297 = vrsqrt.pop %v226
    %v298 = vmul.f32 %v297, %v226
    %v299 = vmul.f32 %v298, %v297
    %v300 = vmul.f32 0.5, %v299
    %v301 = vsub.f32 1.5, %v300
    %v302 = vmul.f32 %v297, %v301
    %vm303 = vweird.f32 %v226
    %vm304 = vweird.f32 %v297
    %vm305 = vmor %vm303, %vm304
    %v306 = vsel %vm305, %v297, %v302
    %v307 = vmul.f32 %v171, %v236
    %v308 = vmul.f32 %v172, %v246
    %v309 = vmul.f32 %v173, %v256
    %v310 = vmul.f32 %v174, %v266
    %v311 = vmul.f32 %v175, %v276
    %v312 = vmul.f32 %v176, %v286
    %v313 = vmul.f32 %v177, %v296
    %v314 = vmul.f32 %v178, %v306
    %v315 = vld [vmem:[%s4] sm:$0x1]
    %v317 = vperm.slane %v315, 0
    %v319 = vmul.f32 %v307, %v317
    %v320 = vmul.f32 %v308, %v317
    %v321 = vmul.f32 %v309, %v317
    %v322 = vmul.f32 %v310, %v317
    %v323 = vmul.f32 %v311, %v317
    %v324 = vmul.f32 %v312, %v317
    %v325 = vmul.f32 %v313, %v317
    %v326 = vmul.f32 %v314, %v317
    %v327 = vld [vmem:[%s5] sm:$0x1]
    %v329 = vperm.slane %v327, 0
    %v331 = vadd.f32 %v319, %v329
    %v332 = vadd.f32 %v320, %v329
    %v333 = vadd.f32 %v321, %v329
    %v334 = vadd.f32 %v322, %v329
    %v335 = vadd.f32 %v323, %v329
    %v336 = vadd.f32 %v324, %v329
    %v337 = vadd.f32 %v325, %v329
    %v338 = vadd.f32 %v326, %v329
    %339 = vst.msk [vmem:[#allocation2] sm:$0xff] %vm131, %v331
    %340 = vst.msk [vmem:[#allocation2 + $0x8] sm:$0xff] %vm131, %v332
    %341 = vst.msk [vmem:[#allocation2 + $0x10] sm:$0xff] %vm131, %v333
    %342 = vst.msk [vmem:[#allocation2 + $0x18] sm:$0xff] %vm131, %v334
    %343 = vst.msk [vmem:[#allocation2 + $0x20] sm:$0xff] %vm131, %v335
    %344 = vst.msk [vmem:[#allocation2 + $0x28] sm:$0xff] %vm131, %v336
    %345 = vst.msk [vmem:[#allocation2 + $0x30] sm:$0xff] %vm131, %v337
    %346 = vst.msk [vmem:[#allocation2 + $0x38] sm:$0xff] %vm131, %v338
    // Predicated region
    $region26: #{graph_bert_encoder.19} parent=1 // pred_check
      _
    $region27: #{graph_bert_encoder.19} parent=1 // pred_check_branch
      %348 = sbr.rel (0) target = $region29
    $region28: #{graph_bert_encoder.19} parent=1 // pred_region
      %350 = vsyncadd [#allocation3], 0
      %s351 = sshll.u32 [#allocation2], 4
      %s352 = int_to_ptr.vmem [resolvable:$true] %s351
      %s353 = sshll.u32 %s6, 4
      %s354 = int_to_ptr.hbm [resolvable:$true] %s353
      %359 = dma.vmem_to_hbm [thread:$0]  %s352, 1024, %s354, [#allocation3], 128, 128, 8
    $region29: #{graph_bert_encoder.19} parent=1 // pred_fallthru
      _
    // Predicated region
    $region30: #{graph_bert_encoder.19} parent=1 // pred_check
      _
    $region31: #{graph_bert_encoder.19} parent=1 // pred_check_branch
      %361 = sbr.rel (0) target = $region33
    $region32: #{graph_bert_encoder.19} parent=1 // pred_region
      %363 = dma.done [#allocation3], 1024
    $region33: #{graph_bert_encoder.19} parent=1 // pred_fallthru
      _
    %364 = vsyncpa [#allocation3], 1

// kernel: graph_bert_encoder.14
$region0: #{graph_bert_encoder.14}
  #allocation0 [shape = 'u32[]', space=smem, size = 0x4, offset = 0x4, fixed_abs, tag = 'smem constant byte address 0x4 - core index']
  #allocation1 [shape = 'u32[72,128]{1,0:T(1,128)}', space=vmem, size = 0x9000, scoped, tag = 'internal scratch']
  %s0 = inlined_call_operand.vmem [shape: f32[2,4,32], index: 0, kind: input, shape index: {}]
  %s1 = inlined_call_operand.vmem [shape: f32[2,1,4], index: 1, kind: input, shape index: {}]
  %s2 = inlined_call_operand.vmem [shape: bf16[32,96], index: 2, kind: input, shape index: {}]
  %s3 = inlined_call_operand.vmem [shape: f32[1,96], index: 3, kind: input, shape index: {}]
  %s4 = inlined_call_operand.vmem [shape: f32[2,1,32], index: 4, kind: output, shape index: {}]
  %s5 = sld [smem:[#allocation0]]
  $region49: #{graph_bert_encoder.14} parent=0
    _
  %s7 = ssub.s32 1, %s5
  %s8 = scalar_select 0, %s7, %s5
  loop: start=0, step=1, limit=4
  $region2: #{graph_bert_encoder.14} parent=0 // loop_pre_header
    _
  $region3: #{graph_bert_encoder.14} parent=0 // loop_header
    %s10 = sphi 0, %s14
    %p11 = scmp.ge.s32.totalorder %s10, 4
    %s20 = sphi 0, %s22
    %s23 = sphi 0, %s20
    %s24 = sphi 0, %s23
    %s40 = sphi 0, %s24
    %s46 = sphi 0, %s48
    %s49 = sphi 0, %s46
    %s50 = sphi 0, %s49
    %s66 = sphi 0, %s50
    %s70 = sphi 0, %s70
    %s72 = sphi 0, %s70
    %s73 = sphi 0, %s72
    %s87 = sphi 0, %s73
    %s91 = sphi 0, %s91
    %s93 = sphi 0, %s91
    %s94 = sphi 0, %s93
    %s108 = sphi 0, %s94
    %s114 = sphi 0, %s116
    %s117 = sphi 0, %s114
    %s118 = sphi 0, %s117
    %s134 = sphi 0, %s118
  $region4: #{graph_bert_encoder.14} parent=0 // loop_header_branch
    %13 = sbr.rel (%p11) target = $region8
  $region5: #{graph_bert_encoder.14} parent=0 // loop_body
    %s15 = ssub.s32 %s10, 1
    %s16 = ssub.s32 %s10, 2
    %s17 = sadd.s32 %s10, 1
    %s18 = ssub.s32 %s10, %s17
    %p19 = scmp.eq.s32.totalorder %s18, 0
    %s21 = sadd.s32 %s20, 1
    %s22 = scalar_select %p19, %s20, %s21
    %p25 = pneg %p19
    %p26 = scmp.eq.s32.totalorder %s10, 1
    %p27 = por %p25, %p26
    %p28 = scmp.ne.s32.totalorder %s20, %s23
    %p29 = scmp.eq.s32.totalorder %s10, 0
    %p30 = por %p28, %p29
    %p31 = scmp.ne.s32.totalorder %s20, %s23
    %p32 = scmp.eq.s32.totalorder %s15, 1
    %p33 = por %p31, %p32
    %p34 = scmp.ne.s32.totalorder %s23, %s24
    %p35 = scmp.eq.s32.totalorder %s15, 0
    %p36 = por %p34, %p35
    %p37 = scmp.ne.s32.totalorder %s23, %s24
    %p38 = scmp.eq.s32.totalorder %s16, 1
    %p39 = por %p37, %p38
    %p41 = scmp.ne.s32.totalorder %s24, %s40
    %p42 = scmp.eq.s32.totalorder %s16, 0
    %p43 = por %p41, %p42
    %s44 = ssub.s32 %s10, %s17
    %p45 = scmp.eq.s32.totalorder %s44, 0
    %s47 = sadd.s32 %s46, 1
    %s48 = scalar_select %p45, %s46, %s47
    %p51 = pneg %p45
    %p52 = scmp.eq.s32.totalorder %s10, 1
    %p53 = por %p51, %p52
    %p54 = scmp.ne.s32.totalorder %s46, %s49
    %p55 = scmp.eq.s32.totalorder %s10, 0
    %p56 = por %p54, %p55
    %p57 = scmp.ne.s32.totalorder %s46, %s49
    %p58 = scmp.eq.s32.totalorder %s15, 1
    %p59 = por %p57, %p58
    %p60 = scmp.ne.s32.totalorder %s49, %s50
    %p61 = scmp.eq.s32.totalorder %s15, 0
    %p62 = por %p60, %p61
    %p63 = scmp.ne.s32.totalorder %s49, %s50
    %p64 = scmp.eq.s32.totalorder %s16, 1
    %p65 = por %p63, %p64
    %p67 = scmp.ne.s32.totalorder %s50, %s66
    %p68 = scmp.eq.s32.totalorder %s16, 0
    %p69 = por %p67, %p68
    %s71 = sadd.s32 %s70, 1
    %p74 = scmp.eq.s32.totalorder %s10, 1
    %p75 = scmp.ne.s32.totalorder %s70, %s72
    %p76 = scmp.eq.s32.totalorder %s10, 0
    %p77 = por %p75, %p76
    %p78 = scmp.ne.s32.totalorder %s70, %s72
    %p79 = scmp.eq.s32.totalorder %s15, 1
    %p80 = por %p78, %p79
    %p81 = scmp.ne.s32.totalorder %s72, %s73
    %p82 = scmp.eq.s32.totalorder %s15, 0
    %p83 = por %p81, %p82
    %p84 = scmp.ne.s32.totalorder %s72, %s73
    %p85 = scmp.eq.s32.totalorder %s16, 1
    %p86 = por %p84, %p85
    %p88 = scmp.ne.s32.totalorder %s73, %s87
    %p89 = scmp.eq.s32.totalorder %s16, 0
    %p90 = por %p88, %p89
    %s92 = sadd.s32 %s91, 1
    %p95 = scmp.eq.s32.totalorder %s10, 1
    %p96 = scmp.ne.s32.totalorder %s91, %s93
    %p97 = scmp.eq.s32.totalorder %s10, 0
    %p98 = por %p96, %p97
    %p99 = scmp.ne.s32.totalorder %s91, %s93
    %p100 = scmp.eq.s32.totalorder %s15, 1
    %p101 = por %p99, %p100
    %p102 = scmp.ne.s32.totalorder %s93, %s94
    %p103 = scmp.eq.s32.totalorder %s15, 0
    %p104 = por %p102, %p103
    %p105 = scmp.ne.s32.totalorder %s93, %s94
    %p106 = scmp.eq.s32.totalorder %s16, 1
    %p107 = por %p105, %p106
    %p109 = scmp.ne.s32.totalorder %s94, %s108
    %p110 = scmp.eq.s32.totalorder %s16, 0
    %p111 = por %p109, %p110
    %s112 = ssub.s32 %s10, %s17
    %p113 = scmp.eq.s32.totalorder %s112, 0
    %s115 = sadd.s32 %s114, 1
    %s116 = scalar_select %p113, %s114, %s115
    %p119 = pneg %p113
    %p120 = scmp.eq.s32.totalorder %s10, 1
    %p121 = por %p119, %p120
    %p122 = scmp.ne.s32.totalorder %s114, %s117
    %p123 = scmp.eq.s32.totalorder %s10, 0
    %p124 = por %p122, %p123
    %p125 = scmp.ne.s32.totalorder %s114, %s117
    %p126 = scmp.eq.s32.totalorder %s15, 1
    %p127 = por %p125, %p126
    %p128 = scmp.ne.s32.totalorder %s117, %s118
    %p129 = scmp.eq.s32.totalorder %s15, 0
    %p130 = por %p128, %p129
    %p131 = scmp.ne.s32.totalorder %s117, %s118
    %p132 = scmp.eq.s32.totalorder %s16, 1
    %p133 = por %p131, %p132
    %p135 = scmp.ne.s32.totalorder %s118, %s134
    %p136 = scmp.eq.s32.totalorder %s16, 0
    %p137 = por %p135, %p136
    %p138 = scmp.le.s32.totalorder 1, %s10
    %p139 = scmp.lt.s32.totalorder %s10, 3
    %p140 = pnand %p138, %p139
    %p141 = pneg %p140
    // Predicated region
    $region9: #{graph_bert_encoder.14} parent=5 // pred_check
      _
    $region10: #{graph_bert_encoder.14} parent=5 // pred_check_branch
      %143 = sbr.rel (%p140) target = $region12
    $region11: #{graph_bert_encoder.14} parent=5 // pred_region
      %s144 = ssub.s32 %s10, 1
      // Predicated region
      $region13: #{graph_bert_encoder.14} parent=11 // pred_check
        %p145 = pneg %p83
      $region14: #{graph_bert_encoder.14} parent=11 // pred_check_branch
        %147 = sbr.rel (%p145) target = $region16
      $region15: #{graph_bert_encoder.14} parent=11 // pred_region
        _
      $region16: #{graph_bert_encoder.14} parent=11 // pred_fallthru
        _
      // Predicated region
      $region17: #{graph_bert_encoder.14} parent=11 // pred_check
        %p148 = pneg %p104
      $region18: #{graph_bert_encoder.14} parent=11 // pred_check_branch
        %150 = sbr.rel (%p148) target = $region20
      $region19: #{graph_bert_encoder.14} parent=11 // pred_region
        _
      $region20: #{graph_bert_encoder.14} parent=11 // pred_fallthru
        _
    $region12: #{graph_bert_encoder.14} parent=5 // pred_fallthru
      _
    %p151 = scmp.lt.s32.totalorder %s10, 2
    // Predicated region
    $region21: #{graph_bert_encoder.14} parent=5 // pred_check
      %p152 = pneg %p151
    $region22: #{graph_bert_encoder.14} parent=5 // pred_check_branch
      %154 = sbr.rel (%p152) target = $region24
    $region23: #{graph_bert_encoder.14} parent=5 // pred_region
      // Predicated region
      $region25: #{graph_bert_encoder.14} parent=23 // pred_check
        %p155 = pneg %p30
      $region26: #{graph_bert_encoder.14} parent=23 // pred_check_branch
        %157 = sbr.rel (%p155) target = $region28
      $region27: #{graph_bert_encoder.14} parent=23 // pred_region
        %p158 = scmp.lt.s32.totalorder %s10, 1
        %s159 = scalar_select %p158, %s10, 1
        %s160 = smul.addr %s159, 4
        %s161 = scalar_lea.vmem %s0, %s160
      $region28: #{graph_bert_encoder.14} parent=23 // pred_fallthru
        _
      // Predicated region
      $region29: #{graph_bert_encoder.14} parent=23 // pred_check
        %p162 = pneg %p56
      $region30: #{graph_bert_encoder.14} parent=23 // pred_check_branch
        %164 = sbr.rel (%p162) target = $region32
      $region31: #{graph_bert_encoder.14} parent=23 // pred_region
        %p165 = scmp.lt.s32.totalorder %s10, 1
        %s166 = scalar_select %p165, %s10, 1
        %s167 = scalar_lea.vmem %s1, %s166
      $region32: #{graph_bert_encoder.14} parent=23 // pred_fallthru
        _
    $region24: #{graph_bert_encoder.14} parent=5 // pred_fallthru
      _
    %p168 = scmp.le.s32.totalorder 1, %s10
    %p169 = scmp.lt.s32.totalorder %s10, 3
    %p170 = pnand %p168, %p169
    %p171 = pneg %p170
    // Predicated region
    $region33: #{graph_bert_encoder.14} parent=5 // pred_check
      _
    $region34: #{graph_bert_encoder.14} parent=5 // pred_check_branch
      %173 = sbr.rel (%p170) target = $region36
    $region35: #{graph_bert_encoder.14} parent=5 // pred_region
      %s174 = ssub.s32 %s10, 1
      %p175 = scmp.lt.s32.totalorder %s15, 1
      %s176 = scalar_select %p175, %s15, 1
      %s177 = smul.addr %s176, 4
      %s178 = scalar_lea.vmem %s0, %s177
      %p179 = pneg %p36
      %p180 = pneg %p33
      %p181 = scmp.lt.s32.totalorder %s15, 1
      %s182 = scalar_select %p181, %s15, 1
      %s183 = scalar_lea.vmem %s1, %s182
      %p184 = pneg %p62
      %p185 = pneg %p59
      %p186 = pneg %p83
      %p187 = pneg %p80
      %p188 = pneg %p104
      %p189 = pneg %p101
      %p190 = pneg %p130
      %p191 = pneg %p127
      %p192 = scmp.lt.s32.totalorder %s15, 1
      %s193 = scalar_select %p192, %s15, 1
      %s194 = scalar_lea.vmem %s4, %s193
      %p195 = scmp.lt.s32.totalorder %s15, 1
      %s196 = scalar_select %p195, %s15, 1
      %s197 = smul.addr %s196, 4
      %s198 = scalar_lea.vmem %s0, %s197
      %p199 = scmp.lt.s32.totalorder %s15, 1
      %s200 = scalar_select %p199, %s15, 1
      %s201 = scalar_lea.vmem %s1, %s200
      %p202 = scmp.lt.s32.totalorder %s15, 1
      %s203 = scalar_select %p202, %s15, 1
      %s204 = scalar_lea.vmem %s4, %s203
      %v206 = vld [vmem:[%s198] sm:$0xf]
      %v207 = vpack.c.bf16 %v206, %v206
      %v208 = vld [vmem:[%s2] sm:$0xf]
      %v209 = vld [vmem:[%s2 + $0x4] sm:$0xf]
      %v210 = vld [vmem:[%s2 + $0x8] sm:$0xf]
      %v211 = vld [vmem:[%s2 + $0xc] sm:$0xf]
      %v212 = vld [vmem:[%s3] sm:$0x1]
      %v214 = vperm.slane %v212, 0
      %v220 = vunpack.c.l.b16 %v208
      %v221 = vunpack.c.l.b16 %v209
      %v222 = vunpack.c.l.b16 %v210
      %v223 = vunpack.c.l.b16 %v211
      %v224 = vpack.c.b16 %v221, %v220
      %v225 = vpack.c.b16 %v223, %v222
      %vm228 = vcmask 261120
      %v230 = vsel %vm228, %v207, 0
      %232 = vmatpush.bf16.msra.mxu0 0
      %233 = vmatpush.bf16.msra.mxu0 0
      %234 = vmatpush.bf16.msra.mxu0 0
      %235 = vmatpush.bf16.msra.mxu0 0
      %236 = vmatpush.bf16.msra.mxu0 0
      %237 = vmatpush.bf16.msra.mxu0 0
      %238 = vmatpush.bf16.msra.mxu0 %v225
      %239 = vmatpush.bf16.msra.mxu0 %v224
      %240 = vmatmul.bf16.gmra.mxu0 %v230
      %v241 = vpop.f32.mrf.mxu0
      %v242 = vadd.f32 %v214, %v241
      %v243 = vpop.f32.mrf.mxu0
      %244 = vdwg.mxu0
      %v245 = vld [vmem:[%s201] sm:$0x1]
      %v246 = vpack.c.bf16 %v242, %v242
      %248 = vrot.lane.b32.xlu0 %v246, 96
      %v249 = vpop.permute.xlu0 %248
      %vm250 = vcmask 130048
      %v252 = vsel %vm250, %v246, 0
      %v255 = vsel %vm250, %v249, 0
      %257 = vmatpush.bf16.xpose.msra.mxu0 0
      %258 = vmatpush.bf16.xpose.msra.mxu0 0
      %259 = vmatpush.bf16.xpose.msra.mxu0 0
      %260 = vmatpush.bf16.xpose.msra.mxu0 0
      %261 = vmatpush.bf16.xpose.msra.mxu0 0
      %262 = vmatpush.bf16.xpose.msra.mxu0 0
      %263 = vmatpush.bf16.xpose.msra.mxu0 0
      %264 = vmatpush.bf16.xpose.msra.mxu0 %v255
      %265 = vmatmul.bf16.gmra.mxu0 %v252
      %v266 = vpop.f32.mrf.mxu0
      %v267 = vadd.f32 0.0, %v266
      %v268 = vpop.f32.mrf.mxu0
      %269 = vdwg.mxu0
      %v270 = vmul.f32 %v267, 0.25
      %v271 = vadd.f32 %v270, %v245
      %vm272 = vcmask 24576
      %v273 = vsel %vm272, %v271, -inf
      %274 = vmax.xlane.f32.xlu0 %v273
      %v275 = vpop.xlane.xlu0 %274
      %v276 = vsub.f32 %v271, %v275
      %v277 = vmul.f32 %v276, 1.442695
      %v278 = vpow.pop %v277
      %v279 = vsel %vm272, %v278, 0.0
      %280 = vadd.xlane.f32.xlu0 %v279
      %v281 = vpop.xlane.xlu0 %280
      %v282 = vrcp.pop %v281
      %v283 = vmul.f32 %v278, %v282
      %v284 = vpack.c.bf16 %v283, %v283
      %285 = vrot.lane.b32.xlu0 %v246, 64
      %v286 = vpop.permute.xlu0 %285
      %vm287 = vcmask 31744
      %v289 = vsel %vm287, %v284, 0
      %vm291 = vcmask 1041408
      %v293 = vsel %vm291, %v286, 0
      %295 = vmatpush.bf16.msra.mxu0 0
      %296 = vmatpush.bf16.msra.mxu0 0
      %297 = vmatpush.bf16.msra.mxu0 0
      %298 = vmatpush.bf16.msra.mxu0 0
      %299 = vmatpush.bf16.msra.mxu0 0
      %300 = vmatpush.bf16.msra.mxu0 0
      %301 = vmatpush.bf16.msra.mxu0 0
      %302 = vmatpush.bf16.msra.mxu0 %v293
      %303 = vmatmul.bf16.gmra.mxu0 %v289
      %v304 = vpop.f32.mrf.mxu0
      %v305 = vadd.f32 0.0, %v304
      %v306 = vpop.f32.mrf.mxu0
      %307 = vdwg.mxu0
      %308 = vrot.lane.b32.xlu0 %v246, 112
      %v309 = vpop.permute.xlu0 %308
      %310 = vrot.lane.b32.xlu0 %v246, 80
      %v311 = vpop.permute.xlu0 %310
      %v313 = vsel %vm250, %v309, 0
      %v316 = vsel %vm250, %v311, 0
      %318 = vmatpush.bf16.xpose.msra.mxu0 0
      %319 = vmatpush.bf16.xpose.msra.mxu0 0
      %320 = vmatpush.bf16.xpose.msra.mxu0 0
      %321 = vmatpush.bf16.xpose.msra.mxu0 0
      %322 = vmatpush.bf16.xpose.msra.mxu0 0
      %323 = vmatpush.bf16.xpose.msra.mxu0 0
      %324 = vmatpush.bf16.xpose.msra.mxu0 0
      %325 = vmatpush.bf16.xpose.msra.mxu0 %v316
      %326 = vmatmul.bf16.gmra.mxu0 %v313
      %v327 = vpop.f32.mrf.mxu0
      %v328 = vadd.f32 0.0, %v327
      %v329 = vpop.f32.mrf.mxu0
      %330 = vdwg.mxu0
      %v331 = vmul.f32 %v328, 0.25
      %v332 = vadd.f32 %v331, %v245
      %v333 = vsel %vm272, %v332, -inf
      %334 = vmax.xlane.f32.xlu0 %v333
      %v335 = vpop.xlane.xlu0 %334
      %v336 = vsub.f32 %v332, %v335
      %v337 = vmul.f32 %v336, 1.442695
      %v338 = vpow.pop %v337
      %v339 = vsel %vm272, %v338, 0.0
      %340 = vadd.xlane.f32.xlu0 %v339
      %v341 = vpop.xlane.xlu0 %340
      %v342 = vrcp.pop %v341
      %v343 = vmul.f32 %v338, %v342
      %v344 = vpack.c.bf16 %v343, %v343
      %345 = vrot.lane.b32.xlu0 %v246, 48
      %v346 = vpop.permute.xlu0 %345
      %v348 = vsel %vm287, %v344, 0
      %v351 = vsel %vm291, %v346, 0
      %353 = vmatpush.bf16.msra.mxu0 0
      %354 = vmatpush.bf16.msra.mxu0 0
      %355 = vmatpush.bf16.msra.mxu0 0
      %356 = vmatpush.bf16.msra.mxu0 0
      %357 = vmatpush.bf16.msra.mxu0 0
      %358 = vmatpush.bf16.msra.mxu0 0
      %359 = vmatpush.bf16.msra.mxu0 0
      %360 = vmatpush.bf16.msra.mxu0 %v351
      %361 = vmatmul.bf16.gmra.mxu0 %v348
      %v362 = vpop.f32.mrf.mxu0
      %v363 = vadd.f32 0.0, %v362
      %v364 = vpop.f32.mrf.mxu0
      %365 = vdwg.mxu0
      %367 = vrot.lane.b32.xlu0 %v363, 16
      %v368 = vpop.permute.xlu0 %367
      %v370 = vsel %vm250, %v305, %v368
      %vm371 = vcmask 253952
      %372 = vst.msk [vmem:[%s204] sm:$0x1] %vm371, %v370
      %p373 = scmp.lt.s32.totalorder %s15, 1
      %s374 = scalar_select %p373, %s15, 1
      %s375 = scalar_lea.vmem %s4, %s374
      // Predicated region
      $region37: #{graph_bert_encoder.14} parent=35 // pred_check
        %p376 = pneg %p127
      $region38: #{graph_bert_encoder.14} parent=35 // pred_check_branch
        %378 = sbr.rel (%p376) target = $region40
      $region39: #{graph_bert_encoder.14} parent=35 // pred_region
        _
      $region40: #{graph_bert_encoder.14} parent=35 // pred_fallthru
        _
    $region36: #{graph_bert_encoder.14} parent=5 // pred_fallthru
      _
    %p379 = scmp.le.s32.totalorder 2, %s10
    // Predicated region
    $region41: #{graph_bert_encoder.14} parent=5 // pred_check
      %p380 = pneg %p379
    $region42: #{graph_bert_encoder.14} parent=5 // pred_check_branch
      %382 = sbr.rel (%p380) target = $region44
    $region43: #{graph_bert_encoder.14} parent=5 // pred_region
      %s383 = ssub.s32 %s10, 2
      // Predicated region
      $region45: #{graph_bert_encoder.14} parent=43 // pred_check
        %p384 = pneg %p133
      $region46: #{graph_bert_encoder.14} parent=43 // pred_check_branch
        %386 = sbr.rel (%p384) target = $region48
      $region47: #{graph_bert_encoder.14} parent=43 // pred_region
        %p387 = scmp.lt.s32.totalorder %s16, 1
        %s388 = scalar_select %p387, %s16, 1
        %s389 = scalar_lea.vmem %s4, %s388
      $region48: #{graph_bert_encoder.14} parent=43 // pred_fallthru
        _
    $region44: #{graph_bert_encoder.14} parent=5 // pred_fallthru
      _
  $region6: #{graph_bert_encoder.14} parent=0 // loop_footer
    %s14 = sadd.s32 1, %s10
  $region7: #{graph_bert_encoder.14} parent=0 // loop_footer_branch
    %9 = sbr.rel target = $region3
  $region8: #{graph_bert_encoder.14} parent=0 // loop_exit
    _

</llo_original>
